<compile_context>
chip_gen: v7x
topology: tpu7x:2x2x1
jax: 0.10.0
libtpu: 0.0.40
codegen_flags: <defaults>
</compile_context>

<pallas_src>
from typing import NamedTuple

import jax
import jax.numpy as jnp
from jax import lax
from jax.experimental import pallas as pl
from jax.experimental.pallas import tpu as pltpu

RMS_EPS = 1e-6          # RMSNorm eps in the PyTorch module
GATED_NORM_EPS = 1e-5   # Mamba2's internal RMSNormGated default eps
NUM_VEC_ROWS = 16       # 13 packed row-vectors, padded to a multiple of 8 sublanes


class BlockCfg(NamedTuple):
    d_model: int
    d_state: int
    d_inner: int
    d_mlp: int
    off_x: int
    off_b: int
    off_c: int
    off_dt: int
    off_w1: int
    cols_a: int
    lanes: int


def _round_up(x, m):
    return ((x + m - 1) // m) * m


# ----------------------------------------------------------------------------
# Pooling kernel (masked mean over S) — separate tiny pallas_call so the big
# (B, S, D) tensor never rides along the block-stack pipeline.
# ----------------------------------------------------------------------------
def _pool_kernel(emb_ref, mask_ref, out_ref):
    emb = emb_ref[...]                                   # (B, S, D)
    mask = mask_ref[...]                                 # (B, S)
    masked = mask[:, :, None] * emb                      # attention_mask.unsqueeze(2) * embeddings
    pooled = jnp.sum(masked, axis=1)                     # (B, D)
    denom = jnp.sum(mask, axis=1, keepdims=True) + 1e-8  # (B, 1)
    out_ref[...] = pooled / denom
# TODO(synk): for production S, tile this kernel over S with a grid and an accumulator.


# ----------------------------------------------------------------------------
# One MambaBlock on a (B, d_model) residual stream (seq_len == 1 path)
# ----------------------------------------------------------------------------
def _block_compute(x, vecs, wa, wb, cfg: BlockCfg):
    d_model, d_state, d_inner, d_mlp = cfg.d_model, cfg.d_state, cfg.d_inner, cfg.d_mlp

    # packed per-block row vectors (all slices start at lane 0)
    norm1_w = vecs[0:1, :d_model]
    cw_x    = vecs[1:2, :d_inner]
    cb_x    = vecs[2:3, :d_inner]
    cw_b    = vecs[3:4, :d_state]
    cb_b    = vecs[4:5, :d_state]
    cw_c    = vecs[5:6, :d_state]
    cb_c    = vecs[6:7, :d_state]
    dt_bias = vecs[7:8, :d_inner]     # per-channel (host-expanded)
    d_skip  = vecs[8:9, :d_inner]     # per-channel (host-expanded)
    gn_w    = vecs[9:10, :d_inner]
    norm2_w = vecs[10:11, :d_model]
    b1      = vecs[11:12, :d_mlp]
    b2      = vecs[12:13, :d_model]

    # RMSNorm (module variant: norm(2,-1,keepdim) -> .pow(2).mean(-1,keepdim) is a
    # no-op over a size-1 axis, i.e. x / sqrt(sum(x^2) + eps))
    rms1 = jnp.sqrt(jnp.sum(x * x, axis=-1, keepdims=True) + RMS_EPS)
    xn = (norm1_w * x / rms1).astype(jnp.bfloat16)

    # fused in_proj: ONE MXU matmul over all 5 lane-padded segments (z|x|B|C|dt)
    proj = jnp.dot(xn, wa[:, :cfg.off_w1], preferred_element_type=jnp.float32)
    z   = proj[:, 0:d_inner]
    xs  = proj[:, cfg.off_x:cfg.off_x + d_inner]
    bm  = proj[:, cfg.off_b:cfg.off_b + d_state]
    cm  = proj[:, cfg.off_c:cfg.off_c + d_state]
    dtc = proj[:, cfg.off_dt:cfg.off_dt + d_inner]

    # depthwise causal conv1d over a length-1 sequence: only the last tap sees data; then SiLU
    xs = xs * cw_x + cb_x
    xs = xs * jax.nn.sigmoid(xs)
    bm = bm * cw_b + cb_b
    bm = bm * jax.nn.sigmoid(bm)
    cm = cm * cw_c + cb_c
    cm = cm * jax.nn.sigmoid(cm)

    # SSM collapses with h0 = 0:  y = softplus(dt + dt_bias) * (C.B) * x + D * x
    t = dtc + dt_bias
    dt_sp = jnp.where(t > 20.0, t, jnp.log1p(jnp.exp(jnp.minimum(t, 20.0))))
    s = jnp.sum(bm * cm, axis=-1, keepdims=True)          # (B, 1), ngroups == 1
    y = xs * (dt_sp * s + d_skip)                          # (B, d_inner)

    # gated RMSNorm (gate first, true mean-of-squares, eps=1e-5), out_proj + residual
    yg = y * (z * jax.nn.sigmoid(z))
    ygn = yg * lax.rsqrt(jnp.mean(yg * yg, axis=-1, keepdims=True) + GATED_NORM_EPS) * gn_w
    mamba_out = jnp.dot(ygn.astype(jnp.bfloat16), wb[0:d_inner, :],
                        preferred_element_type=jnp.float32)
    x = x + mamba_out                                      # residual 1

    # RMSNorm -> MLP (exact erf GELU = nn.GELU() default) -> residual
    rms2 = jnp.sqrt(jnp.sum(x * x, axis=-1, keepdims=True) + RMS_EPS)
    xn2 = (norm2_w * x / rms2).astype(jnp.bfloat16)
    h = jnp.dot(xn2, wa[:, cfg.off_w1:cfg.off_w1 + d_mlp],
                preferred_element_type=jnp.float32) + b1
    h = 0.5 * h * (1.0 + lax.erf(h * 0.7071067811865476))
    mlp_out = jnp.dot(h.astype(jnp.bfloat16), wb[d_inner:d_inner + d_mlp, :],
                      preferred_element_type=jnp.float32) + b2
    return x + mlp_out                                     # residual 2


# ----------------------------------------------------------------------------
# Kernel variants: VMEM-resident (grid collapsed) and HBM-streamed (grid over blocks)
# ----------------------------------------------------------------------------
def _make_resident_kernel(cfg: BlockCfg, num_blocks: int):
    def kernel(x_ref, vec_ref, wa_ref, wb_ref, out_ref):
        x = x_ref[...]
        for blk in range(num_blocks):      # static unroll; whole weight stack is VMEM-resident
            x = _block_compute(x, vec_ref[blk], wa_ref[blk], wb_ref[blk], cfg)
        out_ref[...] = x
    return kernel


def _make_streamed_kernel(cfg: BlockCfg):
    def kernel(x_ref, vec_ref, wa_ref, wb_ref, out_ref):
        blk = pl.program_id(0)

        @pl.when(blk == 0)
        def _():
            out_ref[...] = x_ref[...]

        # residual stream is carried directly in the VMEM-resident output block
        x = out_ref[...]
        out_ref[...] = _block_compute(x, vec_ref[0], wa_ref[0], wb_ref[0], cfg)
    return kernel


def build_submodel4(cfg: BlockCfg, num_blocks: int, *, stream=None):
    """Returns a jitted forward(embeddings, attention_mask, vec_all, wa_all, wb_all)."""
    if stream is None:
        weight_bytes = num_blocks * (NUM_VEC_ROWS * cfg.lanes * 4
                                     + cfg.d_model * cfg.cols_a * 2
                                     + (cfg.d_inner + cfg.d_mlp) * cfg.d_model * 2)
        stream = weight_bytes > (8 << 20)   # stay well under the scoped-VMEM default

    def forward(embeddings, attention_mask, vec_all, wa_all, wb_all):
        B = embeddings.shape[0]
        pooled = pl.pallas_call(
            _pool_kernel,
            out_shape=jax.ShapeDtypeStruct((B, cfg.d_model), jnp.float32),
        )(embeddings, attention_mask.astype(jnp.float32))

        if not stream:
            kernel = _make_resident_kernel(cfg, num_blocks)
            return pl.pallas_call(
                kernel,
                out_shape=jax.ShapeDtypeStruct((B, cfg.d_model), jnp.float32),
            )(pooled, vec_all, wa_all, wb_all)

        kernel = _make_streamed_kernel(cfg)
        grid_spec = pltpu.PrefetchScalarGridSpec(
            num_scalar_prefetch=0,
            grid=(num_blocks,),
            in_specs=[
                pl.BlockSpec((B, cfg.d_model), lambda i: (0, 0)),   # pooled x (resident)
                pl.BlockSpec((1, NUM_VEC_ROWS, cfg.lanes), lambda i: (i, 0, 0),
                             pipeline_mode=pl.Buffered(3)),          # vector slab
                pl.BlockSpec((1, cfg.d_model, cfg.cols_a), lambda i: (i, 0, 0),
                             pipeline_mode=pl.Buffered(3)),          # in_proj + w1 slab
                pl.BlockSpec((1, cfg.d_inner + cfg.d_mlp, cfg.d_model), lambda i: (i, 0, 0),
                             pipeline_mode=pl.Buffered(3)),          # w_out over w2 slab
            ],
            out_specs=pl.BlockSpec((B, cfg.d_model), lambda i: (0, 0)),
        )
        return pl.pallas_call(
            kernel,
            out_shape=jax.ShapeDtypeStruct((B, cfg.d_model), jnp.float32),
            grid_spec=grid_spec,
            compiler_params=pltpu.CompilerParams(
                # block chain carries state through the resident output -> sequential
                dimension_semantics=("arbitrary",),
            ),
        )(pooled, vec_all, wa_all, wb_all)

    return jax.jit(forward)


# ----------------------------------------------------------------------------
# Deterministic raw parameters (shapes implied by MambaBlock / Mamba2)
# ----------------------------------------------------------------------------
def init_block_params_raw(key, d_model, d_state, d_conv, expand, headdim):
    d_inner = expand * d_model
    nheads = d_inner // headdim
    conv_dim = d_inner + 2 * d_state
    d_in_proj = 2 * d_inner + 2 * d_state + nheads
    ks = jax.random.split(key, 12)

    def rnd(k, shape, scale):
        return jax.random.normal(k, shape, jnp.float32) * scale

    return dict(
        norm1_w=1.0 + rnd(ks[0], (d_model,), 0.1),
        w_in=rnd(ks[1], (d_model, d_in_proj), 0.05),     # in_proj.weight^T (no bias)
        conv_w=rnd(ks[2], (d_conv, conv_dim), 0.2),      # depthwise conv, taps x channels
        conv_b=rnd(ks[3], (conv_dim,), 0.1),
        dt_bias=rnd(ks[4], (nheads,), 0.1),
        A_log=jnp.log(1.0 + 15.0 * jax.random.uniform(ks[5], (nheads,), jnp.float32)),
        D=1.0 + rnd(ks[6], (nheads,), 0.1),              # Mamba2 skip parameter
        gn_w=1.0 + rnd(ks[7], (d_inner,), 0.1),          # RMSNormGated weight
        w_out=rnd(ks[8], (d_inner, d_model), 0.05),      # out_proj.weight^T (no bias)
        norm2_w=1.0 + rnd(ks[9], (d_model,), 0.1),
        w1=rnd(ks[10], (d_model, 4 * d_model), 0.05),
        b1=rnd(ks[11], (4 * d_model,), 0.02),
        w2=rnd(jax.random.fold_in(key, 99), (4 * d_model, d_model), 0.05),
        b2=rnd(jax.random.fold_in(key, 100), (d_model,), 0.02),
    )


def pack_block_params(raw_blocks, d_model, d_state, d_conv, expand, headdim):
    """Host preprocessing: split + lane-pad in_proj segments into one bf16 slab with w1,
    stack w_out over w2 into a second bf16 slab, expand per-head params to per-channel,
    reduce the causal conv to its last tap, and pack small vectors into a (16,128) slab."""
    d_inner = expand * d_model
    d_mlp = 4 * d_model
    lanes = _round_up(max(d_model, d_inner, d_state, d_mlp), 128)

    pz, px = _round_up(d_inner, 128), _round_up(d_inner, 128)
    pb, pc = _round_up(d_state, 128), _round_up(d_state, 128)
    pdt, pw1 = _round_up(d_inner, 128), _round_up(d_mlp, 128)
    off_x = pz
    off_b = off_x + px
    off_c = off_b + pb
    off_dt = off_c + pc
    off_w1 = off_dt + pdt
    cols_a = off_w1 + pw1
    cfg = BlockCfg(d_model, d_state, d_inner, d_mlp,
                   off_x, off_b, off_c, off_dt, off_w1, cols_a, lanes)

    def pad_cols(w, width):
        return jnp.pad(w, ((0, 0), (0, width - w.shape[1])))

    vec_l, wa_l, wb_l = [], [], []
    for raw in raw_blocks:
        w_in = raw["w_in"]
        w_z  = w_in[:, :d_inner]
        w_x  = w_in[:, d_inner:2 * d_inner]
        w_bm = w_in[:, 2 * d_inner:2 * d_inner + d_state]
        w_cm = w_in[:, 2 * d_inner + d_state:2 * d_inner + 2 * d_state]
        w_dt = w_in[:, 2 * d_inner + 2 * d_state:]

        # per-head -> per-channel expansion, once on the host
        w_dt_exp = jnp.repeat(w_dt, headdim, axis=1)              # (d_model, d_inner)
        dt_bias_exp = jnp.repeat(raw["dt_bias"], headdim)         # (d_inner,)
        d_exp = jnp.repeat(raw["D"], headdim)                     # (d_inner,)

        # causal depthwise conv over a length-1 sequence: only the last tap matters
        cw = raw["conv_w"][d_conv - 1]
        cb = raw["conv_b"]
        cw_x, cw_b, cw_c = cw[:d_inner], cw[d_inner:d_inner + d_state], cw[d_inner + d_state:]
        cb_x, cb_b, cb_c = cb[:d_inner], cb[d_inner:d_inner + d_state], cb[d_inner + d_state:]

        rows = [raw["norm1_w"], cw_x, cb_x, cw_b, cb_b, cw_c, cb_c,
                dt_bias_exp, d_exp, raw["gn_w"], raw["norm2_w"], raw["b1"], raw["b2"]]
        slab = jnp.zeros((NUM_VEC_ROWS, lanes), jnp.float32)
        for r, v in enumerate(rows):
            slab = slab.at[r, :v.shape[0]].set(v)
        vec_l.append(slab)

        wa_l.append(jnp.concatenate(
            [pad_cols(w_z, pz), pad_cols(w_x, px), pad_cols(w_bm, pb),
             pad_cols(w_cm, pc), pad_cols(w_dt_exp, pdt), pad_cols(raw["w1"], pw1)], axis=1))
        wb_l.append(jnp.concatenate([raw["w_out"], raw["w2"]], axis=0))

    vec_all = jnp.stack(vec_l)
    wa_all = jnp.stack(wa_l).astype(jnp.bfloat16)
    wb_all = jnp.stack(wb_l).astype(jnp.bfloat16)
    return (vec_all, wa_all, wb_all), cfg


# ----------------------------------------------------------------------------
# Pure-JAX reference (f32, literal conv + SSD step incl. A_log/h0 term)
# ----------------------------------------------------------------------------
def submodel4_reference(embeddings, attention_mask, raw_blocks, d_state, d_conv, headdim):
    masked = attention_mask[:, :, None] * embeddings
    mask_len = jnp.sum(attention_mask, axis=1, keepdims=True)
    x = jnp.sum(masked, axis=1) / (mask_len + 1e-8)
    B = x.shape[0]
    for raw in raw_blocks:
        d_inner = raw["gn_w"].shape[0]
        nheads = raw["dt_bias"].shape[0]
        rms = jnp.sqrt(jnp.sum(x * x, axis=-1, keepdims=True) + RMS_EPS)
        xn = raw["norm1_w"] * x / rms
        zxbcdt = xn @ raw["w_in"]
        z = zxbcdt[:, :d_inner]
        xBC = zxbcdt[:, d_inner:2 * d_inner + 2 * d_state]
        dt = zxbcdt[:, 2 * d_inner + 2 * d_state:]
        xBC_pad = jnp.pad(xBC[:, None, :], ((0, 0), (d_conv - 1, 0), (0, 0)))
        xBC = jnp.einsum('kc,bkc->bc', raw["conv_w"], xBC_pad) + raw["conv_b"]
        xBC = xBC * jax.nn.sigmoid(xBC)
        xs = xBC[:, :d_inner]
        Bm = xBC[:, d_inner:d_inner + d_state]
        Cm = xBC[:, d_inner + d_state:]
        dt = dt + raw["dt_bias"]
        dt = jnp.where(dt > 20.0, dt, jnp.log1p(jnp.exp(jnp.minimum(dt, 20.0))))
        A = -jnp.exp(raw["A_log"])
        xh = xs.reshape(B, nheads, headdim)
        h0 = jnp.zeros((B, nheads, headdim, d_state), jnp.float32)
        h1 = jnp.exp(dt * A)[:, :, None, None] * h0 \
            + jnp.einsum('bh,bhp,bn->bhpn', dt, xh, Bm)
        y = jnp.einsum('bn,bhpn->bhp', Cm, h1) + raw["D"][None, :, None] * xh
        y = y.reshape(B, d_inner)
        yg = y * (z * jax.nn.sigmoid(z))
        ygn = yg * lax.rsqrt(jnp.mean(yg * yg, axis=-1, keepdims=True) + GATED_NORM_EPS) * raw["gn_w"]
        x = x + ygn @ raw["w_out"]
        rms2 = jnp.sqrt(jnp.sum(x * x, axis=-1, keepdims=True) + RMS_EPS)
        xn2 = raw["norm2_w"] * x / rms2
        h = xn2 @ raw["w1"] + raw["b1"]
        h = 0.5 * h * (1.0 + lax.erf(h * 0.7071067811865476))
        x = x + h @ raw["w2"] + raw["b2"]
    return x


if __name__ == "__main__":
    B, S = 2, 8
    d_model, d_state, d_conv, expand = 32, 16, 4, 2
    headdim = 64                       # Mamba2 default -> d_inner = 64, nheads = 1
    num_cycles = 1
    num_blocks = 6 * num_cycles

    key = jax.random.PRNGKey(0)
    k_emb, k_par = jax.random.split(key)
    embeddings = jax.random.normal(k_emb, (B, S, d_model), jnp.float32)
    lens = jnp.array([5, 8])
    attention_mask = (jnp.arange(S)[None, :] < lens[:, None]).astype(jnp.float32)

    raw_blocks = [init_block_params_raw(k, d_model, d_state, d_conv, expand, headdim)
                  for k in jax.random.split(k_par, num_blocks)]
    (vec_all, wa_all, wb_all), cfg = pack_block_params(
        raw_blocks, d_model, d_state, d_conv, expand, headdim)

    # Resident path (auto-selected at this size: grid collapsed, weights VMEM-resident).
    fwd = build_submodel4(cfg, num_blocks)
    out = jax.block_until_ready(fwd(embeddings, attention_mask, vec_all, wa_all, wb_all))
    assert out.shape == (B, d_model), out.shape
    assert bool(jnp.all(jnp.isfinite(out)))

    # Streamed path (production-sized stacks): must agree with the resident path.
    fwd_stream = build_submodel4(cfg, num_blocks, stream=True)
    out_s = jax.block_until_ready(
        fwd_stream(embeddings, attention_mask, vec_all, wa_all, wb_all))
    assert bool(jnp.allclose(out, out_s, rtol=1e-4, atol=1e-5)), \
        ("resident vs streamed mismatch", float(jnp.max(jnp.abs(out - out_s))))

    # Pure-JAX f32 reference (kernel uses bf16 weights -> loose tolerance).
    ref = submodel4_reference(embeddings, attention_mask, raw_blocks, d_state, d_conv, headdim)
    assert bool(jnp.allclose(out, ref, rtol=5e-2, atol=1e-2)), \
        ("kernel vs reference mismatch", float(jnp.max(jnp.abs(out - ref))))

    print("KERNEL_OK")
</pallas_src>

<mosaic_0001>
module attributes {stable_mosaic.version = 11 : i64} {
  func.func @_pool_kernel(%arg0: memref<2x8x32xf32, #tpu.memory_space<vmem>>, %arg1: memref<2x8xf32, #tpu.memory_space<vmem>>, %arg2: memref<2x32xf32, #tpu.memory_space<vmem>>) attributes {dimension_semantics = [], scalar_prefetch = 0 : i64, scratch_operands = 0 : i64, tpu.core_type = #tpu.core_type<tc>} {
    %c0 = arith.constant 0 : index
    %c0_0 = arith.constant 0 : index
    %c0_1 = arith.constant 0 : index
    %0 = vector.load %arg0[%c0, %c0_0, %c0_1] : memref<2x8x32xf32, #tpu.memory_space<vmem>>, vector<2x8x32xf32>
    %c0_2 = arith.constant 0 : index
    %c0_3 = arith.constant 0 : index
    %1 = vector.load %arg1[%c0_2, %c0_3] : memref<2x8xf32, #tpu.memory_space<vmem>>, vector<2x8xf32>
    %2 = vector.shape_cast %1 : vector<2x8xf32> to vector<2x8x1xf32>
    %3 = vector.broadcast %2 : vector<2x8x1xf32> to vector<2x8x32xf32>
    %4 = arith.mulf %3, %0 : vector<2x8x32xf32>
    %cst = arith.constant dense<0.000000e+00> : vector<2x32xf32>
    %5 = vector.multi_reduction <add>, %4, %cst [1] : vector<2x8x32xf32> to vector<2x32xf32>
    %cst_4 = arith.constant dense<0.000000e+00> : vector<2xf32>
    %6 = vector.multi_reduction <add>, %1, %cst_4 [1] : vector<2x8xf32> to vector<2xf32>
    %7 = vector.shape_cast %6 : vector<2xf32> to vector<2x1xf32>
    %cst_5 = arith.constant 9.99999993E-9 : f32
    %8 = vector.broadcast %cst_5 : f32 to vector<2x1xf32>
    %9 = arith.addf %7, %8 : vector<2x1xf32>
    %10 = vector.broadcast %9 : vector<2x1xf32> to vector<2x32xf32>
    %11 = arith.divf %5, %10 : vector<2x32xf32>
    %c0_6 = arith.constant 0 : index
    %c0_7 = arith.constant 0 : index
    %12 = vector.load %arg2[%c0_6, %c0_7] : memref<2x32xf32, #tpu.memory_space<vmem>>, vector<2x32xf32>
    tpu.vector_store %arg2[%c0_6, %c0_7], %11 {strides = array<i32>} : memref<2x32xf32, #tpu.memory_space<vmem>>, vector<2x32xf32>,
    return
  }
}

module attributes {stable_mosaic.version = 11 : i64} {
  func.func @kernel(%arg0: memref<2x32xf32, #tpu.memory_space<vmem>>, %arg1: memref<6x16x128xf32, #tpu.memory_space<vmem>>, %arg2: memref<6x32x768xbf16, #tpu.memory_space<vmem>>, %arg3: memref<6x192x32xbf16, #tpu.memory_space<vmem>>, %arg4: memref<2x32xf32, #tpu.memory_space<vmem>>) attributes {dimension_semantics = [], scalar_prefetch = 0 : i64, scratch_operands = 0 : i64, tpu.core_type = #tpu.core_type<tc>} {
    %c0 = arith.constant 0 : index
    %c0_0 = arith.constant 0 : index
    %0 = vector.load %arg0[%c0, %c0_0] : memref<2x32xf32, #tpu.memory_space<vmem>>, vector<2x32xf32>
    %c0_1 = arith.constant 0 : index
    %c0_2 = arith.constant 0 : index
    %c0_3 = arith.constant 0 : index
    %1 = vector.load %arg1[%c0_1, %c0_2, %c0_3] : memref<6x16x128xf32, #tpu.memory_space<vmem>>, vector<1x16x128xf32>
    %2 = vector.shape_cast %1 : vector<1x16x128xf32> to vector<16x128xf32>
    %c0_4 = arith.constant 0 : index
    %c0_5 = arith.constant 0 : index
    %c0_6 = arith.constant 0 : index
    %3 = vector.load %arg2[%c0_4, %c0_5, %c0_6] : memref<6x32x768xbf16, #tpu.memory_space<vmem>>, vector<1x32x768xbf16>
    %4 = vector.shape_cast %3 : vector<1x32x768xbf16> to vector<32x768xbf16>
    %c0_7 = arith.constant 0 : index
    %c0_8 = arith.constant 0 : index
    %c0_9 = arith.constant 0 : index
    %5 = vector.load %arg3[%c0_7, %c0_8, %c0_9] : memref<6x192x32xbf16, #tpu.memory_space<vmem>>, vector<1x192x32xbf16>
    %6 = vector.shape_cast %5 : vector<1x192x32xbf16> to vector<192x32xbf16>
    %7 = vector.extract_strided_slice %2 {offsets = [0, 0], sizes = [1, 32], strides = [1, 1]} : vector<16x128xf32> to vector<1x32xf32>
    %8 = vector.extract_strided_slice %2 {offsets = [1, 0], sizes = [1, 64], strides = [1, 1]} : vector<16x128xf32> to vector<1x64xf32>
    %9 = vector.extract_strided_slice %2 {offsets = [2, 0], sizes = [1, 64], strides = [1, 1]} : vector<16x128xf32> to vector<1x64xf32>
    %10 = vector.extract_strided_slice %2 {offsets = [3, 0], sizes = [1, 16], strides = [1, 1]} : vector<16x128xf32> to vector<1x16xf32>
    %11 = vector.extract_strided_slice %2 {offsets = [4, 0], sizes = [1, 16], strides = [1, 1]} : vector<16x128xf32> to vector<1x16xf32>
    %12 = vector.extract_strided_slice %2 {offsets = [5, 0], sizes = [1, 16], strides = [1, 1]} : vector<16x128xf32> to vector<1x16xf32>
    %13 = vector.extract_strided_slice %2 {offsets = [6, 0], sizes = [1, 16], strides = [1, 1]} : vector<16x128xf32> to vector<1x16xf32>
    %14 = vector.extract_strided_slice %2 {offsets = [7, 0], sizes = [1, 64], strides = [1, 1]} : vector<16x128xf32> to vector<1x64xf32>
    %15 = vector.extract_strided_slice %2 {offsets = [8, 0], sizes = [1, 64], strides = [1, 1]} : vector<16x128xf32> to vector<1x64xf32>
    %16 = vector.extract_strided_slice %2 {offsets = [9, 0], sizes = [1, 64], strides = [1, 1]} : vector<16x128xf32> to vector<1x64xf32>
    %17 = vector.extract_strided_slice %2 {offsets = [10, 0], sizes = [1, 32], strides = [1, 1]} : vector<16x128xf32> to vector<1x32xf32>
    %18 = vector.extract_strided_slice %2 {offsets = [11, 0], sizes = [1, 128], strides = [1, 1]} : vector<16x128xf32> to vector<1x128xf32>
    %19 = vector.extract_strided_slice %2 {offsets = [12, 0], sizes = [1, 32], strides = [1, 1]} : vector<16x128xf32> to vector<1x32xf32>
    %20 = arith.mulf %0, %0 : vector<2x32xf32>
    %cst = arith.constant dense<0.000000e+00> : vector<2xf32>
    %21 = vector.multi_reduction <add>, %20, %cst [1] : vector<2x32xf32> to vector<2xf32>
    %22 = vector.shape_cast %21 : vector<2xf32> to vector<2x1xf32>
    %cst_10 = arith.constant 9.99999997E-7 : f32
    %23 = vector.broadcast %cst_10 : f32 to vector<2x1xf32>
    %24 = arith.addf %22, %23 : vector<2x1xf32>
    %25 = math.sqrt %24 : vector<2x1xf32>
    %26 = vector.broadcast %7 : vector<1x32xf32> to vector<2x32xf32>
    %27 = arith.mulf %26, %0 : vector<2x32xf32>
    %28 = vector.broadcast %25 : vector<2x1xf32> to vector<2x32xf32>
    %29 = arith.divf %27, %28 : vector<2x32xf32>
    %30 = arith.truncf %29 : vector<2x32xf32> to vector<2x32xbf16>
    %31 = vector.extract_strided_slice %4 {offsets = [0, 0], sizes = [32, 640], strides = [1, 1]} : vector<32x768xbf16> to vector<32x640xbf16>
    %cst_11 = arith.constant dense<0.000000e+00> : vector<2x640xf32>
    %32 = tpu.matmul %30, %31, %cst_11 {dimension_numbers = #tpu.dot_dimension_numbers<[1], [0], [0], [1], [0, 0, 1, 1], [], []>} : vector<2x32xbf16>, vector<32x640xbf16>, vector<2x640xf32> -> vector<2x640xf32>
    %33 = vector.extract_strided_slice %32 {offsets = [0, 0], sizes = [2, 64], strides = [1, 1]} : vector<2x640xf32> to vector<2x64xf32>
    %34 = vector.extract_strided_slice %32 {offsets = [0, 128], sizes = [2, 64], strides = [1, 1]} : vector<2x640xf32> to vector<2x64xf32>
    %35 = vector.extract_strided_slice %32 {offsets = [0, 256], sizes = [2, 16], strides = [1, 1]} : vector<2x640xf32> to vector<2x16xf32>
    %36 = vector.extract_strided_slice %32 {offsets = [0, 384], sizes = [2, 16], strides = [1, 1]} : vector<2x640xf32> to vector<2x16xf32>
    %37 = vector.extract_strided_slice %32 {offsets = [0, 512], sizes = [2, 64], strides = [1, 1]} : vector<2x640xf32> to vector<2x64xf32>
    %38 = vector.broadcast %8 : vector<1x64xf32> to vector<2x64xf32>
    %39 = arith.mulf %34, %38 : vector<2x64xf32>
    %40 = vector.broadcast %9 : vector<1x64xf32> to vector<2x64xf32>
    %41 = arith.addf %39, %40 : vector<2x64xf32>
    %42 = arith.negf %41 : vector<2x64xf32>
    %43 = math.exp %42 : vector<2x64xf32>
    %cst_12 = arith.constant 1.000000e+00 : f32
    %44 = vector.broadcast %cst_12 : f32 to vector<2x64xf32>
    %45 = arith.addf %44, %43 : vector<2x64xf32>
    %46 = arith.divf %44, %45 : vector<2x64xf32>
    %47 = arith.mulf %41, %46 : vector<2x64xf32>
    %48 = vector.broadcast %10 : vector<1x16xf32> to vector<2x16xf32>
    %49 = arith.mulf %35, %48 : vector<2x16xf32>
    %50 = vector.broadcast %11 : vector<1x16xf32> to vector<2x16xf32>
    %51 = arith.addf %49, %50 : vector<2x16xf32>
    %52 = arith.negf %51 : vector<2x16xf32>
    %53 = math.exp %52 : vector<2x16xf32>
    %cst_13 = arith.constant 1.000000e+00 : f32
    %54 = vector.broadcast %cst_13 : f32 to vector<2x16xf32>
    %55 = arith.addf %54, %53 : vector<2x16xf32>
    %56 = arith.divf %54, %55 : vector<2x16xf32>
    %57 = arith.mulf %51, %56 : vector<2x16xf32>
    %58 = vector.broadcast %12 : vector<1x16xf32> to vector<2x16xf32>
    %59 = arith.mulf %36, %58 : vector<2x16xf32>
    %60 = vector.broadcast %13 : vector<1x16xf32> to vector<2x16xf32>
    %61 = arith.addf %59, %60 : vector<2x16xf32>
    %62 = arith.negf %61 : vector<2x16xf32>
    %63 = math.exp %62 : vector<2x16xf32>
    %cst_14 = arith.constant 1.000000e+00 : f32
    %64 = vector.broadcast %cst_14 : f32 to vector<2x16xf32>
    %65 = arith.addf %64, %63 : vector<2x16xf32>
    %66 = arith.divf %64, %65 : vector<2x16xf32>
    %67 = arith.mulf %61, %66 : vector<2x16xf32>
    %68 = vector.broadcast %14 : vector<1x64xf32> to vector<2x64xf32>
    %69 = arith.addf %37, %68 : vector<2x64xf32>
    %cst_15 = arith.constant 2.000000e+01 : f32
    %70 = vector.broadcast %cst_15 : f32 to vector<2x64xf32>
    %71 = arith.cmpf ogt, %69, %70 : vector<2x64xf32>
    %cst_16 = arith.constant 2.000000e+01 : f32
    %72 = vector.broadcast %cst_16 : f32 to vector<2x64xf32>
    %73 = arith.minimumf %69, %72 : vector<2x64xf32>
    %74 = math.exp %73 : vector<2x64xf32>
    %75 = math.log1p %74 : vector<2x64xf32>
    %76 = arith.select %71, %69, %75 : vector<2x64xi1>, vector<2x64xf32>
    %77 = arith.mulf %57, %67 : vector<2x16xf32>
    %cst_17 = arith.constant dense<0.000000e+00> : vector<2xf32>
    %78 = vector.multi_reduction <add>, %77, %cst_17 [1] : vector<2x16xf32> to vector<2xf32>
    %79 = vector.shape_cast %78 : vector<2xf32> to vector<2x1xf32>
    %80 = vector.broadcast %79 : vector<2x1xf32> to vector<2x64xf32>
    %81 = arith.mulf %76, %80 : vector<2x64xf32>
    %82 = vector.broadcast %15 : vector<1x64xf32> to vector<2x64xf32>
    %83 = arith.addf %81, %82 : vector<2x64xf32>
    %84 = arith.mulf %47, %83 : vector<2x64xf32>
    %85 = arith.negf %33 : vector<2x64xf32>
    %86 = math.exp %85 : vector<2x64xf32>
    %cst_18 = arith.constant 1.000000e+00 : f32
    %87 = vector.broadcast %cst_18 : f32 to vector<2x64xf32>
    %88 = arith.addf %87, %86 : vector<2x64xf32>
    %89 = arith.divf %87, %88 : vector<2x64xf32>
    %90 = arith.mulf %33, %89 : vector<2x64xf32>
    %91 = arith.mulf %84, %90 : vector<2x64xf32>
    %92 = arith.mulf %91, %91 : vector<2x64xf32>
    %cst_19 = arith.constant dense<0.000000e+00> : vector<2xf32>
    %93 = vector.multi_reduction <add>, %92, %cst_19 [1] : vector<2x64xf32> to vector<2xf32>
    %94 = vector.shape_cast %93 : vector<2xf32> to vector<2x1xf32>
    %cst_20 = arith.constant 6.400000e+01 : f32
    %95 = vector.broadcast %cst_20 : f32 to vector<2x1xf32>
    %96 = arith.divf %94, %95 : vector<2x1xf32>
    %cst_21 = arith.constant 9.99999974E-6 : f32
    %97 = vector.broadcast %cst_21 : f32 to vector<2x1xf32>
    %98 = arith.addf %96, %97 : vector<2x1xf32>
    %99 = math.rsqrt %98 : vector<2x1xf32>
    %100 = vector.broadcast %99 : vector<2x1xf32> to vector<2x64xf32>
    %101 = arith.mulf %91, %100 : vector<2x64xf32>
    %102 = vector.broadcast %16 : vector<1x64xf32> to vector<2x64xf32>
    %103 = arith.mulf %101, %102 : vector<2x64xf32>
    %104 = arith.truncf %103 : vector<2x64xf32> to vector<2x64xbf16>
    %105 = vector.extract_strided_slice %6 {offsets = [0, 0], sizes = [64, 32], strides = [1, 1]} : vector<192x32xbf16> to vector<64x32xbf16>
    %cst_22 = arith.constant dense<0.000000e+00> : vector<2x32xf32>
    %106 = tpu.matmul %104, %105, %cst_22 {dimension_numbers = #tpu.dot_dimension_numbers<[1], [0], [0], [1], [0, 0, 1, 1], [], []>} : vector<2x64xbf16>, vector<64x32xbf16>, vector<2x32xf32> -> vector<2x32xf32>
    %107 = arith.addf %0, %106 : vector<2x32xf32>
    %108 = arith.mulf %107, %107 : vector<2x32xf32>
    %cst_23 = arith.constant dense<0.000000e+00> : vector<2xf32>
    %109 = vector.multi_reduction <add>, %108, %cst_23 [1] : vector<2x32xf32> to vector<2xf32>
    %110 = vector.shape_cast %109 : vector<2xf32> to vector<2x1xf32>
    %cst_24 = arith.constant 9.99999997E-7 : f32
    %111 = vector.broadcast %cst_24 : f32 to vector<2x1xf32>
    %112 = arith.addf %110, %111 : vector<2x1xf32>
    %113 = math.sqrt %112 : vector<2x1xf32>
    %114 = vector.broadcast %17 : vector<1x32xf32> to vector<2x32xf32>
    %115 = arith.mulf %114, %107 : vector<2x32xf32>
    %116 = vector.broadcast %113 : vector<2x1xf32> to vector<2x32xf32>
    %117 = arith.divf %115, %116 : vector<2x32xf32>
    %118 = arith.truncf %117 : vector<2x32xf32> to vector<2x32xbf16>
    %119 = vector.extract_strided_slice %4 {offsets = [0, 640], sizes = [32, 128], strides = [1, 1]} : vector<32x768xbf16> to vector<32x128xbf16>
    %cst_25 = arith.constant dense<0.000000e+00> : vector<2x128xf32>
    %120 = tpu.matmul %118, %119, %cst_25 {dimension_numbers = #tpu.dot_dimension_numbers<[1], [0], [0], [1], [0, 0, 1, 1], [], []>} : vector<2x32xbf16>, vector<32x128xbf16>, vector<2x128xf32> -> vector<2x128xf32>
    %121 = vector.broadcast %18 : vector<1x128xf32> to vector<2x128xf32>
    %122 = arith.addf %120, %121 : vector<2x128xf32>
    %cst_26 = arith.constant 5.000000e-01 : f32
    %123 = vector.broadcast %cst_26 : f32 to vector<2x128xf32>
    %124 = arith.mulf %123, %122 : vector<2x128xf32>
    %cst_27 = arith.constant 0.707106769 : f32
    %125 = vector.broadcast %cst_27 : f32 to vector<2x128xf32>
    %126 = arith.mulf %122, %125 : vector<2x128xf32>
    %127 = math.erf %126 : vector<2x128xf32>
    %cst_28 = arith.constant 1.000000e+00 : f32
    %128 = vector.broadcast %cst_28 : f32 to vector<2x128xf32>
    %129 = arith.addf %128, %127 : vector<2x128xf32>
    %130 = arith.mulf %124, %129 : vector<2x128xf32>
    %131 = arith.truncf %130 : vector<2x128xf32> to vector<2x128xbf16>
    %132 = vector.extract_strided_slice %6 {offsets = [64, 0], sizes = [128, 32], strides = [1, 1]} : vector<192x32xbf16> to vector<128x32xbf16>
    %cst_29 = arith.constant dense<0.000000e+00> : vector<2x32xf32>
    %133 = tpu.matmul %131, %132, %cst_29 {dimension_numbers = #tpu.dot_dimension_numbers<[1], [0], [0], [1], [0, 0, 1, 1], [], []>} : vector<2x128xbf16>, vector<128x32xbf16>, vector<2x32xf32> -> vector<2x32xf32>
    %134 = vector.broadcast %19 : vector<1x32xf32> to vector<2x32xf32>
    %135 = arith.addf %133, %134 : vector<2x32xf32>
    %136 = arith.addf %107, %135 : vector<2x32xf32>
    %c1 = arith.constant 1 : index
    %c0_30 = arith.constant 0 : index
    %c0_31 = arith.constant 0 : index
    %137 = vector.load %arg1[%c1, %c0_30, %c0_31] : memref<6x16x128xf32, #tpu.memory_space<vmem>>, vector<1x16x128xf32>
    %138 = vector.shape_cast %137 : vector<1x16x128xf32> to vector<16x128xf32>
    %c1_32 = arith.constant 1 : index
    %c0_33 = arith.constant 0 : index
    %c0_34 = arith.constant 0 : index
    %139 = vector.load %arg2[%c1_32, %c0_33, %c0_34] : memref<6x32x768xbf16, #tpu.memory_space<vmem>>, vector<1x32x768xbf16>
    %140 = vector.shape_cast %139 : vector<1x32x768xbf16> to vector<32x768xbf16>
    %c1_35 = arith.constant 1 : index
    %c0_36 = arith.constant 0 : index
    %c0_37 = arith.constant 0 : index
    %141 = vector.load %arg3[%c1_35, %c0_36, %c0_37] : memref<6x192x32xbf16, #tpu.memory_space<vmem>>, vector<1x192x32xbf16>
    %142 = vector.shape_cast %141 : vector<1x192x32xbf16> to vector<192x32xbf16>
    %143 = vector.extract_strided_slice %138 {offsets = [0, 0], sizes = [1, 32], strides = [1, 1]} : vector<16x128xf32> to vector<1x32xf32>
    %144 = vector.extract_strided_slice %138 {offsets = [1, 0], sizes = [1, 64], strides = [1, 1]} : vector<16x128xf32> to vector<1x64xf32>
    %145 = vector.extract_strided_slice %138 {offsets = [2, 0], sizes = [1, 64], strides = [1, 1]} : vector<16x128xf32> to vector<1x64xf32>
    %146 = vector.extract_strided_slice %138 {offsets = [3, 0], sizes = [1, 16], strides = [1, 1]} : vector<16x128xf32> to vector<1x16xf32>
    %147 = vector.extract_strided_slice %138 {offsets = [4, 0], sizes = [1, 16], strides = [1, 1]} : vector<16x128xf32> to vector<1x16xf32>
    %148 = vector.extract_strided_slice %138 {offsets = [5, 0], sizes = [1, 16], strides = [1, 1]} : vector<16x128xf32> to vector<1x16xf32>
    %149 = vector.extract_strided_slice %138 {offsets = [6, 0], sizes = [1, 16], strides = [1, 1]} : vector<16x128xf32> to vector<1x16xf32>
    %150 = vector.extract_strided_slice %138 {offsets = [7, 0], sizes = [1, 64], strides = [1, 1]} : vector<16x128xf32> to vector<1x64xf32>
    %151 = vector.extract_strided_slice %138 {offsets = [8, 0], sizes = [1, 64], strides = [1, 1]} : vector<16x128xf32> to vector<1x64xf32>
    %152 = vector.extract_strided_slice %138 {offsets = [9, 0], sizes = [1, 64], strides = [1, 1]} : vector<16x128xf32> to vector<1x64xf32>
    %153 = vector.extract_strided_slice %138 {offsets = [10, 0], sizes = [1, 32], strides = [1, 1]} : vector<16x128xf32> to vector<1x32xf32>
    %154 = vector.extract_strided_slice %138 {offsets = [11, 0], sizes = [1, 128], strides = [1, 1]} : vector<16x128xf32> to vector<1x128xf32>
    %155 = vector.extract_strided_slice %138 {offsets = [12, 0], sizes = [1, 32], strides = [1, 1]} : vector<16x128xf32> to vector<1x32xf32>
    %156 = arith.mulf %136, %136 : vector<2x32xf32>
    %cst_38 = arith.constant dense<0.000000e+00> : vector<2xf32>
    %157 = vector.multi_reduction <add>, %156, %cst_38 [1] : vector<2x32xf32> to vector<2xf32>
    %158 = vector.shape_cast %157 : vector<2xf32> to vector<2x1xf32>
    %cst_39 = arith.constant 9.99999997E-7 : f32
    %159 = vector.broadcast %cst_39 : f32 to vector<2x1xf32>
    %160 = arith.addf %158, %159 : vector<2x1xf32>
    %161 = math.sqrt %160 : vector<2x1xf32>
    %162 = vector.broadcast %143 : vector<1x32xf32> to vector<2x32xf32>
    %163 = arith.mulf %162, %136 : vector<2x32xf32>
    %164 = vector.broadcast %161 : vector<2x1xf32> to vector<2x32xf32>
    %165 = arith.divf %163, %164 : vector<2x32xf32>
    %166 = arith.truncf %165 : vector<2x32xf32> to vector<2x32xbf16>
    %167 = vector.extract_strided_slice %140 {offsets = [0, 0], sizes = [32, 640], strides = [1, 1]} : vector<32x768xbf16> to vector<32x640xbf16>
    %cst_40 = arith.constant dense<0.000000e+00> : vector<2x640xf32>
    %168 = tpu.matmul %166, %167, %cst_40 {dimension_numbers = #tpu.dot_dimension_numbers<[1], [0], [0], [1], [0, 0, 1, 1], [], []>} : vector<2x32xbf16>, vector<32x640xbf16>, vector<2x640xf32> -> vector<2x640xf32>
    %169 = vector.extract_strided_slice %168 {offsets = [0, 0], sizes = [2, 64], strides = [1, 1]} : vector<2x640xf32> to vector<2x64xf32>
    %170 = vector.extract_strided_slice %168 {offsets = [0, 128], sizes = [2, 64], strides = [1, 1]} : vector<2x640xf32> to vector<2x64xf32>
    %171 = vector.extract_strided_slice %168 {offsets = [0, 256], sizes = [2, 16], strides = [1, 1]} : vector<2x640xf32> to vector<2x16xf32>
    %172 = vector.extract_strided_slice %168 {offsets = [0, 384], sizes = [2, 16], strides = [1, 1]} : vector<2x640xf32> to vector<2x16xf32>
    %173 = vector.extract_strided_slice %168 {offsets = [0, 512], sizes = [2, 64], strides = [1, 1]} : vector<2x640xf32> to vector<2x64xf32>
    %174 = vector.broadcast %144 : vector<1x64xf32> to vector<2x64xf32>
    %175 = arith.mulf %170, %174 : vector<2x64xf32>
    %176 = vector.broadcast %145 : vector<1x64xf32> to vector<2x64xf32>
    %177 = arith.addf %175, %176 : vector<2x64xf32>
    %178 = arith.negf %177 : vector<2x64xf32>
    %179 = math.exp %178 : vector<2x64xf32>
    %cst_41 = arith.constant 1.000000e+00 : f32
    %180 = vector.broadcast %cst_41 : f32 to vector<2x64xf32>
    %181 = arith.addf %180, %179 : vector<2x64xf32>
    %182 = arith.divf %180, %181 : vector<2x64xf32>
    %183 = arith.mulf %177, %182 : vector<2x64xf32>
    %184 = vector.broadcast %146 : vector<1x16xf32> to vector<2x16xf32>
    %185 = arith.mulf %171, %184 : vector<2x16xf32>
    %186 = vector.broadcast %147 : vector<1x16xf32> to vector<2x16xf32>
    %187 = arith.addf %185, %186 : vector<2x16xf32>
    %188 = arith.negf %187 : vector<2x16xf32>
    %189 = math.exp %188 : vector<2x16xf32>
    %cst_42 = arith.constant 1.000000e+00 : f32
    %190 = vector.broadcast %cst_42 : f32 to vector<2x16xf32>
    %191 = arith.addf %190, %189 : vector<2x16xf32>
    %192 = arith.divf %190, %191 : vector<2x16xf32>
    %193 = arith.mulf %187, %192 : vector<2x16xf32>
    %194 = vector.broadcast %148 : vector<1x16xf32> to vector<2x16xf32>
    %195 = arith.mulf %172, %194 : vector<2x16xf32>
    %196 = vector.broadcast %149 : vector<1x16xf32> to vector<2x16xf32>
    %197 = arith.addf %195, %196 : vector<2x16xf32>
    %198 = arith.negf %197 : vector<2x16xf32>
    %199 = math.exp %198 : vector<2x16xf32>
    %cst_43 = arith.constant 1.000000e+00 : f32
    %200 = vector.broadcast %cst_43 : f32 to vector<2x16xf32>
    %201 = arith.addf %200, %199 : vector<2x16xf32>
    %202 = arith.divf %200, %201 : vector<2x16xf32>
    %203 = arith.mulf %197, %202 : vector<2x16xf32>
    %204 = vector.broadcast %150 : vector<1x64xf32> to vector<2x64xf32>
    %205 = arith.addf %173, %204 : vector<2x64xf32>
    %cst_44 = arith.constant 2.000000e+01 : f32
    %206 = vector.broadcast %cst_44 : f32 to vector<2x64xf32>
    %207 = arith.cmpf ogt, %205, %206 : vector<2x64xf32>
    %cst_45 = arith.constant 2.000000e+01 : f32
    %208 = vector.broadcast %cst_45 : f32 to vector<2x64xf32>
    %209 = arith.minimumf %205, %208 : vector<2x64xf32>
    %210 = math.exp %209 : vector<2x64xf32>
    %211 = math.log1p %210 : vector<2x64xf32>
    %212 = arith.select %207, %205, %211 : vector<2x64xi1>, vector<2x64xf32>
    %213 = arith.mulf %193, %203 : vector<2x16xf32>
    %cst_46 = arith.constant dense<0.000000e+00> : vector<2xf32>
    %214 = vector.multi_reduction <add>, %213, %cst_46 [1] : vector<2x16xf32> to vector<2xf32>
    %215 = vector.shape_cast %214 : vector<2xf32> to vector<2x1xf32>
    %216 = vector.broadcast %215 : vector<2x1xf32> to vector<2x64xf32>
    %217 = arith.mulf %212, %216 : vector<2x64xf32>
    %218 = vector.broadcast %151 : vector<1x64xf32> to vector<2x64xf32>
    %219 = arith.addf %217, %218 : vector<2x64xf32>
    %220 = arith.mulf %183, %219 : vector<2x64xf32>
    %221 = arith.negf %169 : vector<2x64xf32>
    %222 = math.exp %221 : vector<2x64xf32>
    %cst_47 = arith.constant 1.000000e+00 : f32
    %223 = vector.broadcast %cst_47 : f32 to vector<2x64xf32>
    %224 = arith.addf %223, %222 : vector<2x64xf32>
    %225 = arith.divf %223, %224 : vector<2x64xf32>
    %226 = arith.mulf %169, %225 : vector<2x64xf32>
    %227 = arith.mulf %220, %226 : vector<2x64xf32>
    %228 = arith.mulf %227, %227 : vector<2x64xf32>
    %cst_48 = arith.constant dense<0.000000e+00> : vector<2xf32>
    %229 = vector.multi_reduction <add>, %228, %cst_48 [1] : vector<2x64xf32> to vector<2xf32>
    %230 = vector.shape_cast %229 : vector<2xf32> to vector<2x1xf32>
    %cst_49 = arith.constant 6.400000e+01 : f32
    %231 = vector.broadcast %cst_49 : f32 to vector<2x1xf32>
    %232 = arith.divf %230, %231 : vector<2x1xf32>
    %cst_50 = arith.constant 9.99999974E-6 : f32
    %233 = vector.broadcast %cst_50 : f32 to vector<2x1xf32>
    %234 = arith.addf %232, %233 : vector<2x1xf32>
    %235 = math.rsqrt %234 : vector<2x1xf32>
    %236 = vector.broadcast %235 : vector<2x1xf32> to vector<2x64xf32>
    %237 = arith.mulf %227, %236 : vector<2x64xf32>
    %238 = vector.broadcast %152 : vector<1x64xf32> to vector<2x64xf32>
    %239 = arith.mulf %237, %238 : vector<2x64xf32>
    %240 = arith.truncf %239 : vector<2x64xf32> to vector<2x64xbf16>
    %241 = vector.extract_strided_slice %142 {offsets = [0, 0], sizes = [64, 32], strides = [1, 1]} : vector<192x32xbf16> to vector<64x32xbf16>
    %cst_51 = arith.constant dense<0.000000e+00> : vector<2x32xf32>
    %242 = tpu.matmul %240, %241, %cst_51 {dimension_numbers = #tpu.dot_dimension_numbers<[1], [0], [0], [1], [0, 0, 1, 1], [], []>} : vector<2x64xbf16>, vector<64x32xbf16>, vector<2x32xf32> -> vector<2x32xf32>
    %243 = arith.addf %136, %242 : vector<2x32xf32>
    %244 = arith.mulf %243, %243 : vector<2x32xf32>
    %cst_52 = arith.constant dense<0.000000e+00> : vector<2xf32>
    %245 = vector.multi_reduction <add>, %244, %cst_52 [1] : vector<2x32xf32> to vector<2xf32>
    %246 = vector.shape_cast %245 : vector<2xf32> to vector<2x1xf32>
    %cst_53 = arith.constant 9.99999997E-7 : f32
    %247 = vector.broadcast %cst_53 : f32 to vector<2x1xf32>
    %248 = arith.addf %246, %247 : vector<2x1xf32>
    %249 = math.sqrt %248 : vector<2x1xf32>
    %250 = vector.broadcast %153 : vector<1x32xf32> to vector<2x32xf32>
    %251 = arith.mulf %250, %243 : vector<2x32xf32>
    %252 = vector.broadcast %249 : vector<2x1xf32> to vector<2x32xf32>
    %253 = arith.divf %251, %252 : vector<2x32xf32>
    %254 = arith.truncf %253 : vector<2x32xf32> to vector<2x32xbf16>
    %255 = vector.extract_strided_slice %140 {offsets = [0, 640], sizes = [32, 128], strides = [1, 1]} : vector<32x768xbf16> to vector<32x128xbf16>
    %cst_54 = arith.constant dense<0.000000e+00> : vector<2x128xf32>
    %256 = tpu.matmul %254, %255, %cst_54 {dimension_numbers = #tpu.dot_dimension_numbers<[1], [0], [0], [1], [0, 0, 1, 1], [], []>} : vector<2x32xbf16>, vector<32x128xbf16>, vector<2x128xf32> -> vector<2x128xf32>
    %257 = vector.broadcast %154 : vector<1x128xf32> to vector<2x128xf32>
    %258 = arith.addf %256, %257 : vector<2x128xf32>
    %cst_55 = arith.constant 5.000000e-01 : f32
    %259 = vector.broadcast %cst_55 : f32 to vector<2x128xf32>
    %260 = arith.mulf %259, %258 : vector<2x128xf32>
    %cst_56 = arith.constant 0.707106769 : f32
    %261 = vector.broadcast %cst_56 : f32 to vector<2x128xf32>
    %262 = arith.mulf %258, %261 : vector<2x128xf32>
    %263 = math.erf %262 : vector<2x128xf32>
    %cst_57 = arith.constant 1.000000e+00 : f32
    %264 = vector.broadcast %cst_57 : f32 to vector<2x128xf32>
    %265 = arith.addf %264, %263 : vector<2x128xf32>
    %266 = arith.mulf %260, %265 : vector<2x128xf32>
    %267 = arith.truncf %266 : vector<2x128xf32> to vector<2x128xbf16>
    %268 = vector.extract_strided_slice %142 {offsets = [64, 0], sizes = [128, 32], strides = [1, 1]} : vector<192x32xbf16> to vector<128x32xbf16>
    %cst_58 = arith.constant dense<0.000000e+00> : vector<2x32xf32>
    %269 = tpu.matmul %267, %268, %cst_58 {dimension_numbers = #tpu.dot_dimension_numbers<[1], [0], [0], [1], [0, 0, 1, 1], [], []>} : vector<2x128xbf16>, vector<128x32xbf16>, vector<2x32xf32> -> vector<2x32xf32>
    %270 = vector.broadcast %155 : vector<1x32xf32> to vector<2x32xf32>
    %271 = arith.addf %269, %270 : vector<2x32xf32>
    %272 = arith.addf %243, %271 : vector<2x32xf32>
    %c2 = arith.constant 2 : index
    %c0_59 = arith.constant 0 : index
    %c0_60 = arith.constant 0 : index
    %273 = vector.load %arg1[%c2, %c0_59, %c0_60] : memref<6x16x128xf32, #tpu.memory_space<vmem>>, vector<1x16x128xf32>
    %274 = vector.shape_cast %273 : vector<1x16x128xf32> to vector<16x128xf32>
    %c2_61 = arith.constant 2 : index
    %c0_62 = arith.constant 0 : index
    %c0_63 = arith.constant 0 : index
    %275 = vector.load %arg2[%c2_61, %c0_62, %c0_63] : memref<6x32x768xbf16, #tpu.memory_space<vmem>>, vector<1x32x768xbf16>
    %276 = vector.shape_cast %275 : vector<1x32x768xbf16> to vector<32x768xbf16>
    %c2_64 = arith.constant 2 : index
    %c0_65 = arith.constant 0 : index
    %c0_66 = arith.constant 0 : index
    %277 = vector.load %arg3[%c2_64, %c0_65, %c0_66] : memref<6x192x32xbf16, #tpu.memory_space<vmem>>, vector<1x192x32xbf16>
    %278 = vector.shape_cast %277 : vector<1x192x32xbf16> to vector<192x32xbf16>
    %279 = vector.extract_strided_slice %274 {offsets = [0, 0], sizes = [1, 32], strides = [1, 1]} : vector<16x128xf32> to vector<1x32xf32>
    %280 = vector.extract_strided_slice %274 {offsets = [1, 0], sizes = [1, 64], strides = [1, 1]} : vector<16x128xf32> to vector<1x64xf32>
    %281 = vector.extract_strided_slice %274 {offsets = [2, 0], sizes = [1, 64], strides = [1, 1]} : vector<16x128xf32> to vector<1x64xf32>
    %282 = vector.extract_strided_slice %274 {offsets = [3, 0], sizes = [1, 16], strides = [1, 1]} : vector<16x128xf32> to vector<1x16xf32>
    %283 = vector.extract_strided_slice %274 {offsets = [4, 0], sizes = [1, 16], strides = [1, 1]} : vector<16x128xf32> to vector<1x16xf32>
    %284 = vector.extract_strided_slice %274 {offsets = [5, 0], sizes = [1, 16], strides = [1, 1]} : vector<16x128xf32> to vector<1x16xf32>
    %285 = vector.extract_strided_slice %274 {offsets = [6, 0], sizes = [1, 16], strides = [1, 1]} : vector<16x128xf32> to vector<1x16xf32>
    %286 = vector.extract_strided_slice %274 {offsets = [7, 0], sizes = [1, 64], strides = [1, 1]} : vector<16x128xf32> to vector<1x64xf32>
    %287 = vector.extract_strided_slice %274 {offsets = [8, 0], sizes = [1, 64], strides = [1, 1]} : vector<16x128xf32> to vector<1x64xf32>
    %288 = vector.extract_strided_slice %274 {offsets = [9, 0], sizes = [1, 64], strides = [1, 1]} : vector<16x128xf32> to vector<1x64xf32>
    %289 = vector.extract_strided_slice %274 {offsets = [10, 0], sizes = [1, 32], strides = [1, 1]} : vector<16x128xf32> to vector<1x32xf32>
    %290 = vector.extract_strided_slice %274 {offsets = [11, 0], sizes = [1, 128], strides = [1, 1]} : vector<16x128xf32> to vector<1x128xf32>
    %291 = vector.extract_strided_slice %274 {offsets = [12, 0], sizes = [1, 32], strides = [1, 1]} : vector<16x128xf32> to vector<1x32xf32>
    %292 = arith.mulf %272, %272 : vector<2x32xf32>
    %cst_67 = arith.constant dense<0.000000e+00> : vector<2xf32>
    %293 = vector.multi_reduction <add>, %292, %cst_67 [1] : vector<2x32xf32> to vector<2xf32>
    %294 = vector.shape_cast %293 : vector<2xf32> to vector<2x1xf32>
    %cst_68 = arith.constant 9.99999997E-7 : f32
    %295 = vector.broadcast %cst_68 : f32 to vector<2x1xf32>
    %296 = arith.addf %294, %295 : vector<2x1xf32>
    %297 = math.sqrt %296 : vector<2x1xf32>
    %298 = vector.broadcast %279 : vector<1x32xf32> to vector<2x32xf32>
    %299 = arith.mulf %298, %272 : vector<2x32xf32>
    %300 = vector.broadcast %297 : vector<2x1xf32> to vector<2x32xf32>
    %301 = arith.divf %299, %300 : vector<2x32xf32>
    %302 = arith.truncf %301 : vector<2x32xf32> to vector<2x32xbf16>
    %303 = vector.extract_strided_slice %276 {offsets = [0, 0], sizes = [32, 640], strides = [1, 1]} : vector<32x768xbf16> to vector<32x640xbf16>
    %cst_69 = arith.constant dense<0.000000e+00> : vector<2x640xf32>
    %304 = tpu.matmul %302, %303, %cst_69 {dimension_numbers = #tpu.dot_dimension_numbers<[1], [0], [0], [1], [0, 0, 1, 1], [], []>} : vector<2x32xbf16>, vector<32x640xbf16>, vector<2x640xf32> -> vector<2x640xf32>
    %305 = vector.extract_strided_slice %304 {offsets = [0, 0], sizes = [2, 64], strides = [1, 1]} : vector<2x640xf32> to vector<2x64xf32>
    %306 = vector.extract_strided_slice %304 {offsets = [0, 128], sizes = [2, 64], strides = [1, 1]} : vector<2x640xf32> to vector<2x64xf32>
    %307 = vector.extract_strided_slice %304 {offsets = [0, 256], sizes = [2, 16], strides = [1, 1]} : vector<2x640xf32> to vector<2x16xf32>
    %308 = vector.extract_strided_slice %304 {offsets = [0, 384], sizes = [2, 16], strides = [1, 1]} : vector<2x640xf32> to vector<2x16xf32>
    %309 = vector.extract_strided_slice %304 {offsets = [0, 512], sizes = [2, 64], strides = [1, 1]} : vector<2x640xf32> to vector<2x64xf32>
    %310 = vector.broadcast %280 : vector<1x64xf32> to vector<2x64xf32>
    %311 = arith.mulf %306, %310 : vector<2x64xf32>
    %312 = vector.broadcast %281 : vector<1x64xf32> to vector<2x64xf32>
    %313 = arith.addf %311, %312 : vector<2x64xf32>
    %314 = arith.negf %313 : vector<2x64xf32>
    %315 = math.exp %314 : vector<2x64xf32>
    %cst_70 = arith.constant 1.000000e+00 : f32
    %316 = vector.broadcast %cst_70 : f32 to vector<2x64xf32>
    %317 = arith.addf %316, %315 : vector<2x64xf32>
    %318 = arith.divf %316, %317 : vector<2x64xf32>
    %319 = arith.mulf %313, %318 : vector<2x64xf32>
    %320 = vector.broadcast %282 : vector<1x16xf32> to vector<2x16xf32>
    %321 = arith.mulf %307, %320 : vector<2x16xf32>
    %322 = vector.broadcast %283 : vector<1x16xf32> to vector<2x16xf32>
    %323 = arith.addf %321, %322 : vector<2x16xf32>
    %324 = arith.negf %323 : vector<2x16xf32>
    %325 = math.exp %324 : vector<2x16xf32>
    %cst_71 = arith.constant 1.000000e+00 : f32
    %326 = vector.broadcast %cst_71 : f32 to vector<2x16xf32>
    %327 = arith.addf %326, %325 : vector<2x16xf32>
    %328 = arith.divf %326, %327 : vector<2x16xf32>
    %329 = arith.mulf %323, %328 : vector<2x16xf32>
    %330 = vector.broadcast %284 : vector<1x16xf32> to vector<2x16xf32>
    %331 = arith.mulf %308, %330 : vector<2x16xf32>
    %332 = vector.broadcast %285 : vector<1x16xf32> to vector<2x16xf32>
    %333 = arith.addf %331, %332 : vector<2x16xf32>
    %334 = arith.negf %333 : vector<2x16xf32>
    %335 = math.exp %334 : vector<2x16xf32>
    %cst_72 = arith.constant 1.000000e+00 : f32
    %336 = vector.broadcast %cst_72 : f32 to vector<2x16xf32>
    %337 = arith.addf %336, %335 : vector<2x16xf32>
    %338 = arith.divf %336, %337 : vector<2x16xf32>
    %339 = arith.mulf %333, %338 : vector<2x16xf32>
    %340 = vector.broadcast %286 : vector<1x64xf32> to vector<2x64xf32>
    %341 = arith.addf %309, %340 : vector<2x64xf32>
    %cst_73 = arith.constant 2.000000e+01 : f32
    %342 = vector.broadcast %cst_73 : f32 to vector<2x64xf32>
    %343 = arith.cmpf ogt, %341, %342 : vector<2x64xf32>
    %cst_74 = arith.constant 2.000000e+01 : f32
    %344 = vector.broadcast %cst_74 : f32 to vector<2x64xf32>
    %345 = arith.minimumf %341, %344 : vector<2x64xf32>
    %346 = math.exp %345 : vector<2x64xf32>
    %347 = math.log1p %346 : vector<2x64xf32>
    %348 = arith.select %343, %341, %347 : vector<2x64xi1>, vector<2x64xf32>
    %349 = arith.mulf %329, %339 : vector<2x16xf32>
    %cst_75 = arith.constant dense<0.000000e+00> : vector<2xf32>
    %350 = vector.multi_reduction <add>, %349, %cst_75 [1] : vector<2x16xf32> to vector<2xf32>
    %351 = vector.shape_cast %350 : vector<2xf32> to vector<2x1xf32>
    %352 = vector.broadcast %351 : vector<2x1xf32> to vector<2x64xf32>
    %353 = arith.mulf %348, %352 : vector<2x64xf32>
    %354 = vector.broadcast %287 : vector<1x64xf32> to vector<2x64xf32>
    %355 = arith.addf %353, %354 : vector<2x64xf32>
    %356 = arith.mulf %319, %355 : vector<2x64xf32>
    %357 = arith.negf %305 : vector<2x64xf32>
    %358 = math.exp %357 : vector<2x64xf32>
    %cst_76 = arith.constant 1.000000e+00 : f32
    %359 = vector.broadcast %cst_76 : f32 to vector<2x64xf32>
    %360 = arith.addf %359, %358 : vector<2x64xf32>
    %361 = arith.divf %359, %360 : vector<2x64xf32>
    %362 = arith.mulf %305, %361 : vector<2x64xf32>
    %363 = arith.mulf %356, %362 : vector<2x64xf32>
    %364 = arith.mulf %363, %363 : vector<2x64xf32>
    %cst_77 = arith.constant dense<0.000000e+00> : vector<2xf32>
    %365 = vector.multi_reduction <add>, %364, %cst_77 [1] : vector<2x64xf32> to vector<2xf32>
    %366 = vector.shape_cast %365 : vector<2xf32> to vector<2x1xf32>
    %cst_78 = arith.constant 6.400000e+01 : f32
    %367 = vector.broadcast %cst_78 : f32 to vector<2x1xf32>
    %368 = arith.divf %366, %367 : vector<2x1xf32>
    %cst_79 = arith.constant 9.99999974E-6 : f32
    %369 = vector.broadcast %cst_79 : f32 to vector<2x1xf32>
    %370 = arith.addf %368, %369 : vector<2x1xf32>
    %371 = math.rsqrt %370 : vector<2x1xf32>
    %372 = vector.broadcast %371 : vector<2x1xf32> to vector<2x64xf32>
    %373 = arith.mulf %363, %372 : vector<2x64xf32>
    %374 = vector.broadcast %288 : vector<1x64xf32> to vector<2x64xf32>
    %375 = arith.mulf %373, %374 : vector<2x64xf32>
    %376 = arith.truncf %375 : vector<2x64xf32> to vector<2x64xbf16>
    %377 = vector.extract_strided_slice %278 {offsets = [0, 0], sizes = [64, 32], strides = [1, 1]} : vector<192x32xbf16> to vector<64x32xbf16>
    %cst_80 = arith.constant dense<0.000000e+00> : vector<2x32xf32>
    %378 = tpu.matmul %376, %377, %cst_80 {dimension_numbers = #tpu.dot_dimension_numbers<[1], [0], [0], [1], [0, 0, 1, 1], [], []>} : vector<2x64xbf16>, vector<64x32xbf16>, vector<2x32xf32> -> vector<2x32xf32>
    %379 = arith.addf %272, %378 : vector<2x32xf32>
    %380 = arith.mulf %379, %379 : vector<2x32xf32>
    %cst_81 = arith.constant dense<0.000000e+00> : vector<2xf32>
    %381 = vector.multi_reduction <add>, %380, %cst_81 [1] : vector<2x32xf32> to vector<2xf32>
    %382 = vector.shape_cast %381 : vector<2xf32> to vector<2x1xf32>
    %cst_82 = arith.constant 9.99999997E-7 : f32
    %383 = vector.broadcast %cst_82 : f32 to vector<2x1xf32>
    %384 = arith.addf %382, %383 : vector<2x1xf32>
    %385 = math.sqrt %384 : vector<2x1xf32>
    %386 = vector.broadcast %289 : vector<1x32xf32> to vector<2x32xf32>
    %387 = arith.mulf %386, %379 : vector<2x32xf32>
    %388 = vector.broadcast %385 : vector<2x1xf32> to vector<2x32xf32>
    %389 = arith.divf %387, %388 : vector<2x32xf32>
    %390 = arith.truncf %389 : vector<2x32xf32> to vector<2x32xbf16>
    %391 = vector.extract_strided_slice %276 {offsets = [0, 640], sizes = [32, 128], strides = [1, 1]} : vector<32x768xbf16> to vector<32x128xbf16>
    %cst_83 = arith.constant dense<0.000000e+00> : vector<2x128xf32>
    %392 = tpu.matmul %390, %391, %cst_83 {dimension_numbers = #tpu.dot_dimension_numbers<[1], [0], [0], [1], [0, 0, 1, 1], [], []>} : vector<2x32xbf16>, vector<32x128xbf16>, vector<2x128xf32> -> vector<2x128xf32>
    %393 = vector.broadcast %290 : vector<1x128xf32> to vector<2x128xf32>
    %394 = arith.addf %392, %393 : vector<2x128xf32>
    %cst_84 = arith.constant 5.000000e-01 : f32
    %395 = vector.broadcast %cst_84 : f32 to vector<2x128xf32>
    %396 = arith.mulf %395, %394 : vector<2x128xf32>
    %cst_85 = arith.constant 0.707106769 : f32
    %397 = vector.broadcast %cst_85 : f32 to vector<2x128xf32>
    %398 = arith.mulf %394, %397 : vector<2x128xf32>
    %399 = math.erf %398 : vector<2x128xf32>
    %cst_86 = arith.constant 1.000000e+00 : f32
    %400 = vector.broadcast %cst_86 : f32 to vector<2x128xf32>
    %401 = arith.addf %400, %399 : vector<2x128xf32>
    %402 = arith.mulf %396, %401 : vector<2x128xf32>
    %403 = arith.truncf %402 : vector<2x128xf32> to vector<2x128xbf16>
    %404 = vector.extract_strided_slice %278 {offsets = [64, 0], sizes = [128, 32], strides = [1, 1]} : vector<192x32xbf16> to vector<128x32xbf16>
    %cst_87 = arith.constant dense<0.000000e+00> : vector<2x32xf32>
    %405 = tpu.matmul %403, %404, %cst_87 {dimension_numbers = #tpu.dot_dimension_numbers<[1], [0], [0], [1], [0, 0, 1, 1], [], []>} : vector<2x128xbf16>, vector<128x32xbf16>, vector<2x32xf32> -> vector<2x32xf32>
    %406 = vector.broadcast %291 : vector<1x32xf32> to vector<2x32xf32>
    %407 = arith.addf %405, %406 : vector<2x32xf32>
    %408 = arith.addf %379, %407 : vector<2x32xf32>
    %c3 = arith.constant 3 : index
    %c0_88 = arith.constant 0 : index
    %c0_89 = arith.constant 0 : index
    %409 = vector.load %arg1[%c3, %c0_88, %c0_89] : memref<6x16x128xf32, #tpu.memory_space<vmem>>, vector<1x16x128xf32>
    %410 = vector.shape_cast %409 : vector<1x16x128xf32> to vector<16x128xf32>
    %c3_90 = arith.constant 3 : index
    %c0_91 = arith.constant 0 : index
    %c0_92 = arith.constant 0 : index
    %411 = vector.load %arg2[%c3_90, %c0_91, %c0_92] : memref<6x32x768xbf16, #tpu.memory_space<vmem>>, vector<1x32x768xbf16>
    %412 = vector.shape_cast %411 : vector<1x32x768xbf16> to vector<32x768xbf16>
    %c3_93 = arith.constant 3 : index
    %c0_94 = arith.constant 0 : index
    %c0_95 = arith.constant 0 : index
    %413 = vector.load %arg3[%c3_93, %c0_94, %c0_95] : memref<6x192x32xbf16, #tpu.memory_space<vmem>>, vector<1x192x32xbf16>
    %414 = vector.shape_cast %413 : vector<1x192x32xbf16> to vector<192x32xbf16>
    %415 = vector.extract_strided_slice %410 {offsets = [0, 0], sizes = [1, 32], strides = [1, 1]} : vector<16x128xf32> to vector<1x32xf32>
    %416 = vector.extract_strided_slice %410 {offsets = [1, 0], sizes = [1, 64], strides = [1, 1]} : vector<16x128xf32> to vector<1x64xf32>
    %417 = vector.extract_strided_slice %410 {offsets = [2, 0], sizes = [1, 64], strides = [1, 1]} : vector<16x128xf32> to vector<1x64xf32>
    %418 = vector.extract_strided_slice %410 {offsets = [3, 0], sizes = [1, 16], strides = [1, 1]} : vector<16x128xf32> to vector<1x16xf32>
    %419 = vector.extract_strided_slice %410 {offsets = [4, 0], sizes = [1, 16], strides = [1, 1]} : vector<16x128xf32> to vector<1x16xf32>
    %420 = vector.extract_strided_slice %410 {offsets = [5, 0], sizes = [1, 16], strides = [1, 1]} : vector<16x128xf32> to vector<1x16xf32>
    %421 = vector.extract_strided_slice %410 {offsets = [6, 0], sizes = [1, 16], strides = [1, 1]} : vector<16x128xf32> to vector<1x16xf32>
    %422 = vector.extract_strided_slice %410 {offsets = [7, 0], sizes = [1, 64], strides = [1, 1]} : vector<16x128xf32> to vector<1x64xf32>
    %423 = vector.extract_strided_slice %410 {offsets = [8, 0], sizes = [1, 64], strides = [1, 1]} : vector<16x128xf32> to vector<1x64xf32>
    %424 = vector.extract_strided_slice %410 {offsets = [9, 0], sizes = [1, 64], strides = [1, 1]} : vector<16x128xf32> to vector<1x64xf32>
    %425 = vector.extract_strided_slice %410 {offsets = [10, 0], sizes = [1, 32], strides = [1, 1]} : vector<16x128xf32> to vector<1x32xf32>
    %426 = vector.extract_strided_slice %410 {offsets = [11, 0], sizes = [1, 128], strides = [1, 1]} : vector<16x128xf32> to vector<1x128xf32>
    %427 = vector.extract_strided_slice %410 {offsets = [12, 0], sizes = [1, 32], strides = [1, 1]} : vector<16x128xf32> to vector<1x32xf32>
    %428 = arith.mulf %408, %408 : vector<2x32xf32>
    %cst_96 = arith.constant dense<0.000000e+00> : vector<2xf32>
    %429 = vector.multi_reduction <add>, %428, %cst_96 [1] : vector<2x32xf32> to vector<2xf32>
    %430 = vector.shape_cast %429 : vector<2xf32> to vector<2x1xf32>
    %cst_97 = arith.constant 9.99999997E-7 : f32
    %431 = vector.broadcast %cst_97 : f32 to vector<2x1xf32>
    %432 = arith.addf %430, %431 : vector<2x1xf32>
    %433 = math.sqrt %432 : vector<2x1xf32>
    %434 = vector.broadcast %415 : vector<1x32xf32> to vector<2x32xf32>
    %435 = arith.mulf %434, %408 : vector<2x32xf32>
    %436 = vector.broadcast %433 : vector<2x1xf32> to vector<2x32xf32>
    %437 = arith.divf %435, %436 : vector<2x32xf32>
    %438 = arith.truncf %437 : vector<2x32xf32> to vector<2x32xbf16>
    %439 = vector.extract_strided_slice %412 {offsets = [0, 0], sizes = [32, 640], strides = [1, 1]} : vector<32x768xbf16> to vector<32x640xbf16>
    %cst_98 = arith.constant dense<0.000000e+00> : vector<2x640xf32>
    %440 = tpu.matmul %438, %439, %cst_98 {dimension_numbers = #tpu.dot_dimension_numbers<[1], [0], [0], [1], [0, 0, 1, 1], [], []>} : vector<2x32xbf16>, vector<32x640xbf16>, vector<2x640xf32> -> vector<2x640xf32>
    %441 = vector.extract_strided_slice %440 {offsets = [0, 0], sizes = [2, 64], strides = [1, 1]} : vector<2x640xf32> to vector<2x64xf32>
    %442 = vector.extract_strided_slice %440 {offsets = [0, 128], sizes = [2, 64], strides = [1, 1]} : vector<2x640xf32> to vector<2x64xf32>
    %443 = vector.extract_strided_slice %440 {offsets = [0, 256], sizes = [2, 16], strides = [1, 1]} : vector<2x640xf32> to vector<2x16xf32>
    %444 = vector.extract_strided_slice %440 {offsets = [0, 384], sizes = [2, 16], strides = [1, 1]} : vector<2x640xf32> to vector<2x16xf32>
    %445 = vector.extract_strided_slice %440 {offsets = [0, 512], sizes = [2, 64], strides = [1, 1]} : vector<2x640xf32> to vector<2x64xf32>
    %446 = vector.broadcast %416 : vector<1x64xf32> to vector<2x64xf32>
    %447 = arith.mulf %442, %446 : vector<2x64xf32>
    %448 = vector.broadcast %417 : vector<1x64xf32> to vector<2x64xf32>
    %449 = arith.addf %447, %448 : vector<2x64xf32>
    %450 = arith.negf %449 : vector<2x64xf32>
    %451 = math.exp %450 : vector<2x64xf32>
    %cst_99 = arith.constant 1.000000e+00 : f32
    %452 = vector.broadcast %cst_99 : f32 to vector<2x64xf32>
    %453 = arith.addf %452, %451 : vector<2x64xf32>
    %454 = arith.divf %452, %453 : vector<2x64xf32>
    %455 = arith.mulf %449, %454 : vector<2x64xf32>
    %456 = vector.broadcast %418 : vector<1x16xf32> to vector<2x16xf32>
    %457 = arith.mulf %443, %456 : vector<2x16xf32>
    %458 = vector.broadcast %419 : vector<1x16xf32> to vector<2x16xf32>
    %459 = arith.addf %457, %458 : vector<2x16xf32>
    %460 = arith.negf %459 : vector<2x16xf32>
    %461 = math.exp %460 : vector<2x16xf32>
    %cst_100 = arith.constant 1.000000e+00 : f32
    %462 = vector.broadcast %cst_100 : f32 to vector<2x16xf32>
    %463 = arith.addf %462, %461 : vector<2x16xf32>
    %464 = arith.divf %462, %463 : vector<2x16xf32>
    %465 = arith.mulf %459, %464 : vector<2x16xf32>
    %466 = vector.broadcast %420 : vector<1x16xf32> to vector<2x16xf32>
    %467 = arith.mulf %444, %466 : vector<2x16xf32>
    %468 = vector.broadcast %421 : vector<1x16xf32> to vector<2x16xf32>
    %469 = arith.addf %467, %468 : vector<2x16xf32>
    %470 = arith.negf %469 : vector<2x16xf32>
    %471 = math.exp %470 : vector<2x16xf32>
    %cst_101 = arith.constant 1.000000e+00 : f32
    %472 = vector.broadcast %cst_101 : f32 to vector<2x16xf32>
    %473 = arith.addf %472, %471 : vector<2x16xf32>
    %474 = arith.divf %472, %473 : vector<2x16xf32>
    %475 = arith.mulf %469, %474 : vector<2x16xf32>
    %476 = vector.broadcast %422 : vector<1x64xf32> to vector<2x64xf32>
    %477 = arith.addf %445, %476 : vector<2x64xf32>
    %cst_102 = arith.constant 2.000000e+01 : f32
    %478 = vector.broadcast %cst_102 : f32 to vector<2x64xf32>
    %479 = arith.cmpf ogt, %477, %478 : vector<2x64xf32>
    %cst_103 = arith.constant 2.000000e+01 : f32
    %480 = vector.broadcast %cst_103 : f32 to vector<2x64xf32>
    %481 = arith.minimumf %477, %480 : vector<2x64xf32>
    %482 = math.exp %481 : vector<2x64xf32>
    %483 = math.log1p %482 : vector<2x64xf32>
    %484 = arith.select %479, %477, %483 : vector<2x64xi1>, vector<2x64xf32>
    %485 = arith.mulf %465, %475 : vector<2x16xf32>
    %cst_104 = arith.constant dense<0.000000e+00> : vector<2xf32>
    %486 = vector.multi_reduction <add>, %485, %cst_104 [1] : vector<2x16xf32> to vector<2xf32>
    %487 = vector.shape_cast %486 : vector<2xf32> to vector<2x1xf32>
    %488 = vector.broadcast %487 : vector<2x1xf32> to vector<2x64xf32>
    %489 = arith.mulf %484, %488 : vector<2x64xf32>
    %490 = vector.broadcast %423 : vector<1x64xf32> to vector<2x64xf32>
    %491 = arith.addf %489, %490 : vector<2x64xf32>
    %492 = arith.mulf %455, %491 : vector<2x64xf32>
    %493 = arith.negf %441 : vector<2x64xf32>
    %494 = math.exp %493 : vector<2x64xf32>
    %cst_105 = arith.constant 1.000000e+00 : f32
    %495 = vector.broadcast %cst_105 : f32 to vector<2x64xf32>
    %496 = arith.addf %495, %494 : vector<2x64xf32>
    %497 = arith.divf %495, %496 : vector<2x64xf32>
    %498 = arith.mulf %441, %497 : vector<2x64xf32>
    %499 = arith.mulf %492, %498 : vector<2x64xf32>
    %500 = arith.mulf %499, %499 : vector<2x64xf32>
    %cst_106 = arith.constant dense<0.000000e+00> : vector<2xf32>
    %501 = vector.multi_reduction <add>, %500, %cst_106 [1] : vector<2x64xf32> to vector<2xf32>
    %502 = vector.shape_cast %501 : vector<2xf32> to vector<2x1xf32>
    %cst_107 = arith.constant 6.400000e+01 : f32
    %503 = vector.broadcast %cst_107 : f32 to vector<2x1xf32>
    %504 = arith.divf %502, %503 : vector<2x1xf32>
    %cst_108 = arith.constant 9.99999974E-6 : f32
    %505 = vector.broadcast %cst_108 : f32 to vector<2x1xf32>
    %506 = arith.addf %504, %505 : vector<2x1xf32>
    %507 = math.rsqrt %506 : vector<2x1xf32>
    %508 = vector.broadcast %507 : vector<2x1xf32> to vector<2x64xf32>
    %509 = arith.mulf %499, %508 : vector<2x64xf32>
    %510 = vector.broadcast %424 : vector<1x64xf32> to vector<2x64xf32>
    %511 = arith.mulf %509, %510 : vector<2x64xf32>
    %512 = arith.truncf %511 : vector<2x64xf32> to vector<2x64xbf16>
    %513 = vector.extract_strided_slice %414 {offsets = [0, 0], sizes = [64, 32], strides = [1, 1]} : vector<192x32xbf16> to vector<64x32xbf16>
    %cst_109 = arith.constant dense<0.000000e+00> : vector<2x32xf32>
    %514 = tpu.matmul %512, %513, %cst_109 {dimension_numbers = #tpu.dot_dimension_numbers<[1], [0], [0], [1], [0, 0, 1, 1], [], []>} : vector<2x64xbf16>, vector<64x32xbf16>, vector<2x32xf32> -> vector<2x32xf32>
    %515 = arith.addf %408, %514 : vector<2x32xf32>
    %516 = arith.mulf %515, %515 : vector<2x32xf32>
    %cst_110 = arith.constant dense<0.000000e+00> : vector<2xf32>
    %517 = vector.multi_reduction <add>, %516, %cst_110 [1] : vector<2x32xf32> to vector<2xf32>
    %518 = vector.shape_cast %517 : vector<2xf32> to vector<2x1xf32>
    %cst_111 = arith.constant 9.99999997E-7 : f32
    %519 = vector.broadcast %cst_111 : f32 to vector<2x1xf32>
    %520 = arith.addf %518, %519 : vector<2x1xf32>
    %521 = math.sqrt %520 : vector<2x1xf32>
    %522 = vector.broadcast %425 : vector<1x32xf32> to vector<2x32xf32>
    %523 = arith.mulf %522, %515 : vector<2x32xf32>
    %524 = vector.broadcast %521 : vector<2x1xf32> to vector<2x32xf32>
    %525 = arith.divf %523, %524 : vector<2x32xf32>
    %526 = arith.truncf %525 : vector<2x32xf32> to vector<2x32xbf16>
    %527 = vector.extract_strided_slice %412 {offsets = [0, 640], sizes = [32, 128], strides = [1, 1]} : vector<32x768xbf16> to vector<32x128xbf16>
    %cst_112 = arith.constant dense<0.000000e+00> : vector<2x128xf32>
    %528 = tpu.matmul %526, %527, %cst_112 {dimension_numbers = #tpu.dot_dimension_numbers<[1], [0], [0], [1], [0, 0, 1, 1], [], []>} : vector<2x32xbf16>, vector<32x128xbf16>, vector<2x128xf32> -> vector<2x128xf32>
    %529 = vector.broadcast %426 : vector<1x128xf32> to vector<2x128xf32>
    %530 = arith.addf %528, %529 : vector<2x128xf32>
    %cst_113 = arith.constant 5.000000e-01 : f32
    %531 = vector.broadcast %cst_113 : f32 to vector<2x128xf32>
    %532 = arith.mulf %531, %530 : vector<2x128xf32>
    %cst_114 = arith.constant 0.707106769 : f32
    %533 = vector.broadcast %cst_114 : f32 to vector<2x128xf32>
    %534 = arith.mulf %530, %533 : vector<2x128xf32>
    %535 = math.erf %534 : vector<2x128xf32>
    %cst_115 = arith.constant 1.000000e+00 : f32
    %536 = vector.broadcast %cst_115 : f32 to vector<2x128xf32>
    %537 = arith.addf %536, %535 : vector<2x128xf32>
    %538 = arith.mulf %532, %537 : vector<2x128xf32>
    %539 = arith.truncf %538 : vector<2x128xf32> to vector<2x128xbf16>
    %540 = vector.extract_strided_slice %414 {offsets = [64, 0], sizes = [128, 32], strides = [1, 1]} : vector<192x32xbf16> to vector<128x32xbf16>
    %cst_116 = arith.constant dense<0.000000e+00> : vector<2x32xf32>
    %541 = tpu.matmul %539, %540, %cst_116 {dimension_numbers = #tpu.dot_dimension_numbers<[1], [0], [0], [1], [0, 0, 1, 1], [], []>} : vector<2x128xbf16>, vector<128x32xbf16>, vector<2x32xf32> -> vector<2x32xf32>
    %542 = vector.broadcast %427 : vector<1x32xf32> to vector<2x32xf32>
    %543 = arith.addf %541, %542 : vector<2x32xf32>
    %544 = arith.addf %515, %543 : vector<2x32xf32>
    %c4 = arith.constant 4 : index
    %c0_117 = arith.constant 0 : index
    %c0_118 = arith.constant 0 : index
    %545 = vector.load %arg1[%c4, %c0_117, %c0_118] : memref<6x16x128xf32, #tpu.memory_space<vmem>>, vector<1x16x128xf32>
    %546 = vector.shape_cast %545 : vector<1x16x128xf32> to vector<16x128xf32>
    %c4_119 = arith.constant 4 : index
    %c0_120 = arith.constant 0 : index
    %c0_121 = arith.constant 0 : index
    %547 = vector.load %arg2[%c4_119, %c0_120, %c0_121] : memref<6x32x768xbf16, #tpu.memory_space<vmem>>, vector<1x32x768xbf16>
    %548 = vector.shape_cast %547 : vector<1x32x768xbf16> to vector<32x768xbf16>
    %c4_122 = arith.constant 4 : index
    %c0_123 = arith.constant 0 : index
    %c0_124 = arith.constant 0 : index
    %549 = vector.load %arg3[%c4_122, %c0_123, %c0_124] : memref<6x192x32xbf16, #tpu.memory_space<vmem>>, vector<1x192x32xbf16>
    %550 = vector.shape_cast %549 : vector<1x192x32xbf16> to vector<192x32xbf16>
    %551 = vector.extract_strided_slice %546 {offsets = [0, 0], sizes = [1, 32], strides = [1, 1]} : vector<16x128xf32> to vector<1x32xf32>
    %552 = vector.extract_strided_slice %546 {offsets = [1, 0], sizes = [1, 64], strides = [1, 1]} : vector<16x128xf32> to vector<1x64xf32>
    %553 = vector.extract_strided_slice %546 {offsets = [2, 0], sizes = [1, 64], strides = [1, 1]} : vector<16x128xf32> to vector<1x64xf32>
    %554 = vector.extract_strided_slice %546 {offsets = [3, 0], sizes = [1, 16], strides = [1, 1]} : vector<16x128xf32> to vector<1x16xf32>
    %555 = vector.extract_strided_slice %546 {offsets = [4, 0], sizes = [1, 16], strides = [1, 1]} : vector<16x128xf32> to vector<1x16xf32>
    %556 = vector.extract_strided_slice %546 {offsets = [5, 0], sizes = [1, 16], strides = [1, 1]} : vector<16x128xf32> to vector<1x16xf32>
    %557 = vector.extract_strided_slice %546 {offsets = [6, 0], sizes = [1, 16], strides = [1, 1]} : vector<16x128xf32> to vector<1x16xf32>
    %558 = vector.extract_strided_slice %546 {offsets = [7, 0], sizes = [1, 64], strides = [1, 1]} : vector<16x128xf32> to vector<1x64xf32>
    %559 = vector.extract_strided_slice %546 {offsets = [8, 0], sizes = [1, 64], strides = [1, 1]} : vector<16x128xf32> to vector<1x64xf32>
    %560 = vector.extract_strided_slice %546 {offsets = [9, 0], sizes = [1, 64], strides = [1, 1]} : vector<16x128xf32> to vector<1x64xf32>
    %561 = vector.extract_strided_slice %546 {offsets = [10, 0], sizes = [1, 32], strides = [1, 1]} : vector<16x128xf32> to vector<1x32xf32>
    %562 = vector.extract_strided_slice %546 {offsets = [11, 0], sizes = [1, 128], strides = [1, 1]} : vector<16x128xf32> to vector<1x128xf32>
    %563 = vector.extract_strided_slice %546 {offsets = [12, 0], sizes = [1, 32], strides = [1, 1]} : vector<16x128xf32> to vector<1x32xf32>
    %564 = arith.mulf %544, %544 : vector<2x32xf32>
    %cst_125 = arith.constant dense<0.000000e+00> : vector<2xf32>
    %565 = vector.multi_reduction <add>, %564, %cst_125 [1] : vector<2x32xf32> to vector<2xf32>
    %566 = vector.shape_cast %565 : vector<2xf32> to vector<2x1xf32>
    %cst_126 = arith.constant 9.99999997E-7 : f32
    %567 = vector.broadcast %cst_126 : f32 to vector<2x1xf32>
    %568 = arith.addf %566, %567 : vector<2x1xf32>
    %569 = math.sqrt %568 : vector<2x1xf32>
    %570 = vector.broadcast %551 : vector<1x32xf32> to vector<2x32xf32>
    %571 = arith.mulf %570, %544 : vector<2x32xf32>
    %572 = vector.broadcast %569 : vector<2x1xf32> to vector<2x32xf32>
    %573 = arith.divf %571, %572 : vector<2x32xf32>
    %574 = arith.truncf %573 : vector<2x32xf32> to vector<2x32xbf16>
    %575 = vector.extract_strided_slice %548 {offsets = [0, 0], sizes = [32, 640], strides = [1, 1]} : vector<32x768xbf16> to vector<32x640xbf16>
    %cst_127 = arith.constant dense<0.000000e+00> : vector<2x640xf32>
    %576 = tpu.matmul %574, %575, %cst_127 {dimension_numbers = #tpu.dot_dimension_numbers<[1], [0], [0], [1], [0, 0, 1, 1], [], []>} : vector<2x32xbf16>, vector<32x640xbf16>, vector<2x640xf32> -> vector<2x640xf32>
    %577 = vector.extract_strided_slice %576 {offsets = [0, 0], sizes = [2, 64], strides = [1, 1]} : vector<2x640xf32> to vector<2x64xf32>
    %578 = vector.extract_strided_slice %576 {offsets = [0, 128], sizes = [2, 64], strides = [1, 1]} : vector<2x640xf32> to vector<2x64xf32>
    %579 = vector.extract_strided_slice %576 {offsets = [0, 256], sizes = [2, 16], strides = [1, 1]} : vector<2x640xf32> to vector<2x16xf32>
    %580 = vector.extract_strided_slice %576 {offsets = [0, 384], sizes = [2, 16], strides = [1, 1]} : vector<2x640xf32> to vector<2x16xf32>
    %581 = vector.extract_strided_slice %576 {offsets = [0, 512], sizes = [2, 64], strides = [1, 1]} : vector<2x640xf32> to vector<2x64xf32>
    %582 = vector.broadcast %552 : vector<1x64xf32> to vector<2x64xf32>
    %583 = arith.mulf %578, %582 : vector<2x64xf32>
    %584 = vector.broadcast %553 : vector<1x64xf32> to vector<2x64xf32>
    %585 = arith.addf %583, %584 : vector<2x64xf32>
    %586 = arith.negf %585 : vector<2x64xf32>
    %587 = math.exp %586 : vector<2x64xf32>
    %cst_128 = arith.constant 1.000000e+00 : f32
    %588 = vector.broadcast %cst_128 : f32 to vector<2x64xf32>
    %589 = arith.addf %588, %587 : vector<2x64xf32>
    %590 = arith.divf %588, %589 : vector<2x64xf32>
    %591 = arith.mulf %585, %590 : vector<2x64xf32>
    %592 = vector.broadcast %554 : vector<1x16xf32> to vector<2x16xf32>
    %593 = arith.mulf %579, %592 : vector<2x16xf32>
    %594 = vector.broadcast %555 : vector<1x16xf32> to vector<2x16xf32>
    %595 = arith.addf %593, %594 : vector<2x16xf32>
    %596 = arith.negf %595 : vector<2x16xf32>
    %597 = math.exp %596 : vector<2x16xf32>
    %cst_129 = arith.constant 1.000000e+00 : f32
    %598 = vector.broadcast %cst_129 : f32 to vector<2x16xf32>
    %599 = arith.addf %598, %597 : vector<2x16xf32>
    %600 = arith.divf %598, %599 : vector<2x16xf32>
    %601 = arith.mulf %595, %600 : vector<2x16xf32>
    %602 = vector.broadcast %556 : vector<1x16xf32> to vector<2x16xf32>
    %603 = arith.mulf %580, %602 : vector<2x16xf32>
    %604 = vector.broadcast %557 : vector<1x16xf32> to vector<2x16xf32>
    %605 = arith.addf %603, %604 : vector<2x16xf32>
    %606 = arith.negf %605 : vector<2x16xf32>
    %607 = math.exp %606 : vector<2x16xf32>
    %cst_130 = arith.constant 1.000000e+00 : f32
    %608 = vector.broadcast %cst_130 : f32 to vector<2x16xf32>
    %609 = arith.addf %608, %607 : vector<2x16xf32>
    %610 = arith.divf %608, %609 : vector<2x16xf32>
    %611 = arith.mulf %605, %610 : vector<2x16xf32>
    %612 = vector.broadcast %558 : vector<1x64xf32> to vector<2x64xf32>
    %613 = arith.addf %581, %612 : vector<2x64xf32>
    %cst_131 = arith.constant 2.000000e+01 : f32
    %614 = vector.broadcast %cst_131 : f32 to vector<2x64xf32>
    %615 = arith.cmpf ogt, %613, %614 : vector<2x64xf32>
    %cst_132 = arith.constant 2.000000e+01 : f32
    %616 = vector.broadcast %cst_132 : f32 to vector<2x64xf32>
    %617 = arith.minimumf %613, %616 : vector<2x64xf32>
    %618 = math.exp %617 : vector<2x64xf32>
    %619 = math.log1p %618 : vector<2x64xf32>
    %620 = arith.select %615, %613, %619 : vector<2x64xi1>, vector<2x64xf32>
    %621 = arith.mulf %601, %611 : vector<2x16xf32>
    %cst_133 = arith.constant dense<0.000000e+00> : vector<2xf32>
    %622 = vector.multi_reduction <add>, %621, %cst_133 [1] : vector<2x16xf32> to vector<2xf32>
    %623 = vector.shape_cast %622 : vector<2xf32> to vector<2x1xf32>
    %624 = vector.broadcast %623 : vector<2x1xf32> to vector<2x64xf32>
    %625 = arith.mulf %620, %624 : vector<2x64xf32>
    %626 = vector.broadcast %559 : vector<1x64xf32> to vector<2x64xf32>
    %627 = arith.addf %625, %626 : vector<2x64xf32>
    %628 = arith.mulf %591, %627 : vector<2x64xf32>
    %629 = arith.negf %577 : vector<2x64xf32>
    %630 = math.exp %629 : vector<2x64xf32>
    %cst_134 = arith.constant 1.000000e+00 : f32
    %631 = vector.broadcast %cst_134 : f32 to vector<2x64xf32>
    %632 = arith.addf %631, %630 : vector<2x64xf32>
    %633 = arith.divf %631, %632 : vector<2x64xf32>
    %634 = arith.mulf %577, %633 : vector<2x64xf32>
    %635 = arith.mulf %628, %634 : vector<2x64xf32>
    %636 = arith.mulf %635, %635 : vector<2x64xf32>
    %cst_135 = arith.constant dense<0.000000e+00> : vector<2xf32>
    %637 = vector.multi_reduction <add>, %636, %cst_135 [1] : vector<2x64xf32> to vector<2xf32>
    %638 = vector.shape_cast %637 : vector<2xf32> to vector<2x1xf32>
    %cst_136 = arith.constant 6.400000e+01 : f32
    %639 = vector.broadcast %cst_136 : f32 to vector<2x1xf32>
    %640 = arith.divf %638, %639 : vector<2x1xf32>
    %cst_137 = arith.constant 9.99999974E-6 : f32
    %641 = vector.broadcast %cst_137 : f32 to vector<2x1xf32>
    %642 = arith.addf %640, %641 : vector<2x1xf32>
    %643 = math.rsqrt %642 : vector<2x1xf32>
    %644 = vector.broadcast %643 : vector<2x1xf32> to vector<2x64xf32>
    %645 = arith.mulf %635, %644 : vector<2x64xf32>
    %646 = vector.broadcast %560 : vector<1x64xf32> to vector<2x64xf32>
    %647 = arith.mulf %645, %646 : vector<2x64xf32>
    %648 = arith.truncf %647 : vector<2x64xf32> to vector<2x64xbf16>
    %649 = vector.extract_strided_slice %550 {offsets = [0, 0], sizes = [64, 32], strides = [1, 1]} : vector<192x32xbf16> to vector<64x32xbf16>
    %cst_138 = arith.constant dense<0.000000e+00> : vector<2x32xf32>
    %650 = tpu.matmul %648, %649, %cst_138 {dimension_numbers = #tpu.dot_dimension_numbers<[1], [0], [0], [1], [0, 0, 1, 1], [], []>} : vector<2x64xbf16>, vector<64x32xbf16>, vector<2x32xf32> -> vector<2x32xf32>
    %651 = arith.addf %544, %650 : vector<2x32xf32>
    %652 = arith.mulf %651, %651 : vector<2x32xf32>
    %cst_139 = arith.constant dense<0.000000e+00> : vector<2xf32>
    %653 = vector.multi_reduction <add>, %652, %cst_139 [1] : vector<2x32xf32> to vector<2xf32>
    %654 = vector.shape_cast %653 : vector<2xf32> to vector<2x1xf32>
    %cst_140 = arith.constant 9.99999997E-7 : f32
    %655 = vector.broadcast %cst_140 : f32 to vector<2x1xf32>
    %656 = arith.addf %654, %655 : vector<2x1xf32>
    %657 = math.sqrt %656 : vector<2x1xf32>
    %658 = vector.broadcast %561 : vector<1x32xf32> to vector<2x32xf32>
    %659 = arith.mulf %658, %651 : vector<2x32xf32>
    %660 = vector.broadcast %657 : vector<2x1xf32> to vector<2x32xf32>
    %661 = arith.divf %659, %660 : vector<2x32xf32>
    %662 = arith.truncf %661 : vector<2x32xf32> to vector<2x32xbf16>
    %663 = vector.extract_strided_slice %548 {offsets = [0, 640], sizes = [32, 128], strides = [1, 1]} : vector<32x768xbf16> to vector<32x128xbf16>
    %cst_141 = arith.constant dense<0.000000e+00> : vector<2x128xf32>
    %664 = tpu.matmul %662, %663, %cst_141 {dimension_numbers = #tpu.dot_dimension_numbers<[1], [0], [0], [1], [0, 0, 1, 1], [], []>} : vector<2x32xbf16>, vector<32x128xbf16>, vector<2x128xf32> -> vector<2x128xf32>
    %665 = vector.broadcast %562 : vector<1x128xf32> to vector<2x128xf32>
    %666 = arith.addf %664, %665 : vector<2x128xf32>
    %cst_142 = arith.constant 5.000000e-01 : f32
    %667 = vector.broadcast %cst_142 : f32 to vector<2x128xf32>
    %668 = arith.mulf %667, %666 : vector<2x128xf32>
    %cst_143 = arith.constant 0.707106769 : f32
    %669 = vector.broadcast %cst_143 : f32 to vector<2x128xf32>
    %670 = arith.mulf %666, %669 : vector<2x128xf32>
    %671 = math.erf %670 : vector<2x128xf32>
    %cst_144 = arith.constant 1.000000e+00 : f32
    %672 = vector.broadcast %cst_144 : f32 to vector<2x128xf32>
    %673 = arith.addf %672, %671 : vector<2x128xf32>
    %674 = arith.mulf %668, %673 : vector<2x128xf32>
    %675 = arith.truncf %674 : vector<2x128xf32> to vector<2x128xbf16>
    %676 = vector.extract_strided_slice %550 {offsets = [64, 0], sizes = [128, 32], strides = [1, 1]} : vector<192x32xbf16> to vector<128x32xbf16>
    %cst_145 = arith.constant dense<0.000000e+00> : vector<2x32xf32>
    %677 = tpu.matmul %675, %676, %cst_145 {dimension_numbers = #tpu.dot_dimension_numbers<[1], [0], [0], [1], [0, 0, 1, 1], [], []>} : vector<2x128xbf16>, vector<128x32xbf16>, vector<2x32xf32> -> vector<2x32xf32>
    %678 = vector.broadcast %563 : vector<1x32xf32> to vector<2x32xf32>
    %679 = arith.addf %677, %678 : vector<2x32xf32>
    %680 = arith.addf %651, %679 : vector<2x32xf32>
    %c5 = arith.constant 5 : index
    %c0_146 = arith.constant 0 : index
    %c0_147 = arith.constant 0 : index
    %681 = vector.load %arg1[%c5, %c0_146, %c0_147] : memref<6x16x128xf32, #tpu.memory_space<vmem>>, vector<1x16x128xf32>
    %682 = vector.shape_cast %681 : vector<1x16x128xf32> to vector<16x128xf32>
    %c5_148 = arith.constant 5 : index
    %c0_149 = arith.constant 0 : index
    %c0_150 = arith.constant 0 : index
    %683 = vector.load %arg2[%c5_148, %c0_149, %c0_150] : memref<6x32x768xbf16, #tpu.memory_space<vmem>>, vector<1x32x768xbf16>
    %684 = vector.shape_cast %683 : vector<1x32x768xbf16> to vector<32x768xbf16>
    %c5_151 = arith.constant 5 : index
    %c0_152 = arith.constant 0 : index
    %c0_153 = arith.constant 0 : index
    %685 = vector.load %arg3[%c5_151, %c0_152, %c0_153] : memref<6x192x32xbf16, #tpu.memory_space<vmem>>, vector<1x192x32xbf16>
    %686 = vector.shape_cast %685 : vector<1x192x32xbf16> to vector<192x32xbf16>
    %687 = vector.extract_strided_slice %682 {offsets = [0, 0], sizes = [1, 32], strides = [1, 1]} : vector<16x128xf32> to vector<1x32xf32>
    %688 = vector.extract_strided_slice %682 {offsets = [1, 0], sizes = [1, 64], strides = [1, 1]} : vector<16x128xf32> to vector<1x64xf32>
    %689 = vector.extract_strided_slice %682 {offsets = [2, 0], sizes = [1, 64], strides = [1, 1]} : vector<16x128xf32> to vector<1x64xf32>
    %690 = vector.extract_strided_slice %682 {offsets = [3, 0], sizes = [1, 16], strides = [1, 1]} : vector<16x128xf32> to vector<1x16xf32>
    %691 = vector.extract_strided_slice %682 {offsets = [4, 0], sizes = [1, 16], strides = [1, 1]} : vector<16x128xf32> to vector<1x16xf32>
    %692 = vector.extract_strided_slice %682 {offsets = [5, 0], sizes = [1, 16], strides = [1, 1]} : vector<16x128xf32> to vector<1x16xf32>
    %693 = vector.extract_strided_slice %682 {offsets = [6, 0], sizes = [1, 16], strides = [1, 1]} : vector<16x128xf32> to vector<1x16xf32>
    %694 = vector.extract_strided_slice %682 {offsets = [7, 0], sizes = [1, 64], strides = [1, 1]} : vector<16x128xf32> to vector<1x64xf32>
    %695 = vector.extract_strided_slice %682 {offsets = [8, 0], sizes = [1, 64], strides = [1, 1]} : vector<16x128xf32> to vector<1x64xf32>
    %696 = vector.extract_strided_slice %682 {offsets = [9, 0], sizes = [1, 64], strides = [1, 1]} : vector<16x128xf32> to vector<1x64xf32>
    %697 = vector.extract_strided_slice %682 {offsets = [10, 0], sizes = [1, 32], strides = [1, 1]} : vector<16x128xf32> to vector<1x32xf32>
    %698 = vector.extract_strided_slice %682 {offsets = [11, 0], sizes = [1, 128], strides = [1, 1]} : vector<16x128xf32> to vector<1x128xf32>
    %699 = vector.extract_strided_slice %682 {offsets = [12, 0], sizes = [1, 32], strides = [1, 1]} : vector<16x128xf32> to vector<1x32xf32>
    %700 = arith.mulf %680, %680 : vector<2x32xf32>
    %cst_154 = arith.constant dense<0.000000e+00> : vector<2xf32>
    %701 = vector.multi_reduction <add>, %700, %cst_154 [1] : vector<2x32xf32> to vector<2xf32>
    %702 = vector.shape_cast %701 : vector<2xf32> to vector<2x1xf32>
    %cst_155 = arith.constant 9.99999997E-7 : f32
    %703 = vector.broadcast %cst_155 : f32 to vector<2x1xf32>
    %704 = arith.addf %702, %703 : vector<2x1xf32>
    %705 = math.sqrt %704 : vector<2x1xf32>
    %706 = vector.broadcast %687 : vector<1x32xf32> to vector<2x32xf32>
    %707 = arith.mulf %706, %680 : vector<2x32xf32>
    %708 = vector.broadcast %705 : vector<2x1xf32> to vector<2x32xf32>
    %709 = arith.divf %707, %708 : vector<2x32xf32>
    %710 = arith.truncf %709 : vector<2x32xf32> to vector<2x32xbf16>
    %711 = vector.extract_strided_slice %684 {offsets = [0, 0], sizes = [32, 640], strides = [1, 1]} : vector<32x768xbf16> to vector<32x640xbf16>
    %cst_156 = arith.constant dense<0.000000e+00> : vector<2x640xf32>
    %712 = tpu.matmul %710, %711, %cst_156 {dimension_numbers = #tpu.dot_dimension_numbers<[1], [0], [0], [1], [0, 0, 1, 1], [], []>} : vector<2x32xbf16>, vector<32x640xbf16>, vector<2x640xf32> -> vector<2x640xf32>
    %713 = vector.extract_strided_slice %712 {offsets = [0, 0], sizes = [2, 64], strides = [1, 1]} : vector<2x640xf32> to vector<2x64xf32>
    %714 = vector.extract_strided_slice %712 {offsets = [0, 128], sizes = [2, 64], strides = [1, 1]} : vector<2x640xf32> to vector<2x64xf32>
    %715 = vector.extract_strided_slice %712 {offsets = [0, 256], sizes = [2, 16], strides = [1, 1]} : vector<2x640xf32> to vector<2x16xf32>
    %716 = vector.extract_strided_slice %712 {offsets = [0, 384], sizes = [2, 16], strides = [1, 1]} : vector<2x640xf32> to vector<2x16xf32>
    %717 = vector.extract_strided_slice %712 {offsets = [0, 512], sizes = [2, 64], strides = [1, 1]} : vector<2x640xf32> to vector<2x64xf32>
    %718 = vector.broadcast %688 : vector<1x64xf32> to vector<2x64xf32>
    %719 = arith.mulf %714, %718 : vector<2x64xf32>
    %720 = vector.broadcast %689 : vector<1x64xf32> to vector<2x64xf32>
    %721 = arith.addf %719, %720 : vector<2x64xf32>
    %722 = arith.negf %721 : vector<2x64xf32>
    %723 = math.exp %722 : vector<2x64xf32>
    %cst_157 = arith.constant 1.000000e+00 : f32
    %724 = vector.broadcast %cst_157 : f32 to vector<2x64xf32>
    %725 = arith.addf %724, %723 : vector<2x64xf32>
    %726 = arith.divf %724, %725 : vector<2x64xf32>
    %727 = arith.mulf %721, %726 : vector<2x64xf32>
    %728 = vector.broadcast %690 : vector<1x16xf32> to vector<2x16xf32>
    %729 = arith.mulf %715, %728 : vector<2x16xf32>
    %730 = vector.broadcast %691 : vector<1x16xf32> to vector<2x16xf32>
    %731 = arith.addf %729, %730 : vector<2x16xf32>
    %732 = arith.negf %731 : vector<2x16xf32>
    %733 = math.exp %732 : vector<2x16xf32>
    %cst_158 = arith.constant 1.000000e+00 : f32
    %734 = vector.broadcast %cst_158 : f32 to vector<2x16xf32>
    %735 = arith.addf %734, %733 : vector<2x16xf32>
    %736 = arith.divf %734, %735 : vector<2x16xf32>
    %737 = arith.mulf %731, %736 : vector<2x16xf32>
    %738 = vector.broadcast %692 : vector<1x16xf32> to vector<2x16xf32>
    %739 = arith.mulf %716, %738 : vector<2x16xf32>
    %740 = vector.broadcast %693 : vector<1x16xf32> to vector<2x16xf32>
    %741 = arith.addf %739, %740 : vector<2x16xf32>
    %742 = arith.negf %741 : vector<2x16xf32>
    %743 = math.exp %742 : vector<2x16xf32>
    %cst_159 = arith.constant 1.000000e+00 : f32
    %744 = vector.broadcast %cst_159 : f32 to vector<2x16xf32>
    %745 = arith.addf %744, %743 : vector<2x16xf32>
    %746 = arith.divf %744, %745 : vector<2x16xf32>
    %747 = arith.mulf %741, %746 : vector<2x16xf32>
    %748 = vector.broadcast %694 : vector<1x64xf32> to vector<2x64xf32>
    %749 = arith.addf %717, %748 : vector<2x64xf32>
    %cst_160 = arith.constant 2.000000e+01 : f32
    %750 = vector.broadcast %cst_160 : f32 to vector<2x64xf32>
    %751 = arith.cmpf ogt, %749, %750 : vector<2x64xf32>
    %cst_161 = arith.constant 2.000000e+01 : f32
    %752 = vector.broadcast %cst_161 : f32 to vector<2x64xf32>
    %753 = arith.minimumf %749, %752 : vector<2x64xf32>
    %754 = math.exp %753 : vector<2x64xf32>
    %755 = math.log1p %754 : vector<2x64xf32>
    %756 = arith.select %751, %749, %755 : vector<2x64xi1>, vector<2x64xf32>
    %757 = arith.mulf %737, %747 : vector<2x16xf32>
    %cst_162 = arith.constant dense<0.000000e+00> : vector<2xf32>
    %758 = vector.multi_reduction <add>, %757, %cst_162 [1] : vector<2x16xf32> to vector<2xf32>
    %759 = vector.shape_cast %758 : vector<2xf32> to vector<2x1xf32>
    %760 = vector.broadcast %759 : vector<2x1xf32> to vector<2x64xf32>
    %761 = arith.mulf %756, %760 : vector<2x64xf32>
    %762 = vector.broadcast %695 : vector<1x64xf32> to vector<2x64xf32>
    %763 = arith.addf %761, %762 : vector<2x64xf32>
    %764 = arith.mulf %727, %763 : vector<2x64xf32>
    %765 = arith.negf %713 : vector<2x64xf32>
    %766 = math.exp %765 : vector<2x64xf32>
    %cst_163 = arith.constant 1.000000e+00 : f32
    %767 = vector.broadcast %cst_163 : f32 to vector<2x64xf32>
    %768 = arith.addf %767, %766 : vector<2x64xf32>
    %769 = arith.divf %767, %768 : vector<2x64xf32>
    %770 = arith.mulf %713, %769 : vector<2x64xf32>
    %771 = arith.mulf %764, %770 : vector<2x64xf32>
    %772 = arith.mulf %771, %771 : vector<2x64xf32>
    %cst_164 = arith.constant dense<0.000000e+00> : vector<2xf32>
    %773 = vector.multi_reduction <add>, %772, %cst_164 [1] : vector<2x64xf32> to vector<2xf32>
    %774 = vector.shape_cast %773 : vector<2xf32> to vector<2x1xf32>
    %cst_165 = arith.constant 6.400000e+01 : f32
    %775 = vector.broadcast %cst_165 : f32 to vector<2x1xf32>
    %776 = arith.divf %774, %775 : vector<2x1xf32>
    %cst_166 = arith.constant 9.99999974E-6 : f32
    %777 = vector.broadcast %cst_166 : f32 to vector<2x1xf32>
    %778 = arith.addf %776, %777 : vector<2x1xf32>
    %779 = math.rsqrt %778 : vector<2x1xf32>
    %780 = vector.broadcast %779 : vector<2x1xf32> to vector<2x64xf32>
    %781 = arith.mulf %771, %780 : vector<2x64xf32>
    %782 = vector.broadcast %696 : vector<1x64xf32> to vector<2x64xf32>
    %783 = arith.mulf %781, %782 : vector<2x64xf32>
    %784 = arith.truncf %783 : vector<2x64xf32> to vector<2x64xbf16>
    %785 = vector.extract_strided_slice %686 {offsets = [0, 0], sizes = [64, 32], strides = [1, 1]} : vector<192x32xbf16> to vector<64x32xbf16>
    %cst_167 = arith.constant dense<0.000000e+00> : vector<2x32xf32>
    %786 = tpu.matmul %784, %785, %cst_167 {dimension_numbers = #tpu.dot_dimension_numbers<[1], [0], [0], [1], [0, 0, 1, 1], [], []>} : vector<2x64xbf16>, vector<64x32xbf16>, vector<2x32xf32> -> vector<2x32xf32>
    %787 = arith.addf %680, %786 : vector<2x32xf32>
    %788 = arith.mulf %787, %787 : vector<2x32xf32>
    %cst_168 = arith.constant dense<0.000000e+00> : vector<2xf32>
    %789 = vector.multi_reduction <add>, %788, %cst_168 [1] : vector<2x32xf32> to vector<2xf32>
    %790 = vector.shape_cast %789 : vector<2xf32> to vector<2x1xf32>
    %cst_169 = arith.constant 9.99999997E-7 : f32
    %791 = vector.broadcast %cst_169 : f32 to vector<2x1xf32>
    %792 = arith.addf %790, %791 : vector<2x1xf32>
    %793 = math.sqrt %792 : vector<2x1xf32>
    %794 = vector.broadcast %697 : vector<1x32xf32> to vector<2x32xf32>
    %795 = arith.mulf %794, %787 : vector<2x32xf32>
    %796 = vector.broadcast %793 : vector<2x1xf32> to vector<2x32xf32>
    %797 = arith.divf %795, %796 : vector<2x32xf32>
    %798 = arith.truncf %797 : vector<2x32xf32> to vector<2x32xbf16>
    %799 = vector.extract_strided_slice %684 {offsets = [0, 640], sizes = [32, 128], strides = [1, 1]} : vector<32x768xbf16> to vector<32x128xbf16>
    %cst_170 = arith.constant dense<0.000000e+00> : vector<2x128xf32>
    %800 = tpu.matmul %798, %799, %cst_170 {dimension_numbers = #tpu.dot_dimension_numbers<[1], [0], [0], [1], [0, 0, 1, 1], [], []>} : vector<2x32xbf16>, vector<32x128xbf16>, vector<2x128xf32> -> vector<2x128xf32>
    %801 = vector.broadcast %698 : vector<1x128xf32> to vector<2x128xf32>
    %802 = arith.addf %800, %801 : vector<2x128xf32>
    %cst_171 = arith.constant 5.000000e-01 : f32
    %803 = vector.broadcast %cst_171 : f32 to vector<2x128xf32>
    %804 = arith.mulf %803, %802 : vector<2x128xf32>
    %cst_172 = arith.constant 0.707106769 : f32
    %805 = vector.broadcast %cst_172 : f32 to vector<2x128xf32>
    %806 = arith.mulf %802, %805 : vector<2x128xf32>
    %807 = math.erf %806 : vector<2x128xf32>
    %cst_173 = arith.constant 1.000000e+00 : f32
    %808 = vector.broadcast %cst_173 : f32 to vector<2x128xf32>
    %809 = arith.addf %808, %807 : vector<2x128xf32>
    %810 = arith.mulf %804, %809 : vector<2x128xf32>
    %811 = arith.truncf %810 : vector<2x128xf32> to vector<2x128xbf16>
    %812 = vector.extract_strided_slice %686 {offsets = [64, 0], sizes = [128, 32], strides = [1, 1]} : vector<192x32xbf16> to vector<128x32xbf16>
    %cst_174 = arith.constant dense<0.000000e+00> : vector<2x32xf32>
    %813 = tpu.matmul %811, %812, %cst_174 {dimension_numbers = #tpu.dot_dimension_numbers<[1], [0], [0], [1], [0, 0, 1, 1], [], []>} : vector<2x128xbf16>, vector<128x32xbf16>, vector<2x32xf32> -> vector<2x32xf32>
    %814 = vector.broadcast %699 : vector<1x32xf32> to vector<2x32xf32>
    %815 = arith.addf %813, %814 : vector<2x32xf32>
    %816 = arith.addf %787, %815 : vector<2x32xf32>
    %c0_175 = arith.constant 0 : index
    %c0_176 = arith.constant 0 : index
    %817 = vector.load %arg4[%c0_175, %c0_176] : memref<2x32xf32, #tpu.memory_space<vmem>>, vector<2x32xf32>
    tpu.vector_store %arg4[%c0_175, %c0_176], %816 {strides = array<i32>} : memref<2x32xf32, #tpu.memory_space<vmem>>, vector<2x32xf32>,
    return
  }
}

</mosaic_0001>

<llo_original>
// kernel: forward.2
$region0: #{forward.2}
  #allocation0 [shape = 'u32[]', space=smem, size = 0x4, offset = 0x4, fixed_abs, tag = 'smem constant byte address 0x4 - core index']
  #allocation1 [shape = 'u32[144,128]{1,0:T(1,128)}', space=vmem, size = 0x12000, scoped, tag = 'internal scratch']
  %s0 = inlined_call_operand.hbm [shape: f32[2,8,32], index: 0, kind: input, shape index: {}]
  %s1 = inlined_call_operand.hbm [shape: f32[2,8], index: 1, kind: input, shape index: {}]
  %s2 = inlined_call_operand.vmem [shape: f32[2,32], index: 2, kind: output, shape index: {}]
  %s3 = sld [smem:[#allocation0]]
  $region26: #{forward.2} parent=0
    _
  %s5 = ssub.s32 1, %s3
  %s6 = scalar_select 0, %s5, %s3
  $region1: #{forward.2} parent=0
    #allocation2 [shape = 'u8[8192]{0}', space=vmem, size = 0x2000, scoped, tag = 'input window, operand 0, single buffered']
    #allocation3 [shape = 's32[1]{0}', space=sflag, size = 0x4, scoped, tag = 'scoped memory for forward.2']
    #allocation4 [shape = 'u8[1024]{0}', space=vmem, size = 0x400, scoped, tag = 'input window, operand 1, single buffered']
    #allocation5 [shape = 's32[1]{0}', space=sflag, size = 0x4, scoped, tag = 'scoped memory for forward.2']
    %7 = vsyncpa [#allocation3], 0
    %8 = vsyncpa [#allocation5], 0
    // Predicated region
    $region2: #{forward.2} parent=1 // pred_check
      _
    $region3: #{forward.2} parent=1 // pred_check_branch
      %10 = sbr.rel (0) target = $region5
    $region4: #{forward.2} parent=1 // pred_region
      %s12 = ssub.s32 256, 256
      %13 = vsyncadd [#allocation3], %s12
      %s14 = sshll.u32 [#allocation2], 4
      %s15 = int_to_ptr.vmem [resolvable:$true] %s14
      %20 = dma.hbm_to_vmem [thread:$0]  %s0, 256, %s15, [#allocation3], 128, 128, 8
    $region5: #{forward.2} parent=1 // pred_fallthru
      _
    // Predicated region
    $region6: #{forward.2} parent=1 // pred_check
      _
    $region7: #{forward.2} parent=1 // pred_check_branch
      %22 = sbr.rel (0) target = $region9
    $region8: #{forward.2} parent=1 // pred_region
      %s24 = ssub.s32 32, 32
      %25 = vsyncadd [#allocation5], %s24
      %s27 = sshll.u32 [#allocation4], 4
      %s28 = int_to_ptr.vmem [resolvable:$true] %s27
      %30 = dma.hbm_to_vmem [thread:$0]  %s1, 32, %s28, [#allocation5]
    $region9: #{forward.2} parent=1 // pred_fallthru
      _
    // Predicated region
    $region10: #{forward.2} parent=1 // pred_check
      _
    $region11: #{forward.2} parent=1 // pred_check_branch
      %32 = sbr.rel (0) target = $region13
    $region12: #{forward.2} parent=1 // pred_region
      %33 = dma.done [#allocation3], 256
    $region13: #{forward.2} parent=1 // pred_fallthru
      _
    // Predicated region
    $region14: #{forward.2} parent=1 // pred_check
      _
    $region15: #{forward.2} parent=1 // pred_check_branch
      %35 = sbr.rel (0) target = $region17
    $region16: #{forward.2} parent=1 // pred_region
      %36 = dma.done [#allocation5], 32
    $region17: #{forward.2} parent=1 // pred_fallthru
      _
    %v37 = vld [vmem:[#allocation2] sm:$0xff]
    %v38 = vld [vmem:[#allocation2 + $0x8] sm:$0xff]
    %v39 = vld [vmem:[#allocation4] sm:$0x3]
    %v40 = vlaneseq
    %v41 = vshrl.u32 %v40, 7
    %v42 = vsub.s32 0, %v41
    %v43 = vrot.slane %v39, %v42
    %45 = vbcast.lane.b32.xlu0 %v43, 256
    %v46 = vpop.permute.xlu0 %45
    %v47 = vlaneseq
    %v48 = vshrl.u32 %v47, 7
    %v49 = vsub.s32 1, %v48
    %v50 = vrot.slane %v39, %v49
    %52 = vbcast.lane.b32.xlu0 %v50, 256
    %v53 = vpop.permute.xlu0 %52
    %v54 = vmul.f32 %v46, %v37
    %v55 = vmul.f32 %v53, %v38
    %vm56 = vcmask 261120
    %v57 = vsel %vm56, %v54, 0.0
    %v58 = vrot.slane %v57, 4
    %v59 = vadd.f32 %v57, %v58
    %v60 = vrot.slane %v59, 2
    %v61 = vadd.f32 %v59, %v60
    %v62 = vrot.slane %v61, 1
    %v63 = vadd.f32 %v61, %v62
    %v64 = vsel %vm56, %v55, 0.0
    %v65 = vrot.slane %v64, 4
    %v66 = vadd.f32 %v64, %v65
    %v67 = vrot.slane %v66, 2
    %v68 = vadd.f32 %v66, %v67
    %v69 = vrot.slane %v68, 1
    %v70 = vadd.f32 %v68, %v69
    %vm71 = vcmask 58368
    %v72 = vsel %vm71, %v39, 0.0
    %73 = vadd.xlane.f32.xlu0 %v72
    %v74 = vpop.xlane.xlu0 %73
    %v75 = vadd.f32 %v74, 1e-08
    %v77 = vrot.slane %v75, 1
    %v80 = vrcp.pop %v75
    %v81 = vmul.f32 %v63, %v80
    %v82 = vrcp.pop %v77
    %v83 = vmul.f32 %v70, %v82
    %v86 = vrot.slane %v83, 7
    %vm87 = vcmask 1041409
    %v88 = vsel %vm87, %v86, %v81
    %vm90 = vcmask 254976
    %91 = vst.msk [vmem:[%s2] sm:$0x3] %vm90, %v88
    // Predicated region
    $region18: #{forward.2} parent=1 // pred_check
      _
    $region19: #{forward.2} parent=1 // pred_check_branch
      %93 = sbr.rel (0) target = $region21
    $region20: #{forward.2} parent=1 // pred_region
      _
    $region21: #{forward.2} parent=1 // pred_fallthru
      _
    // Predicated region
    $region22: #{forward.2} parent=1 // pred_check
      _
    $region23: #{forward.2} parent=1 // pred_check_branch
      %95 = sbr.rel (0) target = $region25
    $region24: #{forward.2} parent=1 // pred_region
      _
    $region25: #{forward.2} parent=1 // pred_fallthru
      _
    %96 = vsyncpa [#allocation3], 1
    %97 = vsyncpa [#allocation5], 1

// kernel: forward.3
$region0: #{forward.3}
  #allocation0 [shape = 'u32[]', space=smem, size = 0x4, offset = 0x4, fixed_abs, tag = 'smem constant byte address 0x4 - core index']
  #allocation1 [shape = 'u32[144,128]{1,0:T(1,128)}', space=vmem, size = 0x12000, scoped, tag = 'internal scratch']
  %s0 = inlined_call_operand.vmem [shape: f32[2,32], index: 0, kind: input, shape index: {}]
  %s1 = inlined_call_operand.vmem [shape: f32[6,16,128], index: 1, kind: input, shape index: {}]
  %s2 = inlined_call_operand.vmem [shape: bf16[6,32,768], index: 2, kind: input, shape index: {}]
  %s3 = inlined_call_operand.vmem [shape: bf16[6,192,32], index: 3, kind: input, shape index: {}]
  %s4 = inlined_call_operand.hbm [shape: f32[2,32], index: 4, kind: output, shape index: {}]
  %s5 = sld [smem:[#allocation0]]
  $region26: #{forward.3} parent=0
    _
  %s7 = ssub.s32 1, %s5
  %s8 = scalar_select 0, %s7, %s5
  $region1: #{forward.3} parent=0
    #allocation2 [shape = 'u8[1024]{0}', space=vmem, size = 0x400, scoped, tag = 'output window, operand 0, single buffered']
    #allocation3 [shape = 's32[1]{0}', space=sflag, size = 0x4, scoped, tag = 'scoped memory for forward.3']
    %9 = vsyncpa [#allocation3], 0
    // Predicated region
    $region2: #{forward.3} parent=1 // pred_check
      _
    $region3: #{forward.3} parent=1 // pred_check_branch
      %11 = sbr.rel (0) target = $region5
    $region4: #{forward.3} parent=1 // pred_region
      _
    $region5: #{forward.3} parent=1 // pred_fallthru
      _
    // Predicated region
    $region6: #{forward.3} parent=1 // pred_check
      _
    $region7: #{forward.3} parent=1 // pred_check_branch
      %13 = sbr.rel (0) target = $region9
    $region8: #{forward.3} parent=1 // pred_region
      _
    $region9: #{forward.3} parent=1 // pred_fallthru
      _
    // Predicated region
    $region10: #{forward.3} parent=1 // pred_check
      _
    $region11: #{forward.3} parent=1 // pred_check_branch
      %15 = sbr.rel (0) target = $region13
    $region12: #{forward.3} parent=1 // pred_region
      _
    $region13: #{forward.3} parent=1 // pred_fallthru
      _
    // Predicated region
    $region14: #{forward.3} parent=1 // pred_check
      _
    $region15: #{forward.3} parent=1 // pred_check_branch
      %17 = sbr.rel (0) target = $region17
    $region16: #{forward.3} parent=1 // pred_region
      _
    $region17: #{forward.3} parent=1 // pred_fallthru
      _
    %v19 = vld [vmem:[%s0] sm:$0x3]
    %v20 = vld [vmem:[%s1] sm:$0xff]
    %v21 = vld [vmem:[%s1 + $0x8] sm:$0xff]
    %v22 = vld [vmem:[%s2] sm:$0xff]
    %v23 = vld [vmem:[%s2 + $0x8] sm:$0xff]
    %v24 = vld [vmem:[%s2 + $0x10] sm:$0xff]
    %v25 = vld [vmem:[%s2 + $0x18] sm:$0xff]
    %v26 = vld [vmem:[%s2 + $0x20] sm:$0xff]
    %v27 = vld [vmem:[%s2 + $0x28] sm:$0xff]
    %v28 = vld [vmem:[%s2 + $0x30] sm:$0xff]
    %v29 = vld [vmem:[%s2 + $0x38] sm:$0xff]
    %v30 = vld [vmem:[%s2 + $0x40] sm:$0xff]
    %v31 = vld [vmem:[%s2 + $0x48] sm:$0xff]
    %v32 = vld [vmem:[%s2 + $0x50] sm:$0xff]
    %v33 = vld [vmem:[%s2 + $0x58] sm:$0xff]
    %v34 = vld [vmem:[%s3] sm:$0xf]
    %v35 = vld [vmem:[%s3 + $0x4] sm:$0xf]
    %v36 = vld [vmem:[%s3 + $0x8] sm:$0xf]
    %v37 = vld [vmem:[%s3 + $0xc] sm:$0xf]
    %v38 = vld [vmem:[%s3 + $0x10] sm:$0xf]
    %v39 = vld [vmem:[%s3 + $0x14] sm:$0xf]
    %v40 = vld [vmem:[%s3 + $0x18] sm:$0xf]
    %v41 = vld [vmem:[%s3 + $0x1c] sm:$0xf]
    %v42 = vld [vmem:[%s3 + $0x20] sm:$0xf]
    %v43 = vld [vmem:[%s3 + $0x24] sm:$0xf]
    %v44 = vld [vmem:[%s3 + $0x28] sm:$0xf]
    %v45 = vld [vmem:[%s3 + $0x2c] sm:$0xf]
    %v46 = vld [vmem:[%s3 + $0x30] sm:$0xf]
    %v47 = vld [vmem:[%s3 + $0x34] sm:$0xf]
    %v48 = vld [vmem:[%s3 + $0x38] sm:$0xf]
    %v49 = vld [vmem:[%s3 + $0x3c] sm:$0xf]
    %v50 = vld [vmem:[%s3 + $0x40] sm:$0xf]
    %v51 = vld [vmem:[%s3 + $0x44] sm:$0xf]
    %v52 = vld [vmem:[%s3 + $0x48] sm:$0xf]
    %v53 = vld [vmem:[%s3 + $0x4c] sm:$0xf]
    %v54 = vld [vmem:[%s3 + $0x50] sm:$0xf]
    %v55 = vld [vmem:[%s3 + $0x54] sm:$0xf]
    %v56 = vld [vmem:[%s3 + $0x58] sm:$0xf]
    %v57 = vld [vmem:[%s3 + $0x5c] sm:$0xf]
    %v58 = vmul.f32 %v19, %v19
    %vm59 = vcmask 254976
    %v60 = vsel %vm59, %v58, 0.0
    %61 = vadd.xlane.f32.xlu0 %v60
    %v62 = vpop.xlane.xlu0 %61
    %v63 = vadd.f32 %v62, 1e-06
    %v64 = vrsqrt.pop %v63
    %v65 = vmul.f32 %v63, %v64
    %vm66 = vcmp.eq.f32.partialorder %v63, inf
    %v67 = vsel %vm66, %v63, %v65
    %vm68 = vcmp.eq.f32.partialorder %v63, 0.0
    %v69 = vand.u32 %v63, 2147483648
    %v70 = vsel %vm68, %v69, %v67
    %v71 = vlaneseq
    %v72 = vshrl.u32 %v71, 7
    %v73 = vsub.s32 0, %v72
    %v74 = vrot.slane %v20, %v73
    %v75 = vmul.f32 %v74, %v19
    %v76 = vrcp.pop %v70
    %v77 = vmul.f32 %v75, %v76
    %v78 = vpack.c.bf16 %v77, %v77
    %v91 = vunpack.c.l.b16 %v22
    %v92 = vunpack.c.h.b16 %v22
    %v93 = vunpack.c.l.b16 %v23
    %v94 = vunpack.c.h.b16 %v23
    %v95 = vunpack.c.l.b16 %v24
    %v96 = vunpack.c.l.b16 %v25
    %v97 = vunpack.c.h.b16 %v25
    %v98 = vunpack.c.l.b16 %v26
    %v99 = vunpack.c.h.b16 %v26
    %v100 = vunpack.c.l.b16 %v27
    %v101 = vunpack.c.l.b16 %v28
    %v102 = vunpack.c.h.b16 %v28
    %v103 = vunpack.c.l.b16 %v29
    %v104 = vunpack.c.h.b16 %v29
    %v105 = vunpack.c.l.b16 %v30
    %v106 = vunpack.c.l.b16 %v31
    %v107 = vunpack.c.h.b16 %v31
    %v108 = vunpack.c.l.b16 %v32
    %v109 = vunpack.c.h.b16 %v32
    %v110 = vunpack.c.l.b16 %v33
    %v111 = vpack.c.b16 %v96, %v91
    %v112 = vpack.c.b16 %v97, %v92
    %v113 = vpack.c.b16 %v98, %v93
    %v114 = vpack.c.b16 %v99, %v94
    %v115 = vpack.c.b16 %v100, %v95
    %v116 = vpack.c.b16 %v106, %v101
    %v117 = vpack.c.b16 %v107, %v102
    %v118 = vpack.c.b16 %v108, %v103
    %v119 = vpack.c.b16 %v109, %v104
    %v120 = vpack.c.b16 %v110, %v105
    %vm131 = vcmask 261120
    %v133 = vsel %vm131, %v78, 0
    %135 = vmatprep.subr.bf16.mxu0 %v112
    %136 = vmatpush1.bf16.msra.mxu0 %v111
    %137 = vmatprep.subr.bf16.mxu0 %v117
    %138 = vmatpush1.bf16.msra.mxu0 %v116
    %139 = vmatprep.subr.bf16.mxu0 0
    %140 = vmatpush1.bf16.msra.mxu0 0
    %141 = vmatprep.subr.bf16.mxu0 0
    %142 = vmatpush1.bf16.msra.mxu0 0
    %143 = vmatprep.subr.bf16.mxu0 0
    %144 = vmatpush1.bf16.msra.mxu0 0
    %145 = vmatprep.subr.bf16.mxu0 0
    %146 = vmatpush1.bf16.msra.mxu0 0
    %147 = vmatprep.subr.bf16.mxu0 0
    %148 = vmatpush1.bf16.msra.mxu0 0
    %149 = vmatprep.subr.bf16.mxu0 0
    %150 = vmatpush1.bf16.msra.mxu0 0
    %151 = vmatprep.subr.bf16.mxu0 0
    %152 = vmatpush1.bf16.msra.mxu0 0
    %153 = vmatprep.subr.bf16.mxu0 0
    %154 = vmatpush1.bf16.msra.mxu0 0
    %155 = vmatprep.subr.bf16.mxu0 0
    %156 = vmatpush1.bf16.msra.mxu0 0
    %157 = vmatprep.subr.bf16.mxu0 0
    %158 = vmatpush1.bf16.msra.mxu0 0
    %159 = vmatprep.subr.bf16.mxu0 0
    %160 = vmatpush1.bf16.msra.mxu0 0
    %161 = vmatprep.subr.bf16.mxu0 0
    %162 = vmatpush1.bf16.msra.mxu0 0
    %163 = vmatprep.subr.bf16.mxu0 0
    %164 = vmatpush1.bf16.msra.mxu0 0
    %165 = vmatprep.subr.bf16.mxu0 0
    %166 = vmatpush1.bf16.msra.mxu0 0
    %167 = vmatprep.mubr.bf16.mxu0 0
    %168 = vmatmul.mubr.bf16.gmra.mrb[0].mxu0 %v133
    %v169 = vpop.f32.mrb[0].mxu0
    %v170 = vadd.f32 0.0, %v169
    %v171 = vpop.f32.mrb[0].mxu0
    %v172 = vadd.f32 0.0, %v171
    %v173 = vpop.f32.mrb[0].mxu0
    %v174 = vpop.f32.mrb[0].mxu0
    %175 = vdwg.mxu0
    %176 = vmatprep.subr.bf16.mxu0 %v114
    %177 = vmatpush1.bf16.msra.mxu0 %v113
    %178 = vmatprep.subr.bf16.mxu0 %v119
    %179 = vmatpush1.bf16.msra.mxu0 %v118
    %180 = vmatprep.subr.bf16.mxu0 0
    %181 = vmatpush1.bf16.msra.mxu0 0
    %182 = vmatprep.subr.bf16.mxu0 0
    %183 = vmatpush1.bf16.msra.mxu0 0
    %184 = vmatprep.subr.bf16.mxu0 0
    %185 = vmatpush1.bf16.msra.mxu0 0
    %186 = vmatprep.subr.bf16.mxu0 0
    %187 = vmatpush1.bf16.msra.mxu0 0
    %188 = vmatprep.subr.bf16.mxu0 0
    %189 = vmatpush1.bf16.msra.mxu0 0
    %190 = vmatprep.subr.bf16.mxu0 0
    %191 = vmatpush1.bf16.msra.mxu0 0
    %192 = vmatprep.subr.bf16.mxu0 0
    %193 = vmatpush1.bf16.msra.mxu0 0
    %194 = vmatprep.subr.bf16.mxu0 0
    %195 = vmatpush1.bf16.msra.mxu0 0
    %196 = vmatprep.subr.bf16.mxu0 0
    %197 = vmatpush1.bf16.msra.mxu0 0
    %198 = vmatprep.subr.bf16.mxu0 0
    %199 = vmatpush1.bf16.msra.mxu0 0
    %200 = vmatprep.subr.bf16.mxu0 0
    %201 = vmatpush1.bf16.msra.mxu0 0
    %202 = vmatprep.subr.bf16.mxu0 0
    %203 = vmatpush1.bf16.msra.mxu0 0
    %204 = vmatprep.subr.bf16.mxu0 0
    %205 = vmatpush1.bf16.msra.mxu0 0
    %206 = vmatprep.subr.bf16.mxu0 0
    %207 = vmatpush1.bf16.msra.mxu0 0
    %208 = vmatprep.mubr.bf16.mxu0 0
    %209 = vmatmul.mubr.bf16.gmra.mrb[0].mxu0 %v133
    %v210 = vpop.f32.mrb[0].mxu0
    %v211 = vadd.f32 0.0, %v210
    %v212 = vpop.f32.mrb[0].mxu0
    %v213 = vadd.f32 0.0, %v212
    %v214 = vpop.f32.mrb[0].mxu0
    %v215 = vpop.f32.mrb[0].mxu0
    %216 = vdwg.mxu0
    %217 = vmatprep.subr.bf16.mxu0 0
    %218 = vmatpush1.bf16.msra.mxu0 %v115
    %219 = vmatprep.subr.bf16.mxu0 0
    %220 = vmatpush1.bf16.msra.mxu0 %v120
    %221 = vmatprep.subr.bf16.mxu0 0
    %222 = vmatpush1.bf16.msra.mxu0 0
    %223 = vmatprep.subr.bf16.mxu0 0
    %224 = vmatpush1.bf16.msra.mxu0 0
    %225 = vmatprep.subr.bf16.mxu0 0
    %226 = vmatpush1.bf16.msra.mxu0 0
    %227 = vmatprep.subr.bf16.mxu0 0
    %228 = vmatpush1.bf16.msra.mxu0 0
    %229 = vmatprep.subr.bf16.mxu0 0
    %230 = vmatpush1.bf16.msra.mxu0 0
    %231 = vmatprep.subr.bf16.mxu0 0
    %232 = vmatpush1.bf16.msra.mxu0 0
    %233 = vmatprep.subr.bf16.mxu0 0
    %234 = vmatpush1.bf16.msra.mxu0 0
    %235 = vmatprep.subr.bf16.mxu0 0
    %236 = vmatpush1.bf16.msra.mxu0 0
    %237 = vmatprep.subr.bf16.mxu0 0
    %238 = vmatpush1.bf16.msra.mxu0 0
    %239 = vmatprep.subr.bf16.mxu0 0
    %240 = vmatpush1.bf16.msra.mxu0 0
    %241 = vmatprep.subr.bf16.mxu0 0
    %242 = vmatpush1.bf16.msra.mxu0 0
    %243 = vmatprep.subr.bf16.mxu0 0
    %244 = vmatpush1.bf16.msra.mxu0 0
    %245 = vmatprep.subr.bf16.mxu0 0
    %246 = vmatpush1.bf16.msra.mxu0 0
    %247 = vmatprep.subr.bf16.mxu0 0
    %248 = vmatpush1.bf16.msra.mxu0 0
    %249 = vmatprep.mubr.bf16.mxu0 0
    %250 = vmatmul.mubr.bf16.gmra.mrb[0].mxu0 %v133
    %v251 = vpop.f32.mrb[0].mxu0
    %v252 = vadd.f32 0.0, %v251
    %v253 = vpop.f32.mrb[0].mxu0
    %v254 = vpop.f32.mrb[0].mxu0
    %v255 = vpop.f32.mrb[0].mxu0
    %256 = vdwg.mxu0
    %v257 = vlaneseq
    %v258 = vshrl.u32 %v257, 7
    %v259 = vsub.s32 1, %v258
    %v260 = vrot.slane %v20, %v259
    %v261 = vmul.f32 %v172, %v260
    %v262 = vlaneseq
    %v263 = vshrl.u32 %v262, 7
    %v264 = vsub.s32 2, %v263
    %v265 = vrot.slane %v20, %v264
    %v266 = vadd.f32 %v261, %v265
    %v267 = vxor.u32 %v266, 2147483648
    %v268 = vmul.f32 %v267, 1.442695
    %v269 = vpow.pop %v268
    %v270 = vadd.f32 %v269, 1.0
    %v271 = vrcp.pop %v270
    %v272 = vmul.f32 1.0, %v271
    %v273 = vmul.f32 %v266, %v272
    %v274 = vlaneseq
    %v275 = vshrl.u32 %v274, 7
    %v276 = vsub.s32 3, %v275
    %v277 = vrot.slane %v20, %v276
    %v278 = vmul.f32 %v211, %v277
    %v279 = vlaneseq
    %v280 = vshrl.u32 %v279, 7
    %v281 = vsub.s32 4, %v280
    %v282 = vrot.slane %v20, %v281
    %v283 = vadd.f32 %v278, %v282
    %v284 = vxor.u32 %v283, 2147483648
    %v285 = vmul.f32 %v284, 1.442695
    %v286 = vpow.pop %v285
    %v287 = vadd.f32 %v286, 1.0
    %v288 = vrcp.pop %v287
    %v289 = vmul.f32 1.0, %v288
    %v290 = vmul.f32 %v283, %v289
    %v291 = vlaneseq
    %v292 = vshrl.u32 %v291, 7
    %v293 = vsub.s32 5, %v292
    %v294 = vrot.slane %v20, %v293
    %v295 = vmul.f32 %v213, %v294
    %v296 = vlaneseq
    %v297 = vshrl.u32 %v296, 7
    %v298 = vsub.s32 6, %v297
    %v299 = vrot.slane %v20, %v298
    %v300 = vadd.f32 %v295, %v299
    %v301 = vxor.u32 %v300, 2147483648
    %v302 = vmul.f32 %v301, 1.442695
    %v303 = vpow.pop %v302
    %v304 = vadd.f32 %v303, 1.0
    %v305 = vrcp.pop %v304
    %v306 = vmul.f32 1.0, %v305
    %v307 = vmul.f32 %v300, %v306
    %v308 = vlaneseq
    %v309 = vshrl.u32 %v308, 7
    %v310 = vsub.s32 7, %v309
    %v311 = vrot.slane %v20, %v310
    %v312 = vadd.f32 %v252, %v311
    %vm313 = vcmp.gt.f32.partialorder %v312, 20.0
    %v314 = vmin.f32 %v312, 20.0
    %v315 = vmul.f32 %v314, 1.442695
    %v316 = vpow.pop %v315
    %v317 = vadd.f32 %v316, 1.0
    %v318 = vlog2.pop %v317
    %v319 = vmul.f32 %v318, 0.6931472
    %v320 = vmul.f32 -0.5, %v316
    %v321 = vadd.f32 %v320, 1.0
    %v322 = vmul.f32 %v321, %v316
    %v323 = vand.u32 2147483647, %v316
    %vm324 = vcmp.lt.f32.partialorder %v323, 0.0004427343
    %v325 = vsel %vm324, %v322, %v319
    %v326 = vsel %vm313, %v312, %v325
    %v327 = vmul.f32 %v290, %v307
    %vm328 = vcmask 123904
    %v329 = vsel %vm328, %v327, 0.0
    %330 = vadd.xlane.f32.xlu0 %v329
    %v331 = vpop.xlane.xlu0 %330
    %v332 = vmul.f32 %v326, %v331
    %v333 = vlaneseq
    %v334 = vshrl.u32 %v333, 7
    %v335 = vsub.s32 0, %v334
    %v336 = vrot.slane %v21, %v335
    %v337 = vadd.f32 %v332, %v336
    %v338 = vmul.f32 %v273, %v337
    %v339 = vxor.u32 %v170, 2147483648
    %v340 = vmul.f32 %v339, 1.442695
    %v341 = vpow.pop %v340
    %v342 = vadd.f32 %v341, 1.0
    %v343 = vrcp.pop %v342
    %v344 = vmul.f32 1.0, %v343
    %v345 = vmul.f32 %v170, %v344
    %v346 = vmul.f32 %v338, %v345
    %v347 = vmul.f32 %v346, %v346
    %vm348 = vcmask 517120
    %v349 = vsel %vm348, %v347, 0.0
    %350 = vadd.xlane.f32.xlu0 %v349
    %v351 = vpop.xlane.xlu0 %350
    %v352 = vrcp.pop 64.0
    %v353 = vmul.f32 %v351, %v352
    %v354 = vadd.f32 %v353, 1e-05
    %v355 = vrsqrt.pop %v354
    %v356 = vmul.f32 %v346, %v355
    %v357 = vlaneseq
    %v358 = vshrl.u32 %v357, 7
    %v359 = vsub.s32 1, %v358
    %v360 = vrot.slane %v21, %v359
    %v361 = vmul.f32 %v356, %v360
    %v362 = vpack.c.bf16 %v361, %v361
    %v371 = vunpack.c.l.b16 %v34
    %v372 = vunpack.c.l.b16 %v35
    %v373 = vunpack.c.l.b16 %v36
    %v374 = vunpack.c.l.b16 %v37
    %v375 = vunpack.c.l.b16 %v38
    %v376 = vunpack.c.l.b16 %v39
    %v377 = vunpack.c.l.b16 %v40
    %v378 = vunpack.c.l.b16 %v41
    %v379 = vpack.c.b16 %v372, %v371
    %v380 = vpack.c.b16 %v374, %v373
    %v381 = vpack.c.b16 %v376, %v375
    %v382 = vpack.c.b16 %v378, %v377
    %vm387 = vcmask 523264
    %v389 = vsel %vm387, %v362, 0
    %391 = vmatprep.subr.bf16.mxu0 0
    %392 = vmatpush1.bf16.msra.mxu0 %v379
    %393 = vmatprep.subr.bf16.mxu0 0
    %394 = vmatpush1.bf16.msra.mxu0 %v380
    %395 = vmatprep.subr.bf16.mxu0 0
    %396 = vmatpush1.bf16.msra.mxu0 %v381
    %397 = vmatprep.subr.bf16.mxu0 0
    %398 = vmatpush1.bf16.msra.mxu0 %v382
    %399 = vmatprep.subr.bf16.mxu0 0
    %400 = vmatpush1.bf16.msra.mxu0 0
    %401 = vmatprep.subr.bf16.mxu0 0
    %402 = vmatpush1.bf16.msra.mxu0 0
    %403 = vmatprep.subr.bf16.mxu0 0
    %404 = vmatpush1.bf16.msra.mxu0 0
    %405 = vmatprep.subr.bf16.mxu0 0
    %406 = vmatpush1.bf16.msra.mxu0 0
    %407 = vmatprep.subr.bf16.mxu0 0
    %408 = vmatpush1.bf16.msra.mxu0 0
    %409 = vmatprep.subr.bf16.mxu0 0
    %410 = vmatpush1.bf16.msra.mxu0 0
    %411 = vmatprep.subr.bf16.mxu0 0
    %412 = vmatpush1.bf16.msra.mxu0 0
    %413 = vmatprep.subr.bf16.mxu0 0
    %414 = vmatpush1.bf16.msra.mxu0 0
    %415 = vmatprep.subr.bf16.mxu0 0
    %416 = vmatpush1.bf16.msra.mxu0 0
    %417 = vmatprep.subr.bf16.mxu0 0
    %418 = vmatpush1.bf16.msra.mxu0 0
    %419 = vmatprep.subr.bf16.mxu0 0
    %420 = vmatpush1.bf16.msra.mxu0 0
    %421 = vmatprep.subr.bf16.mxu0 0
    %422 = vmatpush1.bf16.msra.mxu0 0
    %423 = vmatprep.mubr.bf16.mxu0 0
    %424 = vmatmul.mubr.bf16.gmra.mrb[0].mxu0 %v389
    %v425 = vpop.f32.mrb[0].mxu0
    %v426 = vadd.f32 0.0, %v425
    %v427 = vpop.f32.mrb[0].mxu0
    %v428 = vpop.f32.mrb[0].mxu0
    %v429 = vpop.f32.mrb[0].mxu0
    %430 = vdwg.mxu0
    %v431 = vadd.f32 %v19, %v426
    %v432 = vmul.f32 %v431, %v431
    %v433 = vsel %vm59, %v432, 0.0
    %434 = vadd.xlane.f32.xlu0 %v433
    %v435 = vpop.xlane.xlu0 %434
    %v436 = vadd.f32 %v435, 1e-06
    %v437 = vrsqrt.pop %v436
    %v438 = vmul.f32 %v436, %v437
    %vm439 = vcmp.eq.f32.partialorder %v436, inf
    %v440 = vsel %vm439, %v436, %v438
    %vm441 = vcmp.eq.f32.partialorder %v436, 0.0
    %v442 = vand.u32 %v436, 2147483648
    %v443 = vsel %vm441, %v442, %v440
    %v444 = vlaneseq
    %v445 = vshrl.u32 %v444, 7
    %v446 = vsub.s32 2, %v445
    %v447 = vrot.slane %v21, %v446
    %v448 = vmul.f32 %v447, %v431
    %v449 = vrcp.pop %v443
    %v450 = vmul.f32 %v448, %v449
    %v451 = vpack.c.bf16 %v450, %v450
    %v452 = vlaneseq
    %v453 = vshrl.u32 %v452, 7
    %v454 = vsub.s32 3, %v453
    %v455 = vrot.slane %v21, %v454
    %v456 = vunpack.c.h.b16 %v24
    %v457 = vunpack.c.h.b16 %v27
    %v458 = vunpack.c.h.b16 %v30
    %v459 = vunpack.c.h.b16 %v33
    %v460 = vpack.c.b16 %v457, %v456
    %v461 = vpack.c.b16 %v459, %v458
    %v465 = vsel %vm131, %v451, 0
    %467 = vmatprep.subr.bf16.mxu0 0
    %468 = vmatpush1.bf16.msra.mxu0 %v460
    %469 = vmatprep.subr.bf16.mxu0 0
    %470 = vmatpush1.bf16.msra.mxu0 %v461
    %471 = vmatprep.subr.bf16.mxu0 0
    %472 = vmatpush1.bf16.msra.mxu0 0
    %473 = vmatprep.subr.bf16.mxu0 0
    %474 = vmatpush1.bf16.msra.mxu0 0
    %475 = vmatprep.subr.bf16.mxu0 0
    %476 = vmatpush1.bf16.msra.mxu0 0
    %477 = vmatprep.subr.bf16.mxu0 0
    %478 = vmatpush1.bf16.msra.mxu0 0
    %479 = vmatprep.subr.bf16.mxu0 0
    %480 = vmatpush1.bf16.msra.mxu0 0
    %481 = vmatprep.subr.bf16.mxu0 0
    %482 = vmatpush1.bf16.msra.mxu0 0
    %483 = vmatprep.subr.bf16.mxu0 0
    %484 = vmatpush1.bf16.msra.mxu0 0
    %485 = vmatprep.subr.bf16.mxu0 0
    %486 = vmatpush1.bf16.msra.mxu0 0
    %487 = vmatprep.subr.bf16.mxu0 0
    %488 = vmatpush1.bf16.msra.mxu0 0
    %489 = vmatprep.subr.bf16.mxu0 0
    %490 = vmatpush1.bf16.msra.mxu0 0
    %491 = vmatprep.subr.bf16.mxu0 0
    %492 = vmatpush1.bf16.msra.mxu0 0
    %493 = vmatprep.subr.bf16.mxu0 0
    %494 = vmatpush1.bf16.msra.mxu0 0
    %495 = vmatprep.subr.bf16.mxu0 0
    %496 = vmatpush1.bf16.msra.mxu0 0
    %497 = vmatprep.subr.bf16.mxu0 0
    %498 = vmatpush1.bf16.msra.mxu0 0
    %499 = vmatprep.mubr.bf16.mxu0 0
    %500 = vmatmul.mubr.bf16.gmra.mrb[0].mxu0 %v465
    %v501 = vpop.f32.mrb[0].mxu0
    %v502 = vadd.f32 %v455, %v501
    %v503 = vpop.f32.mrb[0].mxu0
    %v504 = vpop.f32.mrb[0].mxu0
    %v505 = vpop.f32.mrb[0].mxu0
    %506 = vdwg.mxu0
    %v507 = vmul.f32 %v502, 0.5
    %v508 = vmul.f32 %v502, 0.70710677
    %v509 = verf.f32.pop %v508
    %v510 = vadd.f32 %v509, 1.0
    %v511 = vmul.f32 %v507, %v510
    %v512 = vpack.c.bf16 %v511, %v511
    %v513 = vlaneseq
    %v514 = vshrl.u32 %v513, 7
    %v515 = vsub.s32 4, %v514
    %v516 = vrot.slane %v21, %v515
    %v533 = vunpack.c.l.b16 %v42
    %v534 = vunpack.c.l.b16 %v43
    %v535 = vunpack.c.l.b16 %v44
    %v536 = vunpack.c.l.b16 %v45
    %v537 = vunpack.c.l.b16 %v46
    %v538 = vunpack.c.l.b16 %v47
    %v539 = vunpack.c.l.b16 %v48
    %v540 = vunpack.c.l.b16 %v49
    %v541 = vunpack.c.l.b16 %v50
    %v542 = vunpack.c.l.b16 %v51
    %v543 = vunpack.c.l.b16 %v52
    %v544 = vunpack.c.l.b16 %v53
    %v545 = vunpack.c.l.b16 %v54
    %v546 = vunpack.c.l.b16 %v55
    %v547 = vunpack.c.l.b16 %v56
    %v548 = vunpack.c.l.b16 %v57
    %v549 = vpack.c.b16 %v534, %v533
    %v550 = vpack.c.b16 %v536, %v535
    %v551 = vpack.c.b16 %v538, %v537
    %v552 = vpack.c.b16 %v540, %v539
    %v553 = vpack.c.b16 %v542, %v541
    %v554 = vpack.c.b16 %v544, %v543
    %v555 = vpack.c.b16 %v546, %v545
    %v556 = vpack.c.b16 %v548, %v547
    %565 = vmatprep.subr.bf16.mxu0 0
    %566 = vmatpush1.bf16.msra.mxu0 %v549
    %567 = vmatprep.subr.bf16.mxu0 0
    %568 = vmatpush1.bf16.msra.mxu0 %v550
    %569 = vmatprep.subr.bf16.mxu0 0
    %570 = vmatpush1.bf16.msra.mxu0 %v551
    %571 = vmatprep.subr.bf16.mxu0 0
    %572 = vmatpush1.bf16.msra.mxu0 %v552
    %573 = vmatprep.subr.bf16.mxu0 0
    %574 = vmatpush1.bf16.msra.mxu0 %v553
    %575 = vmatprep.subr.bf16.mxu0 0
    %576 = vmatpush1.bf16.msra.mxu0 %v554
    %577 = vmatprep.subr.bf16.mxu0 0
    %578 = vmatpush1.bf16.msra.mxu0 %v555
    %579 = vmatprep.subr.bf16.mxu0 0
    %580 = vmatpush1.bf16.msra.mxu0 %v556
    %581 = vmatprep.subr.bf16.mxu0 0
    %582 = vmatpush1.bf16.msra.mxu0 0
    %583 = vmatprep.subr.bf16.mxu0 0
    %584 = vmatpush1.bf16.msra.mxu0 0
    %585 = vmatprep.subr.bf16.mxu0 0
    %586 = vmatpush1.bf16.msra.mxu0 0
    %587 = vmatprep.subr.bf16.mxu0 0
    %588 = vmatpush1.bf16.msra.mxu0 0
    %589 = vmatprep.subr.bf16.mxu0 0
    %590 = vmatpush1.bf16.msra.mxu0 0
    %591 = vmatprep.subr.bf16.mxu0 0
    %592 = vmatpush1.bf16.msra.mxu0 0
    %593 = vmatprep.subr.bf16.mxu0 0
    %594 = vmatpush1.bf16.msra.mxu0 0
    %595 = vmatprep.subr.bf16.mxu0 0
    %596 = vmatpush1.bf16.msra.mxu0 0
    %597 = vmatprep.mubr.bf16.mxu0 0
    %598 = vmatmul.mubr.bf16.gmra.mrb[0].mxu0 %v512
    %v599 = vpop.f32.mrb[0].mxu0
    %v600 = vadd.f32 %v516, %v599
    %v601 = vpop.f32.mrb[0].mxu0
    %v602 = vpop.f32.mrb[0].mxu0
    %v603 = vpop.f32.mrb[0].mxu0
    %604 = vdwg.mxu0
    %v605 = vadd.f32 %v431, %v600
    %s606 = scalar_lea.vmem %s1, 16
    %v607 = vld [vmem:[%s606] sm:$0xff]
    %v608 = vld [vmem:[%s606 + $0x8] sm:$0xff]
    %s609 = scalar_lea.vmem %s2, 96
    %v610 = vld [vmem:[%s609] sm:$0xff]
    %v611 = vld [vmem:[%s609 + $0x8] sm:$0xff]
    %v612 = vld [vmem:[%s609 + $0x10] sm:$0xff]
    %v613 = vld [vmem:[%s609 + $0x18] sm:$0xff]
    %v614 = vld [vmem:[%s609 + $0x20] sm:$0xff]
    %v615 = vld [vmem:[%s609 + $0x28] sm:$0xff]
    %v616 = vld [vmem:[%s609 + $0x30] sm:$0xff]
    %v617 = vld [vmem:[%s609 + $0x38] sm:$0xff]
    %v618 = vld [vmem:[%s609 + $0x40] sm:$0xff]
    %v619 = vld [vmem:[%s609 + $0x48] sm:$0xff]
    %v620 = vld [vmem:[%s609 + $0x50] sm:$0xff]
    %v621 = vld [vmem:[%s609 + $0x58] sm:$0xff]
    %s622 = scalar_lea.vmem %s3, 96
    %v623 = vld [vmem:[%s622] sm:$0xf]
    %v624 = vld [vmem:[%s622 + $0x4] sm:$0xf]
    %v625 = vld [vmem:[%s622 + $0x8] sm:$0xf]
    %v626 = vld [vmem:[%s622 + $0xc] sm:$0xf]
    %v627 = vld [vmem:[%s622 + $0x10] sm:$0xf]
    %v628 = vld [vmem:[%s622 + $0x14] sm:$0xf]
    %v629 = vld [vmem:[%s622 + $0x18] sm:$0xf]
    %v630 = vld [vmem:[%s622 + $0x1c] sm:$0xf]
    %v631 = vld [vmem:[%s622 + $0x20] sm:$0xf]
    %v632 = vld [vmem:[%s622 + $0x24] sm:$0xf]
    %v633 = vld [vmem:[%s622 + $0x28] sm:$0xf]
    %v634 = vld [vmem:[%s622 + $0x2c] sm:$0xf]
    %v635 = vld [vmem:[%s622 + $0x30] sm:$0xf]
    %v636 = vld [vmem:[%s622 + $0x34] sm:$0xf]
    %v637 = vld [vmem:[%s622 + $0x38] sm:$0xf]
    %v638 = vld [vmem:[%s622 + $0x3c] sm:$0xf]
    %v639 = vld [vmem:[%s622 + $0x40] sm:$0xf]
    %v640 = vld [vmem:[%s622 + $0x44] sm:$0xf]
    %v641 = vld [vmem:[%s622 + $0x48] sm:$0xf]
    %v642 = vld [vmem:[%s622 + $0x4c] sm:$0xf]
    %v643 = vld [vmem:[%s622 + $0x50] sm:$0xf]
    %v644 = vld [vmem:[%s622 + $0x54] sm:$0xf]
    %v645 = vld [vmem:[%s622 + $0x58] sm:$0xf]
    %v646 = vld [vmem:[%s622 + $0x5c] sm:$0xf]
    %v647 = vmul.f32 %v605, %v605
    %v648 = vsel %vm59, %v647, 0.0
    %649 = vadd.xlane.f32.xlu0 %v648
    %v650 = vpop.xlane.xlu0 %649
    %v651 = vadd.f32 %v650, 1e-06
    %v652 = vrsqrt.pop %v651
    %v653 = vmul.f32 %v651, %v652
    %vm654 = vcmp.eq.f32.partialorder %v651, inf
    %v655 = vsel %vm654, %v651, %v653
    %vm656 = vcmp.eq.f32.partialorder %v651, 0.0
    %v657 = vand.u32 %v651, 2147483648
    %v658 = vsel %vm656, %v657, %v655
    %v659 = vlaneseq
    %v660 = vshrl.u32 %v659, 7
    %v661 = vsub.s32 0, %v660
    %v662 = vrot.slane %v607, %v661
    %v663 = vmul.f32 %v662, %v605
    %v664 = vrcp.pop %v658
    %v665 = vmul.f32 %v663, %v664
    %v666 = vpack.c.bf16 %v665, %v665
    %v679 = vunpack.c.l.b16 %v610
    %v680 = vunpack.c.h.b16 %v610
    %v681 = vunpack.c.l.b16 %v611
    %v682 = vunpack.c.h.b16 %v611
    %v683 = vunpack.c.l.b16 %v612
    %v684 = vunpack.c.l.b16 %v613
    %v685 = vunpack.c.h.b16 %v613
    %v686 = vunpack.c.l.b16 %v614
    %v687 = vunpack.c.h.b16 %v614
    %v688 = vunpack.c.l.b16 %v615
    %v689 = vunpack.c.l.b16 %v616
    %v690 = vunpack.c.h.b16 %v616
    %v691 = vunpack.c.l.b16 %v617
    %v692 = vunpack.c.h.b16 %v617
    %v693 = vunpack.c.l.b16 %v618
    %v694 = vunpack.c.l.b16 %v619
    %v695 = vunpack.c.h.b16 %v619
    %v696 = vunpack.c.l.b16 %v620
    %v697 = vunpack.c.h.b16 %v620
    %v698 = vunpack.c.l.b16 %v621
    %v699 = vpack.c.b16 %v684, %v679
    %v700 = vpack.c.b16 %v685, %v680
    %v701 = vpack.c.b16 %v686, %v681
    %v702 = vpack.c.b16 %v687, %v682
    %v703 = vpack.c.b16 %v688, %v683
    %v704 = vpack.c.b16 %v694, %v689
    %v705 = vpack.c.b16 %v695, %v690
    %v706 = vpack.c.b16 %v696, %v691
    %v707 = vpack.c.b16 %v697, %v692
    %v708 = vpack.c.b16 %v698, %v693
    %v720 = vsel %vm131, %v666, 0
    %722 = vmatprep.subr.bf16.mxu0 %v700
    %723 = vmatpush1.bf16.msra.mxu0 %v699
    %724 = vmatprep.subr.bf16.mxu0 %v705
    %725 = vmatpush1.bf16.msra.mxu0 %v704
    %726 = vmatprep.subr.bf16.mxu0 0
    %727 = vmatpush1.bf16.msra.mxu0 0
    %728 = vmatprep.subr.bf16.mxu0 0
    %729 = vmatpush1.bf16.msra.mxu0 0
    %730 = vmatprep.subr.bf16.mxu0 0
    %731 = vmatpush1.bf16.msra.mxu0 0
    %732 = vmatprep.subr.bf16.mxu0 0
    %733 = vmatpush1.bf16.msra.mxu0 0
    %734 = vmatprep.subr.bf16.mxu0 0
    %735 = vmatpush1.bf16.msra.mxu0 0
    %736 = vmatprep.subr.bf16.mxu0 0
    %737 = vmatpush1.bf16.msra.mxu0 0
    %738 = vmatprep.subr.bf16.mxu0 0
    %739 = vmatpush1.bf16.msra.mxu0 0
    %740 = vmatprep.subr.bf16.mxu0 0
    %741 = vmatpush1.bf16.msra.mxu0 0
    %742 = vmatprep.subr.bf16.mxu0 0
    %743 = vmatpush1.bf16.msra.mxu0 0
    %744 = vmatprep.subr.bf16.mxu0 0
    %745 = vmatpush1.bf16.msra.mxu0 0
    %746 = vmatprep.subr.bf16.mxu0 0
    %747 = vmatpush1.bf16.msra.mxu0 0
    %748 = vmatprep.subr.bf16.mxu0 0
    %749 = vmatpush1.bf16.msra.mxu0 0
    %750 = vmatprep.subr.bf16.mxu0 0
    %751 = vmatpush1.bf16.msra.mxu0 0
    %752 = vmatprep.subr.bf16.mxu0 0
    %753 = vmatpush1.bf16.msra.mxu0 0
    %754 = vmatprep.mubr.bf16.mxu0 0
    %755 = vmatmul.mubr.bf16.gmra.mrb[0].mxu0 %v720
    %v756 = vpop.f32.mrb[0].mxu0
    %v757 = vadd.f32 0.0, %v756
    %v758 = vpop.f32.mrb[0].mxu0
    %v759 = vadd.f32 0.0, %v758
    %v760 = vpop.f32.mrb[0].mxu0
    %v761 = vpop.f32.mrb[0].mxu0
    %762 = vdwg.mxu0
    %763 = vmatprep.subr.bf16.mxu0 %v702
    %764 = vmatpush1.bf16.msra.mxu0 %v701
    %765 = vmatprep.subr.bf16.mxu0 %v707
    %766 = vmatpush1.bf16.msra.mxu0 %v706
    %767 = vmatprep.subr.bf16.mxu0 0
    %768 = vmatpush1.bf16.msra.mxu0 0
    %769 = vmatprep.subr.bf16.mxu0 0
    %770 = vmatpush1.bf16.msra.mxu0 0
    %771 = vmatprep.subr.bf16.mxu0 0
    %772 = vmatpush1.bf16.msra.mxu0 0
    %773 = vmatprep.subr.bf16.mxu0 0
    %774 = vmatpush1.bf16.msra.mxu0 0
    %775 = vmatprep.subr.bf16.mxu0 0
    %776 = vmatpush1.bf16.msra.mxu0 0
    %777 = vmatprep.subr.bf16.mxu0 0
    %778 = vmatpush1.bf16.msra.mxu0 0
    %779 = vmatprep.subr.bf16.mxu0 0
    %780 = vmatpush1.bf16.msra.mxu0 0
    %781 = vmatprep.subr.bf16.mxu0 0
    %782 = vmatpush1.bf16.msra.mxu0 0
    %783 = vmatprep.subr.bf16.mxu0 0
    %784 = vmatpush1.bf16.msra.mxu0 0
    %785 = vmatprep.subr.bf16.mxu0 0
    %786 = vmatpush1.bf16.msra.mxu0 0
    %787 = vmatprep.subr.bf16.mxu0 0
    %788 = vmatpush1.bf16.msra.mxu0 0
    %789 = vmatprep.subr.bf16.mxu0 0
    %790 = vmatpush1.bf16.msra.mxu0 0
    %791 = vmatprep.subr.bf16.mxu0 0
    %792 = vmatpush1.bf16.msra.mxu0 0
    %793 = vmatprep.subr.bf16.mxu0 0
    %794 = vmatpush1.bf16.msra.mxu0 0
    %795 = vmatprep.mubr.bf16.mxu0 0
    %796 = vmatmul.mubr.bf16.gmra.mrb[0].mxu0 %v720
    %v797 = vpop.f32.mrb[0].mxu0
    %v798 = vadd.f32 0.0, %v797
    %v799 = vpop.f32.mrb[0].mxu0
    %v800 = vadd.f32 0.0, %v799
    %v801 = vpop.f32.mrb[0].mxu0
    %v802 = vpop.f32.mrb[0].mxu0
    %803 = vdwg.mxu0
    %804 = vmatprep.subr.bf16.mxu0 0
    %805 = vmatpush1.bf16.msra.mxu0 %v703
    %806 = vmatprep.subr.bf16.mxu0 0
    %807 = vmatpush1.bf16.msra.mxu0 %v708
    %808 = vmatprep.subr.bf16.mxu0 0
    %809 = vmatpush1.bf16.msra.mxu0 0
    %810 = vmatprep.subr.bf16.mxu0 0
    %811 = vmatpush1.bf16.msra.mxu0 0
    %812 = vmatprep.subr.bf16.mxu0 0
    %813 = vmatpush1.bf16.msra.mxu0 0
    %814 = vmatprep.subr.bf16.mxu0 0
    %815 = vmatpush1.bf16.msra.mxu0 0
    %816 = vmatprep.subr.bf16.mxu0 0
    %817 = vmatpush1.bf16.msra.mxu0 0
    %818 = vmatprep.subr.bf16.mxu0 0
    %819 = vmatpush1.bf16.msra.mxu0 0
    %820 = vmatprep.subr.bf16.mxu0 0
    %821 = vmatpush1.bf16.msra.mxu0 0
    %822 = vmatprep.subr.bf16.mxu0 0
    %823 = vmatpush1.bf16.msra.mxu0 0
    %824 = vmatprep.subr.bf16.mxu0 0
    %825 = vmatpush1.bf16.msra.mxu0 0
    %826 = vmatprep.subr.bf16.mxu0 0
    %827 = vmatpush1.bf16.msra.mxu0 0
    %828 = vmatprep.subr.bf16.mxu0 0
    %829 = vmatpush1.bf16.msra.mxu0 0
    %830 = vmatprep.subr.bf16.mxu0 0
    %831 = vmatpush1.bf16.msra.mxu0 0
    %832 = vmatprep.subr.bf16.mxu0 0
    %833 = vmatpush1.bf16.msra.mxu0 0
    %834 = vmatprep.subr.bf16.mxu0 0
    %835 = vmatpush1.bf16.msra.mxu0 0
    %836 = vmatprep.mubr.bf16.mxu0 0
    %837 = vmatmul.mubr.bf16.gmra.mrb[0].mxu0 %v720
    %v838 = vpop.f32.mrb[0].mxu0
    %v839 = vadd.f32 0.0, %v838
    %v840 = vpop.f32.mrb[0].mxu0
    %v841 = vpop.f32.mrb[0].mxu0
    %v842 = vpop.f32.mrb[0].mxu0
    %843 = vdwg.mxu0
    %v844 = vlaneseq
    %v845 = vshrl.u32 %v844, 7
    %v846 = vsub.s32 1, %v845
    %v847 = vrot.slane %v607, %v846
    %v848 = vmul.f32 %v759, %v847
    %v849 = vlaneseq
    %v850 = vshrl.u32 %v849, 7
    %v851 = vsub.s32 2, %v850
    %v852 = vrot.slane %v607, %v851
    %v853 = vadd.f32 %v848, %v852
    %v854 = vxor.u32 %v853, 2147483648
    %v855 = vmul.f32 %v854, 1.442695
    %v856 = vpow.pop %v855
    %v857 = vadd.f32 %v856, 1.0
    %v858 = vrcp.pop %v857
    %v859 = vmul.f32 1.0, %v858
    %v860 = vmul.f32 %v853, %v859
    %v861 = vlaneseq
    %v862 = vshrl.u32 %v861, 7
    %v863 = vsub.s32 3, %v862
    %v864 = vrot.slane %v607, %v863
    %v865 = vmul.f32 %v798, %v864
    %v866 = vlaneseq
    %v867 = vshrl.u32 %v866, 7
    %v868 = vsub.s32 4, %v867
    %v869 = vrot.slane %v607, %v868
    %v870 = vadd.f32 %v865, %v869
    %v871 = vxor.u32 %v870, 2147483648
    %v872 = vmul.f32 %v871, 1.442695
    %v873 = vpow.pop %v872
    %v874 = vadd.f32 %v873, 1.0
    %v875 = vrcp.pop %v874
    %v876 = vmul.f32 1.0, %v875
    %v877 = vmul.f32 %v870, %v876
    %v878 = vlaneseq
    %v879 = vshrl.u32 %v878, 7
    %v880 = vsub.s32 5, %v879
    %v881 = vrot.slane %v607, %v880
    %v882 = vmul.f32 %v800, %v881
    %v883 = vlaneseq
    %v884 = vshrl.u32 %v883, 7
    %v885 = vsub.s32 6, %v884
    %v886 = vrot.slane %v607, %v885
    %v887 = vadd.f32 %v882, %v886
    %v888 = vxor.u32 %v887, 2147483648
    %v889 = vmul.f32 %v888, 1.442695
    %v890 = vpow.pop %v889
    %v891 = vadd.f32 %v890, 1.0
    %v892 = vrcp.pop %v891
    %v893 = vmul.f32 1.0, %v892
    %v894 = vmul.f32 %v887, %v893
    %v895 = vlaneseq
    %v896 = vshrl.u32 %v895, 7
    %v897 = vsub.s32 7, %v896
    %v898 = vrot.slane %v607, %v897
    %v899 = vadd.f32 %v839, %v898
    %vm900 = vcmp.gt.f32.partialorder %v899, 20.0
    %v901 = vmin.f32 %v899, 20.0
    %v902 = vmul.f32 %v901, 1.442695
    %v903 = vpow.pop %v902
    %v904 = vadd.f32 %v903, 1.0
    %v905 = vlog2.pop %v904
    %v906 = vmul.f32 %v905, 0.6931472
    %v907 = vmul.f32 -0.5, %v903
    %v908 = vadd.f32 %v907, 1.0
    %v909 = vmul.f32 %v908, %v903
    %v910 = vand.u32 2147483647, %v903
    %vm911 = vcmp.lt.f32.partialorder %v910, 0.0004427343
    %v912 = vsel %vm911, %v909, %v906
    %v913 = vsel %vm900, %v899, %v912
    %v914 = vmul.f32 %v877, %v894
    %v915 = vsel %vm328, %v914, 0.0
    %916 = vadd.xlane.f32.xlu0 %v915
    %v917 = vpop.xlane.xlu0 %916
    %v918 = vmul.f32 %v913, %v917
    %v919 = vlaneseq
    %v920 = vshrl.u32 %v919, 7
    %v921 = vsub.s32 0, %v920
    %v922 = vrot.slane %v608, %v921
    %v923 = vadd.f32 %v918, %v922
    %v924 = vmul.f32 %v860, %v923
    %v925 = vxor.u32 %v757, 2147483648
    %v926 = vmul.f32 %v925, 1.442695
    %v927 = vpow.pop %v926
    %v928 = vadd.f32 %v927, 1.0
    %v929 = vrcp.pop %v928
    %v930 = vmul.f32 1.0, %v929
    %v931 = vmul.f32 %v757, %v930
    %v932 = vmul.f32 %v924, %v931
    %v933 = vmul.f32 %v932, %v932
    %v934 = vsel %vm348, %v933, 0.0
    %935 = vadd.xlane.f32.xlu0 %v934
    %v936 = vpop.xlane.xlu0 %935
    %v937 = vmul.f32 %v936, %v352
    %v938 = vadd.f32 %v937, 1e-05
    %v939 = vrsqrt.pop %v938
    %v940 = vmul.f32 %v932, %v939
    %v941 = vlaneseq
    %v942 = vshrl.u32 %v941, 7
    %v943 = vsub.s32 1, %v942
    %v944 = vrot.slane %v608, %v943
    %v945 = vmul.f32 %v940, %v944
    %v946 = vpack.c.bf16 %v945, %v945
    %v955 = vunpack.c.l.b16 %v623
    %v956 = vunpack.c.l.b16 %v624
    %v957 = vunpack.c.l.b16 %v625
    %v958 = vunpack.c.l.b16 %v626
    %v959 = vunpack.c.l.b16 %v627
    %v960 = vunpack.c.l.b16 %v628
    %v961 = vunpack.c.l.b16 %v629
    %v962 = vunpack.c.l.b16 %v630
    %v963 = vpack.c.b16 %v956, %v955
    %v964 = vpack.c.b16 %v958, %v957
    %v965 = vpack.c.b16 %v960, %v959
    %v966 = vpack.c.b16 %v962, %v961
    %v972 = vsel %vm387, %v946, 0
    %974 = vmatprep.subr.bf16.mxu0 0
    %975 = vmatpush1.bf16.msra.mxu0 %v963
    %976 = vmatprep.subr.bf16.mxu0 0
    %977 = vmatpush1.bf16.msra.mxu0 %v964
    %978 = vmatprep.subr.bf16.mxu0 0
    %979 = vmatpush1.bf16.msra.mxu0 %v965
    %980 = vmatprep.subr.bf16.mxu0 0
    %981 = vmatpush1.bf16.msra.mxu0 %v966
    %982 = vmatprep.subr.bf16.mxu0 0
    %983 = vmatpush1.bf16.msra.mxu0 0
    %984 = vmatprep.subr.bf16.mxu0 0
    %985 = vmatpush1.bf16.msra.mxu0 0
    %986 = vmatprep.subr.bf16.mxu0 0
    %987 = vmatpush1.bf16.msra.mxu0 0
    %988 = vmatprep.subr.bf16.mxu0 0
    %989 = vmatpush1.bf16.msra.mxu0 0
    %990 = vmatprep.subr.bf16.mxu0 0
    %991 = vmatpush1.bf16.msra.mxu0 0
    %992 = vmatprep.subr.bf16.mxu0 0
    %993 = vmatpush1.bf16.msra.mxu0 0
    %994 = vmatprep.subr.bf16.mxu0 0
    %995 = vmatpush1.bf16.msra.mxu0 0
    %996 = vmatprep.subr.bf16.mxu0 0
    %997 = vmatpush1.bf16.msra.mxu0 0
    %998 = vmatprep.subr.bf16.mxu0 0
    %999 = vmatpush1.bf16.msra.mxu0 0
    %1000 = vmatprep.subr.bf16.mxu0 0
    %1001 = vmatpush1.bf16.msra.mxu0 0
    %1002 = vmatprep.subr.bf16.mxu0 0
    %1003 = vmatpush1.bf16.msra.mxu0 0
    %1004 = vmatprep.subr.bf16.mxu0 0
    %1005 = vmatpush1.bf16.msra.mxu0 0
    %1006 = vmatprep.mubr.bf16.mxu0 0
    %1007 = vmatmul.mubr.bf16.gmra.mrb[0].mxu0 %v972
    %v1008 = vpop.f32.mrb[0].mxu0
    %v1009 = vadd.f32 0.0, %v1008
    %v1010 = vpop.f32.mrb[0].mxu0
    %v1011 = vpop.f32.mrb[0].mxu0
    %v1012 = vpop.f32.mrb[0].mxu0
    %1013 = vdwg.mxu0
    %v1014 = vadd.f32 %v605, %v1009
    %v1015 = vmul.f32 %v1014, %v1014
    %v1016 = vsel %vm59, %v1015, 0.0
    %1017 = vadd.xlane.f32.xlu0 %v1016
    %v1018 = vpop.xlane.xlu0 %1017
    %v1019 = vadd.f32 %v1018, 1e-06
    %v1020 = vrsqrt.pop %v1019
    %v1021 = vmul.f32 %v1019, %v1020
    %vm1022 = vcmp.eq.f32.partialorder %v1019, inf
    %v1023 = vsel %vm1022, %v1019, %v1021
    %vm1024 = vcmp.eq.f32.partialorder %v1019, 0.0
    %v1025 = vand.u32 %v1019, 2147483648
    %v1026 = vsel %vm1024, %v1025, %v1023
    %v1027 = vlaneseq
    %v1028 = vshrl.u32 %v1027, 7
    %v1029 = vsub.s32 2, %v1028
    %v1030 = vrot.slane %v608, %v1029
    %v1031 = vmul.f32 %v1030, %v1014
    %v1032 = vrcp.pop %v1026
    %v1033 = vmul.f32 %v1031, %v1032
    %v1034 = vpack.c.bf16 %v1033, %v1033
    %v1035 = vlaneseq
    %v1036 = vshrl.u32 %v1035, 7
    %v1037 = vsub.s32 3, %v1036
    %v1038 = vrot.slane %v608, %v1037
    %v1039 = vunpack.c.h.b16 %v612
    %v1040 = vunpack.c.h.b16 %v615
    %v1041 = vunpack.c.h.b16 %v618
    %v1042 = vunpack.c.h.b16 %v621
    %v1043 = vpack.c.b16 %v1040, %v1039
    %v1044 = vpack.c.b16 %v1042, %v1041
    %v1048 = vsel %vm131, %v1034, 0
    %1050 = vmatprep.subr.bf16.mxu0 0
    %1051 = vmatpush1.bf16.msra.mxu0 %v1043
    %1052 = vmatprep.subr.bf16.mxu0 0
    %1053 = vmatpush1.bf16.msra.mxu0 %v1044
    %1054 = vmatprep.subr.bf16.mxu0 0
    %1055 = vmatpush1.bf16.msra.mxu0 0
    %1056 = vmatprep.subr.bf16.mxu0 0
    %1057 = vmatpush1.bf16.msra.mxu0 0
    %1058 = vmatprep.subr.bf16.mxu0 0
    %1059 = vmatpush1.bf16.msra.mxu0 0
    %1060 = vmatprep.subr.bf16.mxu0 0
    %1061 = vmatpush1.bf16.msra.mxu0 0
    %1062 = vmatprep.subr.bf16.mxu0 0
    %1063 = vmatpush1.bf16.msra.mxu0 0
    %1064 = vmatprep.subr.bf16.mxu0 0
    %1065 = vmatpush1.bf16.msra.mxu0 0
    %1066 = vmatprep.subr.bf16.mxu0 0
    %1067 = vmatpush1.bf16.msra.mxu0 0
    %1068 = vmatprep.subr.bf16.mxu0 0
    %1069 = vmatpush1.bf16.msra.mxu0 0
    %1070 = vmatprep.subr.bf16.mxu0 0
    %1071 = vmatpush1.bf16.msra.mxu0 0
    %1072 = vmatprep.subr.bf16.mxu0 0
    %1073 = vmatpush1.bf16.msra.mxu0 0
    %1074 = vmatprep.subr.bf16.mxu0 0
    %1075 = vmatpush1.bf16.msra.mxu0 0
    %1076 = vmatprep.subr.bf16.mxu0 0
    %1077 = vmatpush1.bf16.msra.mxu0 0
    %1078 = vmatprep.subr.bf16.mxu0 0
    %1079 = vmatpush1.bf16.msra.mxu0 0
    %1080 = vmatprep.subr.bf16.mxu0 0
    %1081 = vmatpush1.bf16.msra.mxu0 0
    %1082 = vmatprep.mubr.bf16.mxu0 0
    %1083 = vmatmul.mubr.bf16.gmra.mrb[0].mxu0 %v1048
    %v1084 = vpop.f32.mrb[0].mxu0
    %v1085 = vadd.f32 %v1038, %v1084
    %v1086 = vpop.f32.mrb[0].mxu0
    %v1087 = vpop.f32.mrb[0].mxu0
    %v1088 = vpop.f32.mrb[0].mxu0
    %1089 = vdwg.mxu0
    %v1090 = vmul.f32 %v1085, 0.5
    %v1091 = vmul.f32 %v1085, 0.70710677
    %v1092 = verf.f32.pop %v1091
    %v1093 = vadd.f32 %v1092, 1.0
    %v1094 = vmul.f32 %v1090, %v1093
    %v1095 = vpack.c.bf16 %v1094, %v1094
    %v1096 = vlaneseq
    %v1097 = vshrl.u32 %v1096, 7
    %v1098 = vsub.s32 4, %v1097
    %v1099 = vrot.slane %v608, %v1098
    %v1116 = vunpack.c.l.b16 %v631
    %v1117 = vunpack.c.l.b16 %v632
    %v1118 = vunpack.c.l.b16 %v633
    %v1119 = vunpack.c.l.b16 %v634
    %v1120 = vunpack.c.l.b16 %v635
    %v1121 = vunpack.c.l.b16 %v636
    %v1122 = vunpack.c.l.b16 %v637
    %v1123 = vunpack.c.l.b16 %v638
    %v1124 = vunpack.c.l.b16 %v639
    %v1125 = vunpack.c.l.b16 %v640
    %v1126 = vunpack.c.l.b16 %v641
    %v1127 = vunpack.c.l.b16 %v642
    %v1128 = vunpack.c.l.b16 %v643
    %v1129 = vunpack.c.l.b16 %v644
    %v1130 = vunpack.c.l.b16 %v645
    %v1131 = vunpack.c.l.b16 %v646
    %v1132 = vpack.c.b16 %v1117, %v1116
    %v1133 = vpack.c.b16 %v1119, %v1118
    %v1134 = vpack.c.b16 %v1121, %v1120
    %v1135 = vpack.c.b16 %v1123, %v1122
    %v1136 = vpack.c.b16 %v1125, %v1124
    %v1137 = vpack.c.b16 %v1127, %v1126
    %v1138 = vpack.c.b16 %v1129, %v1128
    %v1139 = vpack.c.b16 %v1131, %v1130
    %1148 = vmatprep.subr.bf16.mxu0 0
    %1149 = vmatpush1.bf16.msra.mxu0 %v1132
    %1150 = vmatprep.subr.bf16.mxu0 0
    %1151 = vmatpush1.bf16.msra.mxu0 %v1133
    %1152 = vmatprep.subr.bf16.mxu0 0
    %1153 = vmatpush1.bf16.msra.mxu0 %v1134
    %1154 = vmatprep.subr.bf16.mxu0 0
    %1155 = vmatpush1.bf16.msra.mxu0 %v1135
    %1156 = vmatprep.subr.bf16.mxu0 0
    %1157 = vmatpush1.bf16.msra.mxu0 %v1136
    %1158 = vmatprep.subr.bf16.mxu0 0
    %1159 = vmatpush1.bf16.msra.mxu0 %v1137
    %1160 = vmatprep.subr.bf16.mxu0 0
    %1161 = vmatpush1.bf16.msra.mxu0 %v1138
    %1162 = vmatprep.subr.bf16.mxu0 0
    %1163 = vmatpush1.bf16.msra.mxu0 %v1139
    %1164 = vmatprep.subr.bf16.mxu0 0
    %1165 = vmatpush1.bf16.msra.mxu0 0
    %1166 = vmatprep.subr.bf16.mxu0 0
    %1167 = vmatpush1.bf16.msra.mxu0 0
    %1168 = vmatprep.subr.bf16.mxu0 0
    %1169 = vmatpush1.bf16.msra.mxu0 0
    %1170 = vmatprep.subr.bf16.mxu0 0
    %1171 = vmatpush1.bf16.msra.mxu0 0
    %1172 = vmatprep.subr.bf16.mxu0 0
    %1173 = vmatpush1.bf16.msra.mxu0 0
    %1174 = vmatprep.subr.bf16.mxu0 0
    %1175 = vmatpush1.bf16.msra.mxu0 0
    %1176 = vmatprep.subr.bf16.mxu0 0
    %1177 = vmatpush1.bf16.msra.mxu0 0
    %1178 = vmatprep.subr.bf16.mxu0 0
    %1179 = vmatpush1.bf16.msra.mxu0 0
    %1180 = vmatprep.mubr.bf16.mxu0 0
    %1181 = vmatmul.mubr.bf16.gmra.mrb[0].mxu0 %v1095
    %v1182 = vpop.f32.mrb[0].mxu0
    %v1183 = vadd.f32 %v1099, %v1182
    %v1184 = vpop.f32.mrb[0].mxu0
    %v1185 = vpop.f32.mrb[0].mxu0
    %v1186 = vpop.f32.mrb[0].mxu0
    %1187 = vdwg.mxu0
    %v1188 = vadd.f32 %v1014, %v1183
    %s1189 = scalar_lea.vmem %s1, 32
    %v1190 = vld [vmem:[%s1189] sm:$0xff]
    %v1191 = vld [vmem:[%s1189 + $0x8] sm:$0xff]
    %s1192 = scalar_lea.vmem %s2, 192
    %v1193 = vld [vmem:[%s1192] sm:$0xff]
    %v1194 = vld [vmem:[%s1192 + $0x8] sm:$0xff]
    %v1195 = vld [vmem:[%s1192 + $0x10] sm:$0xff]
    %v1196 = vld [vmem:[%s1192 + $0x18] sm:$0xff]
    %v1197 = vld [vmem:[%s1192 + $0x20] sm:$0xff]
    %v1198 = vld [vmem:[%s1192 + $0x28] sm:$0xff]
    %v1199 = vld [vmem:[%s1192 + $0x30] sm:$0xff]
    %v1200 = vld [vmem:[%s1192 + $0x38] sm:$0xff]
    %v1201 = vld [vmem:[%s1192 + $0x40] sm:$0xff]
    %v1202 = vld [vmem:[%s1192 + $0x48] sm:$0xff]
    %v1203 = vld [vmem:[%s1192 + $0x50] sm:$0xff]
    %v1204 = vld [vmem:[%s1192 + $0x58] sm:$0xff]
    %s1205 = scalar_lea.vmem %s3, 192
    %v1206 = vld [vmem:[%s1205] sm:$0xf]
    %v1207 = vld [vmem:[%s1205 + $0x4] sm:$0xf]
    %v1208 = vld [vmem:[%s1205 + $0x8] sm:$0xf]
    %v1209 = vld [vmem:[%s1205 + $0xc] sm:$0xf]
    %v1210 = vld [vmem:[%s1205 + $0x10] sm:$0xf]
    %v1211 = vld [vmem:[%s1205 + $0x14] sm:$0xf]
    %v1212 = vld [vmem:[%s1205 + $0x18] sm:$0xf]
    %v1213 = vld [vmem:[%s1205 + $0x1c] sm:$0xf]
    %v1214 = vld [vmem:[%s1205 + $0x20] sm:$0xf]
    %v1215 = vld [vmem:[%s1205 + $0x24] sm:$0xf]
    %v1216 = vld [vmem:[%s1205 + $0x28] sm:$0xf]
    %v1217 = vld [vmem:[%s1205 + $0x2c] sm:$0xf]
    %v1218 = vld [vmem:[%s1205 + $0x30] sm:$0xf]
    %v1219 = vld [vmem:[%s1205 + $0x34] sm:$0xf]
    %v1220 = vld [vmem:[%s1205 + $0x38] sm:$0xf]
    %v1221 = vld [vmem:[%s1205 + $0x3c] sm:$0xf]
    %v1222 = vld [vmem:[%s1205 + $0x40] sm:$0xf]
    %v1223 = vld [vmem:[%s1205 + $0x44] sm:$0xf]
    %v1224 = vld [vmem:[%s1205 + $0x48] sm:$0xf]
    %v1225 = vld [vmem:[%s1205 + $0x4c] sm:$0xf]
    %v1226 = vld [vmem:[%s1205 + $0x50] sm:$0xf]
    %v1227 = vld [vmem:[%s1205 + $0x54] sm:$0xf]
    %v1228 = vld [vmem:[%s1205 + $0x58] sm:$0xf]
    %v1229 = vld [vmem:[%s1205 + $0x5c] sm:$0xf]
    %v1230 = vmul.f32 %v1188, %v1188
    %v1231 = vsel %vm59, %v1230, 0.0
    %1232 = vadd.xlane.f32.xlu0 %v1231
    %v1233 = vpop.xlane.xlu0 %1232
    %v1234 = vadd.f32 %v1233, 1e-06
    %v1235 = vrsqrt.pop %v1234
    %v1236 = vmul.f32 %v1234, %v1235
    %vm1237 = vcmp.eq.f32.partialorder %v1234, inf
    %v1238 = vsel %vm1237, %v1234, %v1236
    %vm1239 = vcmp.eq.f32.partialorder %v1234, 0.0
    %v1240 = vand.u32 %v1234, 2147483648
    %v1241 = vsel %vm1239, %v1240, %v1238
    %v1242 = vlaneseq
    %v1243 = vshrl.u32 %v1242, 7
    %v1244 = vsub.s32 0, %v1243
    %v1245 = vrot.slane %v1190, %v1244
    %v1246 = vmul.f32 %v1245, %v1188
    %v1247 = vrcp.pop %v1241
    %v1248 = vmul.f32 %v1246, %v1247
    %v1249 = vpack.c.bf16 %v1248, %v1248
    %v1262 = vunpack.c.l.b16 %v1193
    %v1263 = vunpack.c.h.b16 %v1193
    %v1264 = vunpack.c.l.b16 %v1194
    %v1265 = vunpack.c.h.b16 %v1194
    %v1266 = vunpack.c.l.b16 %v1195
    %v1267 = vunpack.c.l.b16 %v1196
    %v1268 = vunpack.c.h.b16 %v1196
    %v1269 = vunpack.c.l.b16 %v1197
    %v1270 = vunpack.c.h.b16 %v1197
    %v1271 = vunpack.c.l.b16 %v1198
    %v1272 = vunpack.c.l.b16 %v1199
    %v1273 = vunpack.c.h.b16 %v1199
    %v1274 = vunpack.c.l.b16 %v1200
    %v1275 = vunpack.c.h.b16 %v1200
    %v1276 = vunpack.c.l.b16 %v1201
    %v1277 = vunpack.c.l.b16 %v1202
    %v1278 = vunpack.c.h.b16 %v1202
    %v1279 = vunpack.c.l.b16 %v1203
    %v1280 = vunpack.c.h.b16 %v1203
    %v1281 = vunpack.c.l.b16 %v1204
    %v1282 = vpack.c.b16 %v1267, %v1262
    %v1283 = vpack.c.b16 %v1268, %v1263
    %v1284 = vpack.c.b16 %v1269, %v1264
    %v1285 = vpack.c.b16 %v1270, %v1265
    %v1286 = vpack.c.b16 %v1271, %v1266
    %v1287 = vpack.c.b16 %v1277, %v1272
    %v1288 = vpack.c.b16 %v1278, %v1273
    %v1289 = vpack.c.b16 %v1279, %v1274
    %v1290 = vpack.c.b16 %v1280, %v1275
    %v1291 = vpack.c.b16 %v1281, %v1276
    %v1303 = vsel %vm131, %v1249, 0
    %1305 = vmatprep.subr.bf16.mxu0 %v1283
    %1306 = vmatpush1.bf16.msra.mxu0 %v1282
    %1307 = vmatprep.subr.bf16.mxu0 %v1288
    %1308 = vmatpush1.bf16.msra.mxu0 %v1287
    %1309 = vmatprep.subr.bf16.mxu0 0
    %1310 = vmatpush1.bf16.msra.mxu0 0
    %1311 = vmatprep.subr.bf16.mxu0 0
    %1312 = vmatpush1.bf16.msra.mxu0 0
    %1313 = vmatprep.subr.bf16.mxu0 0
    %1314 = vmatpush1.bf16.msra.mxu0 0
    %1315 = vmatprep.subr.bf16.mxu0 0
    %1316 = vmatpush1.bf16.msra.mxu0 0
    %1317 = vmatprep.subr.bf16.mxu0 0
    %1318 = vmatpush1.bf16.msra.mxu0 0
    %1319 = vmatprep.subr.bf16.mxu0 0
    %1320 = vmatpush1.bf16.msra.mxu0 0
    %1321 = vmatprep.subr.bf16.mxu0 0
    %1322 = vmatpush1.bf16.msra.mxu0 0
    %1323 = vmatprep.subr.bf16.mxu0 0
    %1324 = vmatpush1.bf16.msra.mxu0 0
    %1325 = vmatprep.subr.bf16.mxu0 0
    %1326 = vmatpush1.bf16.msra.mxu0 0
    %1327 = vmatprep.subr.bf16.mxu0 0
    %1328 = vmatpush1.bf16.msra.mxu0 0
    %1329 = vmatprep.subr.bf16.mxu0 0
    %1330 = vmatpush1.bf16.msra.mxu0 0
    %1331 = vmatprep.subr.bf16.mxu0 0
    %1332 = vmatpush1.bf16.msra.mxu0 0
    %1333 = vmatprep.subr.bf16.mxu0 0
    %1334 = vmatpush1.bf16.msra.mxu0 0
    %1335 = vmatprep.subr.bf16.mxu0 0
    %1336 = vmatpush1.bf16.msra.mxu0 0
    %1337 = vmatprep.mubr.bf16.mxu0 0
    %1338 = vmatmul.mubr.bf16.gmra.mrb[0].mxu0 %v1303
    %v1339 = vpop.f32.mrb[0].mxu0
    %v1340 = vadd.f32 0.0, %v1339
    %v1341 = vpop.f32.mrb[0].mxu0
    %v1342 = vadd.f32 0.0, %v1341
    %v1343 = vpop.f32.mrb[0].mxu0
    %v1344 = vpop.f32.mrb[0].mxu0
    %1345 = vdwg.mxu0
    %1346 = vmatprep.subr.bf16.mxu0 %v1285
    %1347 = vmatpush1.bf16.msra.mxu0 %v1284
    %1348 = vmatprep.subr.bf16.mxu0 %v1290
    %1349 = vmatpush1.bf16.msra.mxu0 %v1289
    %1350 = vmatprep.subr.bf16.mxu0 0
    %1351 = vmatpush1.bf16.msra.mxu0 0
    %1352 = vmatprep.subr.bf16.mxu0 0
    %1353 = vmatpush1.bf16.msra.mxu0 0
    %1354 = vmatprep.subr.bf16.mxu0 0
    %1355 = vmatpush1.bf16.msra.mxu0 0
    %1356 = vmatprep.subr.bf16.mxu0 0
    %1357 = vmatpush1.bf16.msra.mxu0 0
    %1358 = vmatprep.subr.bf16.mxu0 0
    %1359 = vmatpush1.bf16.msra.mxu0 0
    %1360 = vmatprep.subr.bf16.mxu0 0
    %1361 = vmatpush1.bf16.msra.mxu0 0
    %1362 = vmatprep.subr.bf16.mxu0 0
    %1363 = vmatpush1.bf16.msra.mxu0 0
    %1364 = vmatprep.subr.bf16.mxu0 0
    %1365 = vmatpush1.bf16.msra.mxu0 0
    %1366 = vmatprep.subr.bf16.mxu0 0
    %1367 = vmatpush1.bf16.msra.mxu0 0
    %1368 = vmatprep.subr.bf16.mxu0 0
    %1369 = vmatpush1.bf16.msra.mxu0 0
    %1370 = vmatprep.subr.bf16.mxu0 0
    %1371 = vmatpush1.bf16.msra.mxu0 0
    %1372 = vmatprep.subr.bf16.mxu0 0
    %1373 = vmatpush1.bf16.msra.mxu0 0
    %1374 = vmatprep.subr.bf16.mxu0 0
    %1375 = vmatpush1.bf16.msra.mxu0 0
    %1376 = vmatprep.subr.bf16.mxu0 0
    %1377 = vmatpush1.bf16.msra.mxu0 0
    %1378 = vmatprep.mubr.bf16.mxu0 0
    %1379 = vmatmul.mubr.bf16.gmra.mrb[0].mxu0 %v1303
    %v1380 = vpop.f32.mrb[0].mxu0
    %v1381 = vadd.f32 0.0, %v1380
    %v1382 = vpop.f32.mrb[0].mxu0
    %v1383 = vadd.f32 0.0, %v1382
    %v1384 = vpop.f32.mrb[0].mxu0
    %v1385 = vpop.f32.mrb[0].mxu0
    %1386 = vdwg.mxu0
    %1387 = vmatprep.subr.bf16.mxu0 0
    %1388 = vmatpush1.bf16.msra.mxu0 %v1286
    %1389 = vmatprep.subr.bf16.mxu0 0
    %1390 = vmatpush1.bf16.msra.mxu0 %v1291
    %1391 = vmatprep.subr.bf16.mxu0 0
    %1392 = vmatpush1.bf16.msra.mxu0 0
    %1393 = vmatprep.subr.bf16.mxu0 0
    %1394 = vmatpush1.bf16.msra.mxu0 0
    %1395 = vmatprep.subr.bf16.mxu0 0
    %1396 = vmatpush1.bf16.msra.mxu0 0
    %1397 = vmatprep.subr.bf16.mxu0 0
    %1398 = vmatpush1.bf16.msra.mxu0 0
    %1399 = vmatprep.subr.bf16.mxu0 0
    %1400 = vmatpush1.bf16.msra.mxu0 0
    %1401 = vmatprep.subr.bf16.mxu0 0
    %1402 = vmatpush1.bf16.msra.mxu0 0
    %1403 = vmatprep.subr.bf16.mxu0 0
    %1404 = vmatpush1.bf16.msra.mxu0 0
    %1405 = vmatprep.subr.bf16.mxu0 0
    %1406 = vmatpush1.bf16.msra.mxu0 0
    %1407 = vmatprep.subr.bf16.mxu0 0
    %1408 = vmatpush1.bf16.msra.mxu0 0
    %1409 = vmatprep.subr.bf16.mxu0 0
    %1410 = vmatpush1.bf16.msra.mxu0 0
    %1411 = vmatprep.subr.bf16.mxu0 0
    %1412 = vmatpush1.bf16.msra.mxu0 0
    %1413 = vmatprep.subr.bf16.mxu0 0
    %1414 = vmatpush1.bf16.msra.mxu0 0
    %1415 = vmatprep.subr.bf16.mxu0 0
    %1416 = vmatpush1.bf16.msra.mxu0 0
    %1417 = vmatprep.subr.bf16.mxu0 0
    %1418 = vmatpush1.bf16.msra.mxu0 0
    %1419 = vmatprep.mubr.bf16.mxu0 0
    %1420 = vmatmul.mubr.bf16.gmra.mrb[0].mxu0 %v1303
    %v1421 = vpop.f32.mrb[0].mxu0
    %v1422 = vadd.f32 0.0, %v1421
    %v1423 = vpop.f32.mrb[0].mxu0
    %v1424 = vpop.f32.mrb[0].mxu0
    %v1425 = vpop.f32.mrb[0].mxu0
    %1426 = vdwg.mxu0
    %v1427 = vlaneseq
    %v1428 = vshrl.u32 %v1427, 7
    %v1429 = vsub.s32 1, %v1428
    %v1430 = vrot.slane %v1190, %v1429
    %v1431 = vmul.f32 %v1342, %v1430
    %v1432 = vlaneseq
    %v1433 = vshrl.u32 %v1432, 7
    %v1434 = vsub.s32 2, %v1433
    %v1435 = vrot.slane %v1190, %v1434
    %v1436 = vadd.f32 %v1431, %v1435
    %v1437 = vxor.u32 %v1436, 2147483648
    %v1438 = vmul.f32 %v1437, 1.442695
    %v1439 = vpow.pop %v1438
    %v1440 = vadd.f32 %v1439, 1.0
    %v1441 = vrcp.pop %v1440
    %v1442 = vmul.f32 1.0, %v1441
    %v1443 = vmul.f32 %v1436, %v1442
    %v1444 = vlaneseq
    %v1445 = vshrl.u32 %v1444, 7
    %v1446 = vsub.s32 3, %v1445
    %v1447 = vrot.slane %v1190, %v1446
    %v1448 = vmul.f32 %v1381, %v1447
    %v1449 = vlaneseq
    %v1450 = vshrl.u32 %v1449, 7
    %v1451 = vsub.s32 4, %v1450
    %v1452 = vrot.slane %v1190, %v1451
    %v1453 = vadd.f32 %v1448, %v1452
    %v1454 = vxor.u32 %v1453, 2147483648
    %v1455 = vmul.f32 %v1454, 1.442695
    %v1456 = vpow.pop %v1455
    %v1457 = vadd.f32 %v1456, 1.0
    %v1458 = vrcp.pop %v1457
    %v1459 = vmul.f32 1.0, %v1458
    %v1460 = vmul.f32 %v1453, %v1459
    %v1461 = vlaneseq
    %v1462 = vshrl.u32 %v1461, 7
    %v1463 = vsub.s32 5, %v1462
    %v1464 = vrot.slane %v1190, %v1463
    %v1465 = vmul.f32 %v1383, %v1464
    %v1466 = vlaneseq
    %v1467 = vshrl.u32 %v1466, 7
    %v1468 = vsub.s32 6, %v1467
    %v1469 = vrot.slane %v1190, %v1468
    %v1470 = vadd.f32 %v1465, %v1469
    %v1471 = vxor.u32 %v1470, 2147483648
    %v1472 = vmul.f32 %v1471, 1.442695
    %v1473 = vpow.pop %v1472
    %v1474 = vadd.f32 %v1473, 1.0
    %v1475 = vrcp.pop %v1474
    %v1476 = vmul.f32 1.0, %v1475
    %v1477 = vmul.f32 %v1470, %v1476
    %v1478 = vlaneseq
    %v1479 = vshrl.u32 %v1478, 7
    %v1480 = vsub.s32 7, %v1479
    %v1481 = vrot.slane %v1190, %v1480
    %v1482 = vadd.f32 %v1422, %v1481
    %vm1483 = vcmp.gt.f32.partialorder %v1482, 20.0
    %v1484 = vmin.f32 %v1482, 20.0
    %v1485 = vmul.f32 %v1484, 1.442695
    %v1486 = vpow.pop %v1485
    %v1487 = vadd.f32 %v1486, 1.0
    %v1488 = vlog2.pop %v1487
    %v1489 = vmul.f32 %v1488, 0.6931472
    %v1490 = vmul.f32 -0.5, %v1486
    %v1491 = vadd.f32 %v1490, 1.0
    %v1492 = vmul.f32 %v1491, %v1486
    %v1493 = vand.u32 2147483647, %v1486
    %vm1494 = vcmp.lt.f32.partialorder %v1493, 0.0004427343
    %v1495 = vsel %vm1494, %v1492, %v1489
    %v1496 = vsel %vm1483, %v1482, %v1495
    %v1497 = vmul.f32 %v1460, %v1477
    %v1498 = vsel %vm328, %v1497, 0.0
    %1499 = vadd.xlane.f32.xlu0 %v1498
    %v1500 = vpop.xlane.xlu0 %1499
    %v1501 = vmul.f32 %v1496, %v1500
    %v1502 = vlaneseq
    %v1503 = vshrl.u32 %v1502, 7
    %v1504 = vsub.s32 0, %v1503
    %v1505 = vrot.slane %v1191, %v1504
    %v1506 = vadd.f32 %v1501, %v1505
    %v1507 = vmul.f32 %v1443, %v1506
    %v1508 = vxor.u32 %v1340, 2147483648
    %v1509 = vmul.f32 %v1508, 1.442695
    %v1510 = vpow.pop %v1509
    %v1511 = vadd.f32 %v1510, 1.0
    %v1512 = vrcp.pop %v1511
    %v1513 = vmul.f32 1.0, %v1512
    %v1514 = vmul.f32 %v1340, %v1513
    %v1515 = vmul.f32 %v1507, %v1514
    %v1516 = vmul.f32 %v1515, %v1515
    %v1517 = vsel %vm348, %v1516, 0.0
    %1518 = vadd.xlane.f32.xlu0 %v1517
    %v1519 = vpop.xlane.xlu0 %1518
    %v1520 = vmul.f32 %v1519, %v352
    %v1521 = vadd.f32 %v1520, 1e-05
    %v1522 = vrsqrt.pop %v1521
    %v1523 = vmul.f32 %v1515, %v1522
    %v1524 = vlaneseq
    %v1525 = vshrl.u32 %v1524, 7
    %v1526 = vsub.s32 1, %v1525
    %v1527 = vrot.slane %v1191, %v1526
    %v1528 = vmul.f32 %v1523, %v1527
    %v1529 = vpack.c.bf16 %v1528, %v1528
    %v1538 = vunpack.c.l.b16 %v1206
    %v1539 = vunpack.c.l.b16 %v1207
    %v1540 = vunpack.c.l.b16 %v1208
    %v1541 = vunpack.c.l.b16 %v1209
    %v1542 = vunpack.c.l.b16 %v1210
    %v1543 = vunpack.c.l.b16 %v1211
    %v1544 = vunpack.c.l.b16 %v1212
    %v1545 = vunpack.c.l.b16 %v1213
    %v1546 = vpack.c.b16 %v1539, %v1538
    %v1547 = vpack.c.b16 %v1541, %v1540
    %v1548 = vpack.c.b16 %v1543, %v1542
    %v1549 = vpack.c.b16 %v1545, %v1544
    %v1555 = vsel %vm387, %v1529, 0
    %1557 = vmatprep.subr.bf16.mxu0 0
    %1558 = vmatpush1.bf16.msra.mxu0 %v1546
    %1559 = vmatprep.subr.bf16.mxu0 0
    %1560 = vmatpush1.bf16.msra.mxu0 %v1547
    %1561 = vmatprep.subr.bf16.mxu0 0
    %1562 = vmatpush1.bf16.msra.mxu0 %v1548
    %1563 = vmatprep.subr.bf16.mxu0 0
    %1564 = vmatpush1.bf16.msra.mxu0 %v1549
    %1565 = vmatprep.subr.bf16.mxu0 0
    %1566 = vmatpush1.bf16.msra.mxu0 0
    %1567 = vmatprep.subr.bf16.mxu0 0
    %1568 = vmatpush1.bf16.msra.mxu0 0
    %1569 = vmatprep.subr.bf16.mxu0 0
    %1570 = vmatpush1.bf16.msra.mxu0 0
    %1571 = vmatprep.subr.bf16.mxu0 0
    %1572 = vmatpush1.bf16.msra.mxu0 0
    %1573 = vmatprep.subr.bf16.mxu0 0
    %1574 = vmatpush1.bf16.msra.mxu0 0
    %1575 = vmatprep.subr.bf16.mxu0 0
    %1576 = vmatpush1.bf16.msra.mxu0 0
    %1577 = vmatprep.subr.bf16.mxu0 0
    %1578 = vmatpush1.bf16.msra.mxu0 0
    %1579 = vmatprep.subr.bf16.mxu0 0
    %1580 = vmatpush1.bf16.msra.mxu0 0
    %1581 = vmatprep.subr.bf16.mxu0 0
    %1582 = vmatpush1.bf16.msra.mxu0 0
    %1583 = vmatprep.subr.bf16.mxu0 0
    %1584 = vmatpush1.bf16.msra.mxu0 0
    %1585 = vmatprep.subr.bf16.mxu0 0
    %1586 = vmatpush1.bf16.msra.mxu0 0
    %1587 = vmatprep.subr.bf16.mxu0 0
    %1588 = vmatpush1.bf16.msra.mxu0 0
    %1589 = vmatprep.mubr.bf16.mxu0 0
    %1590 = vmatmul.mubr.bf16.gmra.mrb[0].mxu0 %v1555
    %v1591 = vpop.f32.mrb[0].mxu0
    %v1592 = vadd.f32 0.0, %v1591
    %v1593 = vpop.f32.mrb[0].mxu0
    %v1594 = vpop.f32.mrb[0].mxu0
    %v1595 = vpop.f32.mrb[0].mxu0
    %1596 = vdwg.mxu0
    %v1597 = vadd.f32 %v1188, %v1592
    %v1598 = vmul.f32 %v1597, %v1597
    %v1599 = vsel %vm59, %v1598, 0.0
    %1600 = vadd.xlane.f32.xlu0 %v1599
    %v1601 = vpop.xlane.xlu0 %1600
    %v1602 = vadd.f32 %v1601, 1e-06
    %v1603 = vrsqrt.pop %v1602
    %v1604 = vmul.f32 %v1602, %v1603
    %vm1605 = vcmp.eq.f32.partialorder %v1602, inf
    %v1606 = vsel %vm1605, %v1602, %v1604
    %vm1607 = vcmp.eq.f32.partialorder %v1602, 0.0
    %v1608 = vand.u32 %v1602, 2147483648
    %v1609 = vsel %vm1607, %v1608, %v1606
    %v1610 = vlaneseq
    %v1611 = vshrl.u32 %v1610, 7
    %v1612 = vsub.s32 2, %v1611
    %v1613 = vrot.slane %v1191, %v1612
    %v1614 = vmul.f32 %v1613, %v1597
    %v1615 = vrcp.pop %v1609
    %v1616 = vmul.f32 %v1614, %v1615
    %v1617 = vpack.c.bf16 %v1616, %v1616
    %v1618 = vlaneseq
    %v1619 = vshrl.u32 %v1618, 7
    %v1620 = vsub.s32 3, %v1619
    %v1621 = vrot.slane %v1191, %v1620
    %v1622 = vunpack.c.h.b16 %v1195
    %v1623 = vunpack.c.h.b16 %v1198
    %v1624 = vunpack.c.h.b16 %v1201
    %v1625 = vunpack.c.h.b16 %v1204
    %v1626 = vpack.c.b16 %v1623, %v1622
    %v1627 = vpack.c.b16 %v1625, %v1624
    %v1631 = vsel %vm131, %v1617, 0
    %1633 = vmatprep.subr.bf16.mxu0 0
    %1634 = vmatpush1.bf16.msra.mxu0 %v1626
    %1635 = vmatprep.subr.bf16.mxu0 0
    %1636 = vmatpush1.bf16.msra.mxu0 %v1627
    %1637 = vmatprep.subr.bf16.mxu0 0
    %1638 = vmatpush1.bf16.msra.mxu0 0
    %1639 = vmatprep.subr.bf16.mxu0 0
    %1640 = vmatpush1.bf16.msra.mxu0 0
    %1641 = vmatprep.subr.bf16.mxu0 0
    %1642 = vmatpush1.bf16.msra.mxu0 0
    %1643 = vmatprep.subr.bf16.mxu0 0
    %1644 = vmatpush1.bf16.msra.mxu0 0
    %1645 = vmatprep.subr.bf16.mxu0 0
    %1646 = vmatpush1.bf16.msra.mxu0 0
    %1647 = vmatprep.subr.bf16.mxu0 0
    %1648 = vmatpush1.bf16.msra.mxu0 0
    %1649 = vmatprep.subr.bf16.mxu0 0
    %1650 = vmatpush1.bf16.msra.mxu0 0
    %1651 = vmatprep.subr.bf16.mxu0 0
    %1652 = vmatpush1.bf16.msra.mxu0 0
    %1653 = vmatprep.subr.bf16.mxu0 0
    %1654 = vmatpush1.bf16.msra.mxu0 0
    %1655 = vmatprep.subr.bf16.mxu0 0
    %1656 = vmatpush1.bf16.msra.mxu0 0
    %1657 = vmatprep.subr.bf16.mxu0 0
    %1658 = vmatpush1.bf16.msra.mxu0 0
    %1659 = vmatprep.subr.bf16.mxu0 0
    %1660 = vmatpush1.bf16.msra.mxu0 0
    %1661 = vmatprep.subr.bf16.mxu0 0
    %1662 = vmatpush1.bf16.msra.mxu0 0
    %1663 = vmatprep.subr.bf16.mxu0 0
    %1664 = vmatpush1.bf16.msra.mxu0 0
    %1665 = vmatprep.mubr.bf16.mxu0 0
    %1666 = vmatmul.mubr.bf16.gmra.mrb[0].mxu0 %v1631
    %v1667 = vpop.f32.mrb[0].mxu0
    %v1668 = vadd.f32 %v1621, %v1667
    %v1669 = vpop.f32.mrb[0].mxu0
    %v1670 = vpop.f32.mrb[0].mxu0
    %v1671 = vpop.f32.mrb[0].mxu0
    %1672 = vdwg.mxu0
    %v1673 = vmul.f32 %v1668, 0.5
    %v1674 = vmul.f32 %v1668, 0.70710677
    %v1675 = verf.f32.pop %v1674
    %v1676 = vadd.f32 %v1675, 1.0
    %v1677 = vmul.f32 %v1673, %v1676
    %v1678 = vpack.c.bf16 %v1677, %v1677
    %v1679 = vlaneseq
    %v1680 = vshrl.u32 %v1679, 7
    %v1681 = vsub.s32 4, %v1680
    %v1682 = vrot.slane %v1191, %v1681
    %v1699 = vunpack.c.l.b16 %v1214
    %v1700 = vunpack.c.l.b16 %v1215
    %v1701 = vunpack.c.l.b16 %v1216
    %v1702 = vunpack.c.l.b16 %v1217
    %v1703 = vunpack.c.l.b16 %v1218
    %v1704 = vunpack.c.l.b16 %v1219
    %v1705 = vunpack.c.l.b16 %v1220
    %v1706 = vunpack.c.l.b16 %v1221
    %v1707 = vunpack.c.l.b16 %v1222
    %v1708 = vunpack.c.l.b16 %v1223
    %v1709 = vunpack.c.l.b16 %v1224
    %v1710 = vunpack.c.l.b16 %v1225
    %v1711 = vunpack.c.l.b16 %v1226
    %v1712 = vunpack.c.l.b16 %v1227
    %v1713 = vunpack.c.l.b16 %v1228
    %v1714 = vunpack.c.l.b16 %v1229
    %v1715 = vpack.c.b16 %v1700, %v1699
    %v1716 = vpack.c.b16 %v1702, %v1701
    %v1717 = vpack.c.b16 %v1704, %v1703
    %v1718 = vpack.c.b16 %v1706, %v1705
    %v1719 = vpack.c.b16 %v1708, %v1707
    %v1720 = vpack.c.b16 %v1710, %v1709
    %v1721 = vpack.c.b16 %v1712, %v1711
    %v1722 = vpack.c.b16 %v1714, %v1713
    %1731 = vmatprep.subr.bf16.mxu0 0
    %1732 = vmatpush1.bf16.msra.mxu0 %v1715
    %1733 = vmatprep.subr.bf16.mxu0 0
    %1734 = vmatpush1.bf16.msra.mxu0 %v1716
    %1735 = vmatprep.subr.bf16.mxu0 0
    %1736 = vmatpush1.bf16.msra.mxu0 %v1717
    %1737 = vmatprep.subr.bf16.mxu0 0
    %1738 = vmatpush1.bf16.msra.mxu0 %v1718
    %1739 = vmatprep.subr.bf16.mxu0 0
    %1740 = vmatpush1.bf16.msra.mxu0 %v1719
    %1741 = vmatprep.subr.bf16.mxu0 0
    %1742 = vmatpush1.bf16.msra.mxu0 %v1720
    %1743 = vmatprep.subr.bf16.mxu0 0
    %1744 = vmatpush1.bf16.msra.mxu0 %v1721
    %1745 = vmatprep.subr.bf16.mxu0 0
    %1746 = vmatpush1.bf16.msra.mxu0 %v1722
    %1747 = vmatprep.subr.bf16.mxu0 0
    %1748 = vmatpush1.bf16.msra.mxu0 0
    %1749 = vmatprep.subr.bf16.mxu0 0
    %1750 = vmatpush1.bf16.msra.mxu0 0
    %1751 = vmatprep.subr.bf16.mxu0 0
    %1752 = vmatpush1.bf16.msra.mxu0 0
    %1753 = vmatprep.subr.bf16.mxu0 0
    %1754 = vmatpush1.bf16.msra.mxu0 0
    %1755 = vmatprep.subr.bf16.mxu0 0
    %1756 = vmatpush1.bf16.msra.mxu0 0
    %1757 = vmatprep.subr.bf16.mxu0 0
    %1758 = vmatpush1.bf16.msra.mxu0 0
    %1759 = vmatprep.subr.bf16.mxu0 0
    %1760 = vmatpush1.bf16.msra.mxu0 0
    %1761 = vmatprep.subr.bf16.mxu0 0
    %1762 = vmatpush1.bf16.msra.mxu0 0
    %1763 = vmatprep.mubr.bf16.mxu0 0
    %1764 = vmatmul.mubr.bf16.gmra.mrb[0].mxu0 %v1678
    %v1765 = vpop.f32.mrb[0].mxu0
    %v1766 = vadd.f32 %v1682, %v1765
    %v1767 = vpop.f32.mrb[0].mxu0
    %v1768 = vpop.f32.mrb[0].mxu0
    %v1769 = vpop.f32.mrb[0].mxu0
    %1770 = vdwg.mxu0
    %v1771 = vadd.f32 %v1597, %v1766
    %s1772 = scalar_lea.vmem %s1, 48
    %v1773 = vld [vmem:[%s1772] sm:$0xff]
    %v1774 = vld [vmem:[%s1772 + $0x8] sm:$0xff]
    %s1775 = scalar_lea.vmem %s2, 288
    %v1776 = vld [vmem:[%s1775] sm:$0xff]
    %v1777 = vld [vmem:[%s1775 + $0x8] sm:$0xff]
    %v1778 = vld [vmem:[%s1775 + $0x10] sm:$0xff]
    %v1779 = vld [vmem:[%s1775 + $0x18] sm:$0xff]
    %v1780 = vld [vmem:[%s1775 + $0x20] sm:$0xff]
    %v1781 = vld [vmem:[%s1775 + $0x28] sm:$0xff]
    %v1782 = vld [vmem:[%s1775 + $0x30] sm:$0xff]
    %v1783 = vld [vmem:[%s1775 + $0x38] sm:$0xff]
    %v1784 = vld [vmem:[%s1775 + $0x40] sm:$0xff]
    %v1785 = vld [vmem:[%s1775 + $0x48] sm:$0xff]
    %v1786 = vld [vmem:[%s1775 + $0x50] sm:$0xff]
    %v1787 = vld [vmem:[%s1775 + $0x58] sm:$0xff]
    %s1788 = scalar_lea.vmem %s3, 288
    %v1789 = vld [vmem:[%s1788] sm:$0xf]
    %v1790 = vld [vmem:[%s1788 + $0x4] sm:$0xf]
    %v1791 = vld [vmem:[%s1788 + $0x8] sm:$0xf]
    %v1792 = vld [vmem:[%s1788 + $0xc] sm:$0xf]
    %v1793 = vld [vmem:[%s1788 + $0x10] sm:$0xf]
    %v1794 = vld [vmem:[%s1788 + $0x14] sm:$0xf]
    %v1795 = vld [vmem:[%s1788 + $0x18] sm:$0xf]
    %v1796 = vld [vmem:[%s1788 + $0x1c] sm:$0xf]
    %v1797 = vld [vmem:[%s1788 + $0x20] sm:$0xf]
    %v1798 = vld [vmem:[%s1788 + $0x24] sm:$0xf]
    %v1799 = vld [vmem:[%s1788 + $0x28] sm:$0xf]
    %v1800 = vld [vmem:[%s1788 + $0x2c] sm:$0xf]
    %v1801 = vld [vmem:[%s1788 + $0x30] sm:$0xf]
    %v1802 = vld [vmem:[%s1788 + $0x34] sm:$0xf]
    %v1803 = vld [vmem:[%s1788 + $0x38] sm:$0xf]
    %v1804 = vld [vmem:[%s1788 + $0x3c] sm:$0xf]
    %v1805 = vld [vmem:[%s1788 + $0x40] sm:$0xf]
    %v1806 = vld [vmem:[%s1788 + $0x44] sm:$0xf]
    %v1807 = vld [vmem:[%s1788 + $0x48] sm:$0xf]
    %v1808 = vld [vmem:[%s1788 + $0x4c] sm:$0xf]
    %v1809 = vld [vmem:[%s1788 + $0x50] sm:$0xf]
    %v1810 = vld [vmem:[%s1788 + $0x54] sm:$0xf]
    %v1811 = vld [vmem:[%s1788 + $0x58] sm:$0xf]
    %v1812 = vld [vmem:[%s1788 + $0x5c] sm:$0xf]
    %v1813 = vmul.f32 %v1771, %v1771
    %v1814 = vsel %vm59, %v1813, 0.0
    %1815 = vadd.xlane.f32.xlu0 %v1814
    %v1816 = vpop.xlane.xlu0 %1815
    %v1817 = vadd.f32 %v1816, 1e-06
    %v1818 = vrsqrt.pop %v1817
    %v1819 = vmul.f32 %v1817, %v1818
    %vm1820 = vcmp.eq.f32.partialorder %v1817, inf
    %v1821 = vsel %vm1820, %v1817, %v1819
    %vm1822 = vcmp.eq.f32.partialorder %v1817, 0.0
    %v1823 = vand.u32 %v1817, 2147483648
    %v1824 = vsel %vm1822, %v1823, %v1821
    %v1825 = vlaneseq
    %v1826 = vshrl.u32 %v1825, 7
    %v1827 = vsub.s32 0, %v1826
    %v1828 = vrot.slane %v1773, %v1827
    %v1829 = vmul.f32 %v1828, %v1771
    %v1830 = vrcp.pop %v1824
    %v1831 = vmul.f32 %v1829, %v1830
    %v1832 = vpack.c.bf16 %v1831, %v1831
    %v1845 = vunpack.c.l.b16 %v1776
    %v1846 = vunpack.c.h.b16 %v1776
    %v1847 = vunpack.c.l.b16 %v1777
    %v1848 = vunpack.c.h.b16 %v1777
    %v1849 = vunpack.c.l.b16 %v1778
    %v1850 = vunpack.c.l.b16 %v1779
    %v1851 = vunpack.c.h.b16 %v1779
    %v1852 = vunpack.c.l.b16 %v1780
    %v1853 = vunpack.c.h.b16 %v1780
    %v1854 = vunpack.c.l.b16 %v1781
    %v1855 = vunpack.c.l.b16 %v1782
    %v1856 = vunpack.c.h.b16 %v1782
    %v1857 = vunpack.c.l.b16 %v1783
    %v1858 = vunpack.c.h.b16 %v1783
    %v1859 = vunpack.c.l.b16 %v1784
    %v1860 = vunpack.c.l.b16 %v1785
    %v1861 = vunpack.c.h.b16 %v1785
    %v1862 = vunpack.c.l.b16 %v1786
    %v1863 = vunpack.c.h.b16 %v1786
    %v1864 = vunpack.c.l.b16 %v1787
    %v1865 = vpack.c.b16 %v1850, %v1845
    %v1866 = vpack.c.b16 %v1851, %v1846
    %v1867 = vpack.c.b16 %v1852, %v1847
    %v1868 = vpack.c.b16 %v1853, %v1848
    %v1869 = vpack.c.b16 %v1854, %v1849
    %v1870 = vpack.c.b16 %v1860, %v1855
    %v1871 = vpack.c.b16 %v1861, %v1856
    %v1872 = vpack.c.b16 %v1862, %v1857
    %v1873 = vpack.c.b16 %v1863, %v1858
    %v1874 = vpack.c.b16 %v1864, %v1859
    %v1886 = vsel %vm131, %v1832, 0
    %1888 = vmatprep.subr.bf16.mxu0 %v1866
    %1889 = vmatpush1.bf16.msra.mxu0 %v1865
    %1890 = vmatprep.subr.bf16.mxu0 %v1871
    %1891 = vmatpush1.bf16.msra.mxu0 %v1870
    %1892 = vmatprep.subr.bf16.mxu0 0
    %1893 = vmatpush1.bf16.msra.mxu0 0
    %1894 = vmatprep.subr.bf16.mxu0 0
    %1895 = vmatpush1.bf16.msra.mxu0 0
    %1896 = vmatprep.subr.bf16.mxu0 0
    %1897 = vmatpush1.bf16.msra.mxu0 0
    %1898 = vmatprep.subr.bf16.mxu0 0
    %1899 = vmatpush1.bf16.msra.mxu0 0
    %1900 = vmatprep.subr.bf16.mxu0 0
    %1901 = vmatpush1.bf16.msra.mxu0 0
    %1902 = vmatprep.subr.bf16.mxu0 0
    %1903 = vmatpush1.bf16.msra.mxu0 0
    %1904 = vmatprep.subr.bf16.mxu0 0
    %1905 = vmatpush1.bf16.msra.mxu0 0
    %1906 = vmatprep.subr.bf16.mxu0 0
    %1907 = vmatpush1.bf16.msra.mxu0 0
    %1908 = vmatprep.subr.bf16.mxu0 0
    %1909 = vmatpush1.bf16.msra.mxu0 0
    %1910 = vmatprep.subr.bf16.mxu0 0
    %1911 = vmatpush1.bf16.msra.mxu0 0
    %1912 = vmatprep.subr.bf16.mxu0 0
    %1913 = vmatpush1.bf16.msra.mxu0 0
    %1914 = vmatprep.subr.bf16.mxu0 0
    %1915 = vmatpush1.bf16.msra.mxu0 0
    %1916 = vmatprep.subr.bf16.mxu0 0
    %1917 = vmatpush1.bf16.msra.mxu0 0
    %1918 = vmatprep.subr.bf16.mxu0 0
    %1919 = vmatpush1.bf16.msra.mxu0 0
    %1920 = vmatprep.mubr.bf16.mxu0 0
    %1921 = vmatmul.mubr.bf16.gmra.mrb[0].mxu0 %v1886
    %v1922 = vpop.f32.mrb[0].mxu0
    %v1923 = vadd.f32 0.0, %v1922
    %v1924 = vpop.f32.mrb[0].mxu0
    %v1925 = vadd.f32 0.0, %v1924
    %v1926 = vpop.f32.mrb[0].mxu0
    %v1927 = vpop.f32.mrb[0].mxu0
    %1928 = vdwg.mxu0
    %1929 = vmatprep.subr.bf16.mxu0 %v1868
    %1930 = vmatpush1.bf16.msra.mxu0 %v1867
    %1931 = vmatprep.subr.bf16.mxu0 %v1873
    %1932 = vmatpush1.bf16.msra.mxu0 %v1872
    %1933 = vmatprep.subr.bf16.mxu0 0
    %1934 = vmatpush1.bf16.msra.mxu0 0
    %1935 = vmatprep.subr.bf16.mxu0 0
    %1936 = vmatpush1.bf16.msra.mxu0 0
    %1937 = vmatprep.subr.bf16.mxu0 0
    %1938 = vmatpush1.bf16.msra.mxu0 0
    %1939 = vmatprep.subr.bf16.mxu0 0
    %1940 = vmatpush1.bf16.msra.mxu0 0
    %1941 = vmatprep.subr.bf16.mxu0 0
    %1942 = vmatpush1.bf16.msra.mxu0 0
    %1943 = vmatprep.subr.bf16.mxu0 0
    %1944 = vmatpush1.bf16.msra.mxu0 0
    %1945 = vmatprep.subr.bf16.mxu0 0
    %1946 = vmatpush1.bf16.msra.mxu0 0
    %1947 = vmatprep.subr.bf16.mxu0 0
    %1948 = vmatpush1.bf16.msra.mxu0 0
    %1949 = vmatprep.subr.bf16.mxu0 0
    %1950 = vmatpush1.bf16.msra.mxu0 0
    %1951 = vmatprep.subr.bf16.mxu0 0
    %1952 = vmatpush1.bf16.msra.mxu0 0
    %1953 = vmatprep.subr.bf16.mxu0 0
    %1954 = vmatpush1.bf16.msra.mxu0 0
    %1955 = vmatprep.subr.bf16.mxu0 0
    %1956 = vmatpush1.bf16.msra.mxu0 0
    %1957 = vmatprep.subr.bf16.mxu0 0
    %1958 = vmatpush1.bf16.msra.mxu0 0
    %1959 = vmatprep.subr.bf16.mxu0 0
    %1960 = vmatpush1.bf16.msra.mxu0 0
    %1961 = vmatprep.mubr.bf16.mxu0 0
    %1962 = vmatmul.mubr.bf16.gmra.mrb[0].mxu0 %v1886
    %v1963 = vpop.f32.mrb[0].mxu0
    %v1964 = vadd.f32 0.0, %v1963
    %v1965 = vpop.f32.mrb[0].mxu0
    %v1966 = vadd.f32 0.0, %v1965
    %v1967 = vpop.f32.mrb[0].mxu0
    %v1968 = vpop.f32.mrb[0].mxu0
    %1969 = vdwg.mxu0
    %1970 = vmatprep.subr.bf16.mxu0 0
    %1971 = vmatpush1.bf16.msra.mxu0 %v1869
    %1972 = vmatprep.subr.bf16.mxu0 0
    %1973 = vmatpush1.bf16.msra.mxu0 %v1874
    %1974 = vmatprep.subr.bf16.mxu0 0
    %1975 = vmatpush1.bf16.msra.mxu0 0
    %1976 = vmatprep.subr.bf16.mxu0 0
    %1977 = vmatpush1.bf16.msra.mxu0 0
    %1978 = vmatprep.subr.bf16.mxu0 0
    %1979 = vmatpush1.bf16.msra.mxu0 0
    %1980 = vmatprep.subr.bf16.mxu0 0
    %1981 = vmatpush1.bf16.msra.mxu0 0
    %1982 = vmatprep.subr.bf16.mxu0 0
    %1983 = vmatpush1.bf16.msra.mxu0 0
    %1984 = vmatprep.subr.bf16.mxu0 0
    %1985 = vmatpush1.bf16.msra.mxu0 0
    %1986 = vmatprep.subr.bf16.mxu0 0
    %1987 = vmatpush1.bf16.msra.mxu0 0
    %1988 = vmatprep.subr.bf16.mxu0 0
    %1989 = vmatpush1.bf16.msra.mxu0 0
    %1990 = vmatprep.subr.bf16.mxu0 0
    %1991 = vmatpush1.bf16.msra.mxu0 0
    %1992 = vmatprep.subr.bf16.mxu0 0
    %1993 = vmatpush1.bf16.msra.mxu0 0
    %1994 = vmatprep.subr.bf16.mxu0 0
    %1995 = vmatpush1.bf16.msra.mxu0 0
    %1996 = vmatprep.subr.bf16.mxu0 0
    %1997 = vmatpush1.bf16.msra.mxu0 0
    %1998 = vmatprep.subr.bf16.mxu0 0
    %1999 = vmatpush1.bf16.msra.mxu0 0
    %2000 = vmatprep.subr.bf16.mxu0 0
    %2001 = vmatpush1.bf16.msra.mxu0 0
    %2002 = vmatprep.mubr.bf16.mxu0 0
    %2003 = vmatmul.mubr.bf16.gmra.mrb[0].mxu0 %v1886
    %v2004 = vpop.f32.mrb[0].mxu0
    %v2005 = vadd.f32 0.0, %v2004
    %v2006 = vpop.f32.mrb[0].mxu0
    %v2007 = vpop.f32.mrb[0].mxu0
    %v2008 = vpop.f32.mrb[0].mxu0
    %2009 = vdwg.mxu0
    %v2010 = vlaneseq
    %v2011 = vshrl.u32 %v2010, 7
    %v2012 = vsub.s32 1, %v2011
    %v2013 = vrot.slane %v1773, %v2012
    %v2014 = vmul.f32 %v1925, %v2013
    %v2015 = vlaneseq
    %v2016 = vshrl.u32 %v2015, 7
    %v2017 = vsub.s32 2, %v2016
    %v2018 = vrot.slane %v1773, %v2017
    %v2019 = vadd.f32 %v2014, %v2018
    %v2020 = vxor.u32 %v2019, 2147483648
    %v2021 = vmul.f32 %v2020, 1.442695
    %v2022 = vpow.pop %v2021
    %v2023 = vadd.f32 %v2022, 1.0
    %v2024 = vrcp.pop %v2023
    %v2025 = vmul.f32 1.0, %v2024
    %v2026 = vmul.f32 %v2019, %v2025
    %v2027 = vlaneseq
    %v2028 = vshrl.u32 %v2027, 7
    %v2029 = vsub.s32 3, %v2028
    %v2030 = vrot.slane %v1773, %v2029
    %v2031 = vmul.f32 %v1964, %v2030
    %v2032 = vlaneseq
    %v2033 = vshrl.u32 %v2032, 7
    %v2034 = vsub.s32 4, %v2033
    %v2035 = vrot.slane %v1773, %v2034
    %v2036 = vadd.f32 %v2031, %v2035
    %v2037 = vxor.u32 %v2036, 2147483648
    %v2038 = vmul.f32 %v2037, 1.442695
    %v2039 = vpow.pop %v2038
    %v2040 = vadd.f32 %v2039, 1.0
    %v2041 = vrcp.pop %v2040
    %v2042 = vmul.f32 1.0, %v2041
    %v2043 = vmul.f32 %v2036, %v2042
    %v2044 = vlaneseq
    %v2045 = vshrl.u32 %v2044, 7
    %v2046 = vsub.s32 5, %v2045
    %v2047 = vrot.slane %v1773, %v2046
    %v2048 = vmul.f32 %v1966, %v2047
    %v2049 = vlaneseq
    %v2050 = vshrl.u32 %v2049, 7
    %v2051 = vsub.s32 6, %v2050
    %v2052 = vrot.slane %v1773, %v2051
    %v2053 = vadd.f32 %v2048, %v2052
    %v2054 = vxor.u32 %v2053, 2147483648
    %v2055 = vmul.f32 %v2054, 1.442695
    %v2056 = vpow.pop %v2055
    %v2057 = vadd.f32 %v2056, 1.0
    %v2058 = vrcp.pop %v2057
    %v2059 = vmul.f32 1.0, %v2058
    %v2060 = vmul.f32 %v2053, %v2059
    %v2061 = vlaneseq
    %v2062 = vshrl.u32 %v2061, 7
    %v2063 = vsub.s32 7, %v2062
    %v2064 = vrot.slane %v1773, %v2063
    %v2065 = vadd.f32 %v2005, %v2064
    %vm2066 = vcmp.gt.f32.partialorder %v2065, 20.0
    %v2067 = vmin.f32 %v2065, 20.0
    %v2068 = vmul.f32 %v2067, 1.442695
    %v2069 = vpow.pop %v2068
    %v2070 = vadd.f32 %v2069, 1.0
    %v2071 = vlog2.pop %v2070
    %v2072 = vmul.f32 %v2071, 0.6931472
    %v2073 = vmul.f32 -0.5, %v2069
    %v2074 = vadd.f32 %v2073, 1.0
    %v2075 = vmul.f32 %v2074, %v2069
    %v2076 = vand.u32 2147483647, %v2069
    %vm2077 = vcmp.lt.f32.partialorder %v2076, 0.0004427343
    %v2078 = vsel %vm2077, %v2075, %v2072
    %v2079 = vsel %vm2066, %v2065, %v2078
    %v2080 = vmul.f32 %v2043, %v2060
    %v2081 = vsel %vm328, %v2080, 0.0
    %2082 = vadd.xlane.f32.xlu0 %v2081
    %v2083 = vpop.xlane.xlu0 %2082
    %v2084 = vmul.f32 %v2079, %v2083
    %v2085 = vlaneseq
    %v2086 = vshrl.u32 %v2085, 7
    %v2087 = vsub.s32 0, %v2086
    %v2088 = vrot.slane %v1774, %v2087
    %v2089 = vadd.f32 %v2084, %v2088
    %v2090 = vmul.f32 %v2026, %v2089
    %v2091 = vxor.u32 %v1923, 2147483648
    %v2092 = vmul.f32 %v2091, 1.442695
    %v2093 = vpow.pop %v2092
    %v2094 = vadd.f32 %v2093, 1.0
    %v2095 = vrcp.pop %v2094
    %v2096 = vmul.f32 1.0, %v2095
    %v2097 = vmul.f32 %v1923, %v2096
    %v2098 = vmul.f32 %v2090, %v2097
    %v2099 = vmul.f32 %v2098, %v2098
    %v2100 = vsel %vm348, %v2099, 0.0
    %2101 = vadd.xlane.f32.xlu0 %v2100
    %v2102 = vpop.xlane.xlu0 %2101
    %v2103 = vmul.f32 %v2102, %v352
    %v2104 = vadd.f32 %v2103, 1e-05
    %v2105 = vrsqrt.pop %v2104
    %v2106 = vmul.f32 %v2098, %v2105
    %v2107 = vlaneseq
    %v2108 = vshrl.u32 %v2107, 7
    %v2109 = vsub.s32 1, %v2108
    %v2110 = vrot.slane %v1774, %v2109
    %v2111 = vmul.f32 %v2106, %v2110
    %v2112 = vpack.c.bf16 %v2111, %v2111
    %v2121 = vunpack.c.l.b16 %v1789
    %v2122 = vunpack.c.l.b16 %v1790
    %v2123 = vunpack.c.l.b16 %v1791
    %v2124 = vunpack.c.l.b16 %v1792
    %v2125 = vunpack.c.l.b16 %v1793
    %v2126 = vunpack.c.l.b16 %v1794
    %v2127 = vunpack.c.l.b16 %v1795
    %v2128 = vunpack.c.l.b16 %v1796
    %v2129 = vpack.c.b16 %v2122, %v2121
    %v2130 = vpack.c.b16 %v2124, %v2123
    %v2131 = vpack.c.b16 %v2126, %v2125
    %v2132 = vpack.c.b16 %v2128, %v2127
    %v2138 = vsel %vm387, %v2112, 0
    %2140 = vmatprep.subr.bf16.mxu0 0
    %2141 = vmatpush1.bf16.msra.mxu0 %v2129
    %2142 = vmatprep.subr.bf16.mxu0 0
    %2143 = vmatpush1.bf16.msra.mxu0 %v2130
    %2144 = vmatprep.subr.bf16.mxu0 0
    %2145 = vmatpush1.bf16.msra.mxu0 %v2131
    %2146 = vmatprep.subr.bf16.mxu0 0
    %2147 = vmatpush1.bf16.msra.mxu0 %v2132
    %2148 = vmatprep.subr.bf16.mxu0 0
    %2149 = vmatpush1.bf16.msra.mxu0 0
    %2150 = vmatprep.subr.bf16.mxu0 0
    %2151 = vmatpush1.bf16.msra.mxu0 0
    %2152 = vmatprep.subr.bf16.mxu0 0
    %2153 = vmatpush1.bf16.msra.mxu0 0
    %2154 = vmatprep.subr.bf16.mxu0 0
    %2155 = vmatpush1.bf16.msra.mxu0 0
    %2156 = vmatprep.subr.bf16.mxu0 0
    %2157 = vmatpush1.bf16.msra.mxu0 0
    %2158 = vmatprep.subr.bf16.mxu0 0
    %2159 = vmatpush1.bf16.msra.mxu0 0
    %2160 = vmatprep.subr.bf16.mxu0 0
    %2161 = vmatpush1.bf16.msra.mxu0 0
    %2162 = vmatprep.subr.bf16.mxu0 0
    %2163 = vmatpush1.bf16.msra.mxu0 0
    %2164 = vmatprep.subr.bf16.mxu0 0
    %2165 = vmatpush1.bf16.msra.mxu0 0
    %2166 = vmatprep.subr.bf16.mxu0 0
    %2167 = vmatpush1.bf16.msra.mxu0 0
    %2168 = vmatprep.subr.bf16.mxu0 0
    %2169 = vmatpush1.bf16.msra.mxu0 0
    %2170 = vmatprep.subr.bf16.mxu0 0
    %2171 = vmatpush1.bf16.msra.mxu0 0
    %2172 = vmatprep.mubr.bf16.mxu0 0
    %2173 = vmatmul.mubr.bf16.gmra.mrb[0].mxu0 %v2138
    %v2174 = vpop.f32.mrb[0].mxu0
    %v2175 = vadd.f32 0.0, %v2174
    %v2176 = vpop.f32.mrb[0].mxu0
    %v2177 = vpop.f32.mrb[0].mxu0
    %v2178 = vpop.f32.mrb[0].mxu0
    %2179 = vdwg.mxu0
    %v2180 = vadd.f32 %v1771, %v2175
    %v2181 = vmul.f32 %v2180, %v2180
    %v2182 = vsel %vm59, %v2181, 0.0
    %2183 = vadd.xlane.f32.xlu0 %v2182
    %v2184 = vpop.xlane.xlu0 %2183
    %v2185 = vadd.f32 %v2184, 1e-06
    %v2186 = vrsqrt.pop %v2185
    %v2187 = vmul.f32 %v2185, %v2186
    %vm2188 = vcmp.eq.f32.partialorder %v2185, inf
    %v2189 = vsel %vm2188, %v2185, %v2187
    %vm2190 = vcmp.eq.f32.partialorder %v2185, 0.0
    %v2191 = vand.u32 %v2185, 2147483648
    %v2192 = vsel %vm2190, %v2191, %v2189
    %v2193 = vlaneseq
    %v2194 = vshrl.u32 %v2193, 7
    %v2195 = vsub.s32 2, %v2194
    %v2196 = vrot.slane %v1774, %v2195
    %v2197 = vmul.f32 %v2196, %v2180
    %v2198 = vrcp.pop %v2192
    %v2199 = vmul.f32 %v2197, %v2198
    %v2200 = vpack.c.bf16 %v2199, %v2199
    %v2201 = vlaneseq
    %v2202 = vshrl.u32 %v2201, 7
    %v2203 = vsub.s32 3, %v2202
    %v2204 = vrot.slane %v1774, %v2203
    %v2205 = vunpack.c.h.b16 %v1778
    %v2206 = vunpack.c.h.b16 %v1781
    %v2207 = vunpack.c.h.b16 %v1784
    %v2208 = vunpack.c.h.b16 %v1787
    %v2209 = vpack.c.b16 %v2206, %v2205
    %v2210 = vpack.c.b16 %v2208, %v2207
    %v2214 = vsel %vm131, %v2200, 0
    %2216 = vmatprep.subr.bf16.mxu0 0
    %2217 = vmatpush1.bf16.msra.mxu0 %v2209
    %2218 = vmatprep.subr.bf16.mxu0 0
    %2219 = vmatpush1.bf16.msra.mxu0 %v2210
    %2220 = vmatprep.subr.bf16.mxu0 0
    %2221 = vmatpush1.bf16.msra.mxu0 0
    %2222 = vmatprep.subr.bf16.mxu0 0
    %2223 = vmatpush1.bf16.msra.mxu0 0
    %2224 = vmatprep.subr.bf16.mxu0 0
    %2225 = vmatpush1.bf16.msra.mxu0 0
    %2226 = vmatprep.subr.bf16.mxu0 0
    %2227 = vmatpush1.bf16.msra.mxu0 0
    %2228 = vmatprep.subr.bf16.mxu0 0
    %2229 = vmatpush1.bf16.msra.mxu0 0
    %2230 = vmatprep.subr.bf16.mxu0 0
    %2231 = vmatpush1.bf16.msra.mxu0 0
    %2232 = vmatprep.subr.bf16.mxu0 0
    %2233 = vmatpush1.bf16.msra.mxu0 0
    %2234 = vmatprep.subr.bf16.mxu0 0
    %2235 = vmatpush1.bf16.msra.mxu0 0
    %2236 = vmatprep.subr.bf16.mxu0 0
    %2237 = vmatpush1.bf16.msra.mxu0 0
    %2238 = vmatprep.subr.bf16.mxu0 0
    %2239 = vmatpush1.bf16.msra.mxu0 0
    %2240 = vmatprep.subr.bf16.mxu0 0
    %2241 = vmatpush1.bf16.msra.mxu0 0
    %2242 = vmatprep.subr.bf16.mxu0 0
    %2243 = vmatpush1.bf16.msra.mxu0 0
    %2244 = vmatprep.subr.bf16.mxu0 0
    %2245 = vmatpush1.bf16.msra.mxu0 0
    %2246 = vmatprep.subr.bf16.mxu0 0
    %2247 = vmatpush1.bf16.msra.mxu0 0
    %2248 = vmatprep.mubr.bf16.mxu0 0
    %2249 = vmatmul.mubr.bf16.gmra.mrb[0].mxu0 %v2214
    %v2250 = vpop.f32.mrb[0].mxu0
    %v2251 = vadd.f32 %v2204, %v2250
    %v2252 = vpop.f32.mrb[0].mxu0
    %v2253 = vpop.f32.mrb[0].mxu0
    %v2254 = vpop.f32.mrb[0].mxu0
    %2255 = vdwg.mxu0
    %v2256 = vmul.f32 %v2251, 0.5
    %v2257 = vmul.f32 %v2251, 0.70710677
    %v2258 = verf.f32.pop %v2257
    %v2259 = vadd.f32 %v2258, 1.0
    %v2260 = vmul.f32 %v2256, %v2259
    %v2261 = vpack.c.bf16 %v2260, %v2260
    %v2262 = vlaneseq
    %v2263 = vshrl.u32 %v2262, 7
    %v2264 = vsub.s32 4, %v2263
    %v2265 = vrot.slane %v1774, %v2264
    %v2282 = vunpack.c.l.b16 %v1797
    %v2283 = vunpack.c.l.b16 %v1798
    %v2284 = vunpack.c.l.b16 %v1799
    %v2285 = vunpack.c.l.b16 %v1800
    %v2286 = vunpack.c.l.b16 %v1801
    %v2287 = vunpack.c.l.b16 %v1802
    %v2288 = vunpack.c.l.b16 %v1803
    %v2289 = vunpack.c.l.b16 %v1804
    %v2290 = vunpack.c.l.b16 %v1805
    %v2291 = vunpack.c.l.b16 %v1806
    %v2292 = vunpack.c.l.b16 %v1807
    %v2293 = vunpack.c.l.b16 %v1808
    %v2294 = vunpack.c.l.b16 %v1809
    %v2295 = vunpack.c.l.b16 %v1810
    %v2296 = vunpack.c.l.b16 %v1811
    %v2297 = vunpack.c.l.b16 %v1812
    %v2298 = vpack.c.b16 %v2283, %v2282
    %v2299 = vpack.c.b16 %v2285, %v2284
    %v2300 = vpack.c.b16 %v2287, %v2286
    %v2301 = vpack.c.b16 %v2289, %v2288
    %v2302 = vpack.c.b16 %v2291, %v2290
    %v2303 = vpack.c.b16 %v2293, %v2292
    %v2304 = vpack.c.b16 %v2295, %v2294
    %v2305 = vpack.c.b16 %v2297, %v2296
    %2314 = vmatprep.subr.bf16.mxu0 0
    %2315 = vmatpush1.bf16.msra.mxu0 %v2298
    %2316 = vmatprep.subr.bf16.mxu0 0
    %2317 = vmatpush1.bf16.msra.mxu0 %v2299
    %2318 = vmatprep.subr.bf16.mxu0 0
    %2319 = vmatpush1.bf16.msra.mxu0 %v2300
    %2320 = vmatprep.subr.bf16.mxu0 0
    %2321 = vmatpush1.bf16.msra.mxu0 %v2301
    %2322 = vmatprep.subr.bf16.mxu0 0
    %2323 = vmatpush1.bf16.msra.mxu0 %v2302
    %2324 = vmatprep.subr.bf16.mxu0 0
    %2325 = vmatpush1.bf16.msra.mxu0 %v2303
    %2326 = vmatprep.subr.bf16.mxu0 0
    %2327 = vmatpush1.bf16.msra.mxu0 %v2304
    %2328 = vmatprep.subr.bf16.mxu0 0
    %2329 = vmatpush1.bf16.msra.mxu0 %v2305
    %2330 = vmatprep.subr.bf16.mxu0 0
    %2331 = vmatpush1.bf16.msra.mxu0 0
    %2332 = vmatprep.subr.bf16.mxu0 0
    %2333 = vmatpush1.bf16.msra.mxu0 0
    %2334 = vmatprep.subr.bf16.mxu0 0
    %2335 = vmatpush1.bf16.msra.mxu0 0
    %2336 = vmatprep.subr.bf16.mxu0 0
    %2337 = vmatpush1.bf16.msra.mxu0 0
    %2338 = vmatprep.subr.bf16.mxu0 0
    %2339 = vmatpush1.bf16.msra.mxu0 0
    %2340 = vmatprep.subr.bf16.mxu0 0
    %2341 = vmatpush1.bf16.msra.mxu0 0
    %2342 = vmatprep.subr.bf16.mxu0 0
    %2343 = vmatpush1.bf16.msra.mxu0 0
    %2344 = vmatprep.subr.bf16.mxu0 0
    %2345 = vmatpush1.bf16.msra.mxu0 0
    %2346 = vmatprep.mubr.bf16.mxu0 0
    %2347 = vmatmul.mubr.bf16.gmra.mrb[0].mxu0 %v2261
    %v2348 = vpop.f32.mrb[0].mxu0
    %v2349 = vadd.f32 %v2265, %v2348
    %v2350 = vpop.f32.mrb[0].mxu0
    %v2351 = vpop.f32.mrb[0].mxu0
    %v2352 = vpop.f32.mrb[0].mxu0
    %2353 = vdwg.mxu0
    %v2354 = vadd.f32 %v2180, %v2349
    %s2355 = scalar_lea.vmem %s1, 64
    %v2356 = vld [vmem:[%s2355] sm:$0xff]
    %v2357 = vld [vmem:[%s2355 + $0x8] sm:$0xff]
    %s2358 = scalar_lea.vmem %s2, 384
    %v2359 = vld [vmem:[%s2358] sm:$0xff]
    %v2360 = vld [vmem:[%s2358 + $0x8] sm:$0xff]
    %v2361 = vld [vmem:[%s2358 + $0x10] sm:$0xff]
    %v2362 = vld [vmem:[%s2358 + $0x18] sm:$0xff]
    %v2363 = vld [vmem:[%s2358 + $0x20] sm:$0xff]
    %v2364 = vld [vmem:[%s2358 + $0x28] sm:$0xff]
    %v2365 = vld [vmem:[%s2358 + $0x30] sm:$0xff]
    %v2366 = vld [vmem:[%s2358 + $0x38] sm:$0xff]
    %v2367 = vld [vmem:[%s2358 + $0x40] sm:$0xff]
    %v2368 = vld [vmem:[%s2358 + $0x48] sm:$0xff]
    %v2369 = vld [vmem:[%s2358 + $0x50] sm:$0xff]
    %v2370 = vld [vmem:[%s2358 + $0x58] sm:$0xff]
    %s2371 = scalar_lea.vmem %s3, 384
    %v2372 = vld [vmem:[%s2371] sm:$0xf]
    %v2373 = vld [vmem:[%s2371 + $0x4] sm:$0xf]
    %v2374 = vld [vmem:[%s2371 + $0x8] sm:$0xf]
    %v2375 = vld [vmem:[%s2371 + $0xc] sm:$0xf]
    %v2376 = vld [vmem:[%s2371 + $0x10] sm:$0xf]
    %v2377 = vld [vmem:[%s2371 + $0x14] sm:$0xf]
    %v2378 = vld [vmem:[%s2371 + $0x18] sm:$0xf]
    %v2379 = vld [vmem:[%s2371 + $0x1c] sm:$0xf]
    %v2380 = vld [vmem:[%s2371 + $0x20] sm:$0xf]
    %v2381 = vld [vmem:[%s2371 + $0x24] sm:$0xf]
    %v2382 = vld [vmem:[%s2371 + $0x28] sm:$0xf]
    %v2383 = vld [vmem:[%s2371 + $0x2c] sm:$0xf]
    %v2384 = vld [vmem:[%s2371 + $0x30] sm:$0xf]
    %v2385 = vld [vmem:[%s2371 + $0x34] sm:$0xf]
    %v2386 = vld [vmem:[%s2371 + $0x38] sm:$0xf]
    %v2387 = vld [vmem:[%s2371 + $0x3c] sm:$0xf]
    %v2388 = vld [vmem:[%s2371 + $0x40] sm:$0xf]
    %v2389 = vld [vmem:[%s2371 + $0x44] sm:$0xf]
    %v2390 = vld [vmem:[%s2371 + $0x48] sm:$0xf]
    %v2391 = vld [vmem:[%s2371 + $0x4c] sm:$0xf]
    %v2392 = vld [vmem:[%s2371 + $0x50] sm:$0xf]
    %v2393 = vld [vmem:[%s2371 + $0x54] sm:$0xf]
    %v2394 = vld [vmem:[%s2371 + $0x58] sm:$0xf]
    %v2395 = vld [vmem:[%s2371 + $0x5c] sm:$0xf]
    %v2396 = vmul.f32 %v2354, %v2354
    %v2397 = vsel %vm59, %v2396, 0.0
    %2398 = vadd.xlane.f32.xlu0 %v2397
    %v2399 = vpop.xlane.xlu0 %2398
    %v2400 = vadd.f32 %v2399, 1e-06
    %v2401 = vrsqrt.pop %v2400
    %v2402 = vmul.f32 %v2400, %v2401
    %vm2403 = vcmp.eq.f32.partialorder %v2400, inf
    %v2404 = vsel %vm2403, %v2400, %v2402
    %vm2405 = vcmp.eq.f32.partialorder %v2400, 0.0
    %v2406 = vand.u32 %v2400, 2147483648
    %v2407 = vsel %vm2405, %v2406, %v2404
    %v2408 = vlaneseq
    %v2409 = vshrl.u32 %v2408, 7
    %v2410 = vsub.s32 0, %v2409
    %v2411 = vrot.slane %v2356, %v2410
    %v2412 = vmul.f32 %v2411, %v2354
    %v2413 = vrcp.pop %v2407
    %v2414 = vmul.f32 %v2412, %v2413
    %v2415 = vpack.c.bf16 %v2414, %v2414
    %v2428 = vunpack.c.l.b16 %v2359
    %v2429 = vunpack.c.h.b16 %v2359
    %v2430 = vunpack.c.l.b16 %v2360
    %v2431 = vunpack.c.h.b16 %v2360
    %v2432 = vunpack.c.l.b16 %v2361
    %v2433 = vunpack.c.l.b16 %v2362
    %v2434 = vunpack.c.h.b16 %v2362
    %v2435 = vunpack.c.l.b16 %v2363
    %v2436 = vunpack.c.h.b16 %v2363
    %v2437 = vunpack.c.l.b16 %v2364
    %v2438 = vunpack.c.l.b16 %v2365
    %v2439 = vunpack.c.h.b16 %v2365
    %v2440 = vunpack.c.l.b16 %v2366
    %v2441 = vunpack.c.h.b16 %v2366
    %v2442 = vunpack.c.l.b16 %v2367
    %v2443 = vunpack.c.l.b16 %v2368
    %v2444 = vunpack.c.h.b16 %v2368
    %v2445 = vunpack.c.l.b16 %v2369
    %v2446 = vunpack.c.h.b16 %v2369
    %v2447 = vunpack.c.l.b16 %v2370
    %v2448 = vpack.c.b16 %v2433, %v2428
    %v2449 = vpack.c.b16 %v2434, %v2429
    %v2450 = vpack.c.b16 %v2435, %v2430
    %v2451 = vpack.c.b16 %v2436, %v2431
    %v2452 = vpack.c.b16 %v2437, %v2432
    %v2453 = vpack.c.b16 %v2443, %v2438
    %v2454 = vpack.c.b16 %v2444, %v2439
    %v2455 = vpack.c.b16 %v2445, %v2440
    %v2456 = vpack.c.b16 %v2446, %v2441
    %v2457 = vpack.c.b16 %v2447, %v2442
    %v2469 = vsel %vm131, %v2415, 0
    %2471 = vmatprep.subr.bf16.mxu0 %v2449
    %2472 = vmatpush1.bf16.msra.mxu0 %v2448
    %2473 = vmatprep.subr.bf16.mxu0 %v2454
    %2474 = vmatpush1.bf16.msra.mxu0 %v2453
    %2475 = vmatprep.subr.bf16.mxu0 0
    %2476 = vmatpush1.bf16.msra.mxu0 0
    %2477 = vmatprep.subr.bf16.mxu0 0
    %2478 = vmatpush1.bf16.msra.mxu0 0
    %2479 = vmatprep.subr.bf16.mxu0 0
    %2480 = vmatpush1.bf16.msra.mxu0 0
    %2481 = vmatprep.subr.bf16.mxu0 0
    %2482 = vmatpush1.bf16.msra.mxu0 0
    %2483 = vmatprep.subr.bf16.mxu0 0
    %2484 = vmatpush1.bf16.msra.mxu0 0
    %2485 = vmatprep.subr.bf16.mxu0 0
    %2486 = vmatpush1.bf16.msra.mxu0 0
    %2487 = vmatprep.subr.bf16.mxu0 0
    %2488 = vmatpush1.bf16.msra.mxu0 0
    %2489 = vmatprep.subr.bf16.mxu0 0
    %2490 = vmatpush1.bf16.msra.mxu0 0
    %2491 = vmatprep.subr.bf16.mxu0 0
    %2492 = vmatpush1.bf16.msra.mxu0 0
    %2493 = vmatprep.subr.bf16.mxu0 0
    %2494 = vmatpush1.bf16.msra.mxu0 0
    %2495 = vmatprep.subr.bf16.mxu0 0
    %2496 = vmatpush1.bf16.msra.mxu0 0
    %2497 = vmatprep.subr.bf16.mxu0 0
    %2498 = vmatpush1.bf16.msra.mxu0 0
    %2499 = vmatprep.subr.bf16.mxu0 0
    %2500 = vmatpush1.bf16.msra.mxu0 0
    %2501 = vmatprep.subr.bf16.mxu0 0
    %2502 = vmatpush1.bf16.msra.mxu0 0
    %2503 = vmatprep.mubr.bf16.mxu0 0
    %2504 = vmatmul.mubr.bf16.gmra.mrb[0].mxu0 %v2469
    %v2505 = vpop.f32.mrb[0].mxu0
    %v2506 = vadd.f32 0.0, %v2505
    %v2507 = vpop.f32.mrb[0].mxu0
    %v2508 = vadd.f32 0.0, %v2507
    %v2509 = vpop.f32.mrb[0].mxu0
    %v2510 = vpop.f32.mrb[0].mxu0
    %2511 = vdwg.mxu0
    %2512 = vmatprep.subr.bf16.mxu0 %v2451
    %2513 = vmatpush1.bf16.msra.mxu0 %v2450
    %2514 = vmatprep.subr.bf16.mxu0 %v2456
    %2515 = vmatpush1.bf16.msra.mxu0 %v2455
    %2516 = vmatprep.subr.bf16.mxu0 0
    %2517 = vmatpush1.bf16.msra.mxu0 0
    %2518 = vmatprep.subr.bf16.mxu0 0
    %2519 = vmatpush1.bf16.msra.mxu0 0
    %2520 = vmatprep.subr.bf16.mxu0 0
    %2521 = vmatpush1.bf16.msra.mxu0 0
    %2522 = vmatprep.subr.bf16.mxu0 0
    %2523 = vmatpush1.bf16.msra.mxu0 0
    %2524 = vmatprep.subr.bf16.mxu0 0
    %2525 = vmatpush1.bf16.msra.mxu0 0
    %2526 = vmatprep.subr.bf16.mxu0 0
    %2527 = vmatpush1.bf16.msra.mxu0 0
    %2528 = vmatprep.subr.bf16.mxu0 0
    %2529 = vmatpush1.bf16.msra.mxu0 0
    %2530 = vmatprep.subr.bf16.mxu0 0
    %2531 = vmatpush1.bf16.msra.mxu0 0
    %2532 = vmatprep.subr.bf16.mxu0 0
    %2533 = vmatpush1.bf16.msra.mxu0 0
    %2534 = vmatprep.subr.bf16.mxu0 0
    %2535 = vmatpush1.bf16.msra.mxu0 0
    %2536 = vmatprep.subr.bf16.mxu0 0
    %2537 = vmatpush1.bf16.msra.mxu0 0
    %2538 = vmatprep.subr.bf16.mxu0 0
    %2539 = vmatpush1.bf16.msra.mxu0 0
    %2540 = vmatprep.subr.bf16.mxu0 0
    %2541 = vmatpush1.bf16.msra.mxu0 0
    %2542 = vmatprep.subr.bf16.mxu0 0
    %2543 = vmatpush1.bf16.msra.mxu0 0
    %2544 = vmatprep.mubr.bf16.mxu0 0
    %2545 = vmatmul.mubr.bf16.gmra.mrb[0].mxu0 %v2469
    %v2546 = vpop.f32.mrb[0].mxu0
    %v2547 = vadd.f32 0.0, %v2546
    %v2548 = vpop.f32.mrb[0].mxu0
    %v2549 = vadd.f32 0.0, %v2548
    %v2550 = vpop.f32.mrb[0].mxu0
    %v2551 = vpop.f32.mrb[0].mxu0
    %2552 = vdwg.mxu0
    %2553 = vmatprep.subr.bf16.mxu0 0
    %2554 = vmatpush1.bf16.msra.mxu0 %v2452
    %2555 = vmatprep.subr.bf16.mxu0 0
    %2556 = vmatpush1.bf16.msra.mxu0 %v2457
    %2557 = vmatprep.subr.bf16.mxu0 0
    %2558 = vmatpush1.bf16.msra.mxu0 0
    %2559 = vmatprep.subr.bf16.mxu0 0
    %2560 = vmatpush1.bf16.msra.mxu0 0
    %2561 = vmatprep.subr.bf16.mxu0 0
    %2562 = vmatpush1.bf16.msra.mxu0 0
    %2563 = vmatprep.subr.bf16.mxu0 0
    %2564 = vmatpush1.bf16.msra.mxu0 0
    %2565 = vmatprep.subr.bf16.mxu0 0
    %2566 = vmatpush1.bf16.msra.mxu0 0
    %2567 = vmatprep.subr.bf16.mxu0 0
    %2568 = vmatpush1.bf16.msra.mxu0 0
    %2569 = vmatprep.subr.bf16.mxu0 0
    %2570 = vmatpush1.bf16.msra.mxu0 0
    %2571 = vmatprep.subr.bf16.mxu0 0
    %2572 = vmatpush1.bf16.msra.mxu0 0
    %2573 = vmatprep.subr.bf16.mxu0 0
    %2574 = vmatpush1.bf16.msra.mxu0 0
    %2575 = vmatprep.subr.bf16.mxu0 0
    %2576 = vmatpush1.bf16.msra.mxu0 0
    %2577 = vmatprep.subr.bf16.mxu0 0
    %2578 = vmatpush1.bf16.msra.mxu0 0
    %2579 = vmatprep.subr.bf16.mxu0 0
    %2580 = vmatpush1.bf16.msra.mxu0 0
    %2581 = vmatprep.subr.bf16.mxu0 0
    %2582 = vmatpush1.bf16.msra.mxu0 0
    %2583 = vmatprep.subr.bf16.mxu0 0
    %2584 = vmatpush1.bf16.msra.mxu0 0
    %2585 = vmatprep.mubr.bf16.mxu0 0
    %2586 = vmatmul.mubr.bf16.gmra.mrb[0].mxu0 %v2469
    %v2587 = vpop.f32.mrb[0].mxu0
    %v2588 = vadd.f32 0.0, %v2587
    %v2589 = vpop.f32.mrb[0].mxu0
    %v2590 = vpop.f32.mrb[0].mxu0
    %v2591 = vpop.f32.mrb[0].mxu0
    %2592 = vdwg.mxu0
    %v2593 = vlaneseq
    %v2594 = vshrl.u32 %v2593, 7
    %v2595 = vsub.s32 1, %v2594
    %v2596 = vrot.slane %v2356, %v2595
    %v2597 = vmul.f32 %v2508, %v2596
    %v2598 = vlaneseq
    %v2599 = vshrl.u32 %v2598, 7
    %v2600 = vsub.s32 2, %v2599
    %v2601 = vrot.slane %v2356, %v2600
    %v2602 = vadd.f32 %v2597, %v2601
    %v2603 = vxor.u32 %v2602, 2147483648
    %v2604 = vmul.f32 %v2603, 1.442695
    %v2605 = vpow.pop %v2604
    %v2606 = vadd.f32 %v2605, 1.0
    %v2607 = vrcp.pop %v2606
    %v2608 = vmul.f32 1.0, %v2607
    %v2609 = vmul.f32 %v2602, %v2608
    %v2610 = vlaneseq
    %v2611 = vshrl.u32 %v2610, 7
    %v2612 = vsub.s32 3, %v2611
    %v2613 = vrot.slane %v2356, %v2612
    %v2614 = vmul.f32 %v2547, %v2613
    %v2615 = vlaneseq
    %v2616 = vshrl.u32 %v2615, 7
    %v2617 = vsub.s32 4, %v2616
    %v2618 = vrot.slane %v2356, %v2617
    %v2619 = vadd.f32 %v2614, %v2618
    %v2620 = vxor.u32 %v2619, 2147483648
    %v2621 = vmul.f32 %v2620, 1.442695
    %v2622 = vpow.pop %v2621
    %v2623 = vadd.f32 %v2622, 1.0
    %v2624 = vrcp.pop %v2623
    %v2625 = vmul.f32 1.0, %v2624
    %v2626 = vmul.f32 %v2619, %v2625
    %v2627 = vlaneseq
    %v2628 = vshrl.u32 %v2627, 7
    %v2629 = vsub.s32 5, %v2628
    %v2630 = vrot.slane %v2356, %v2629
    %v2631 = vmul.f32 %v2549, %v2630
    %v2632 = vlaneseq
    %v2633 = vshrl.u32 %v2632, 7
    %v2634 = vsub.s32 6, %v2633
    %v2635 = vrot.slane %v2356, %v2634
    %v2636 = vadd.f32 %v2631, %v2635
    %v2637 = vxor.u32 %v2636, 2147483648
    %v2638 = vmul.f32 %v2637, 1.442695
    %v2639 = vpow.pop %v2638
    %v2640 = vadd.f32 %v2639, 1.0
    %v2641 = vrcp.pop %v2640
    %v2642 = vmul.f32 1.0, %v2641
    %v2643 = vmul.f32 %v2636, %v2642
    %v2644 = vlaneseq
    %v2645 = vshrl.u32 %v2644, 7
    %v2646 = vsub.s32 7, %v2645
    %v2647 = vrot.slane %v2356, %v2646
    %v2648 = vadd.f32 %v2588, %v2647
    %vm2649 = vcmp.gt.f32.partialorder %v2648, 20.0
    %v2650 = vmin.f32 %v2648, 20.0
    %v2651 = vmul.f32 %v2650, 1.442695
    %v2652 = vpow.pop %v2651
    %v2653 = vadd.f32 %v2652, 1.0
    %v2654 = vlog2.pop %v2653
    %v2655 = vmul.f32 %v2654, 0.6931472
    %v2656 = vmul.f32 -0.5, %v2652
    %v2657 = vadd.f32 %v2656, 1.0
    %v2658 = vmul.f32 %v2657, %v2652
    %v2659 = vand.u32 2147483647, %v2652
    %vm2660 = vcmp.lt.f32.partialorder %v2659, 0.0004427343
    %v2661 = vsel %vm2660, %v2658, %v2655
    %v2662 = vsel %vm2649, %v2648, %v2661
    %v2663 = vmul.f32 %v2626, %v2643
    %v2664 = vsel %vm328, %v2663, 0.0
    %2665 = vadd.xlane.f32.xlu0 %v2664
    %v2666 = vpop.xlane.xlu0 %2665
    %v2667 = vmul.f32 %v2662, %v2666
    %v2668 = vlaneseq
    %v2669 = vshrl.u32 %v2668, 7
    %v2670 = vsub.s32 0, %v2669
    %v2671 = vrot.slane %v2357, %v2670
    %v2672 = vadd.f32 %v2667, %v2671
    %v2673 = vmul.f32 %v2609, %v2672
    %v2674 = vxor.u32 %v2506, 2147483648
    %v2675 = vmul.f32 %v2674, 1.442695
    %v2676 = vpow.pop %v2675
    %v2677 = vadd.f32 %v2676, 1.0
    %v2678 = vrcp.pop %v2677
    %v2679 = vmul.f32 1.0, %v2678
    %v2680 = vmul.f32 %v2506, %v2679
    %v2681 = vmul.f32 %v2673, %v2680
    %v2682 = vmul.f32 %v2681, %v2681
    %v2683 = vsel %vm348, %v2682, 0.0
    %2684 = vadd.xlane.f32.xlu0 %v2683
    %v2685 = vpop.xlane.xlu0 %2684
    %v2686 = vmul.f32 %v2685, %v352
    %v2687 = vadd.f32 %v2686, 1e-05
    %v2688 = vrsqrt.pop %v2687
    %v2689 = vmul.f32 %v2681, %v2688
    %v2690 = vlaneseq
    %v2691 = vshrl.u32 %v2690, 7
    %v2692 = vsub.s32 1, %v2691
    %v2693 = vrot.slane %v2357, %v2692
    %v2694 = vmul.f32 %v2689, %v2693
    %v2695 = vpack.c.bf16 %v2694, %v2694
    %v2704 = vunpack.c.l.b16 %v2372
    %v2705 = vunpack.c.l.b16 %v2373
    %v2706 = vunpack.c.l.b16 %v2374
    %v2707 = vunpack.c.l.b16 %v2375
    %v2708 = vunpack.c.l.b16 %v2376
    %v2709 = vunpack.c.l.b16 %v2377
    %v2710 = vunpack.c.l.b16 %v2378
    %v2711 = vunpack.c.l.b16 %v2379
    %v2712 = vpack.c.b16 %v2705, %v2704
    %v2713 = vpack.c.b16 %v2707, %v2706
    %v2714 = vpack.c.b16 %v2709, %v2708
    %v2715 = vpack.c.b16 %v2711, %v2710
    %v2721 = vsel %vm387, %v2695, 0
    %2723 = vmatprep.subr.bf16.mxu0 0
    %2724 = vmatpush1.bf16.msra.mxu0 %v2712
    %2725 = vmatprep.subr.bf16.mxu0 0
    %2726 = vmatpush1.bf16.msra.mxu0 %v2713
    %2727 = vmatprep.subr.bf16.mxu0 0
    %2728 = vmatpush1.bf16.msra.mxu0 %v2714
    %2729 = vmatprep.subr.bf16.mxu0 0
    %2730 = vmatpush1.bf16.msra.mxu0 %v2715
    %2731 = vmatprep.subr.bf16.mxu0 0
    %2732 = vmatpush1.bf16.msra.mxu0 0
    %2733 = vmatprep.subr.bf16.mxu0 0
    %2734 = vmatpush1.bf16.msra.mxu0 0
    %2735 = vmatprep.subr.bf16.mxu0 0
    %2736 = vmatpush1.bf16.msra.mxu0 0
    %2737 = vmatprep.subr.bf16.mxu0 0
    %2738 = vmatpush1.bf16.msra.mxu0 0
    %2739 = vmatprep.subr.bf16.mxu0 0
    %2740 = vmatpush1.bf16.msra.mxu0 0
    %2741 = vmatprep.subr.bf16.mxu0 0
    %2742 = vmatpush1.bf16.msra.mxu0 0
    %2743 = vmatprep.subr.bf16.mxu0 0
    %2744 = vmatpush1.bf16.msra.mxu0 0
    %2745 = vmatprep.subr.bf16.mxu0 0
    %2746 = vmatpush1.bf16.msra.mxu0 0
    %2747 = vmatprep.subr.bf16.mxu0 0
    %2748 = vmatpush1.bf16.msra.mxu0 0
    %2749 = vmatprep.subr.bf16.mxu0 0
    %2750 = vmatpush1.bf16.msra.mxu0 0
    %2751 = vmatprep.subr.bf16.mxu0 0
    %2752 = vmatpush1.bf16.msra.mxu0 0
    %2753 = vmatprep.subr.bf16.mxu0 0
    %2754 = vmatpush1.bf16.msra.mxu0 0
    %2755 = vmatprep.mubr.bf16.mxu0 0
    %2756 = vmatmul.mubr.bf16.gmra.mrb[0].mxu0 %v2721
    %v2757 = vpop.f32.mrb[0].mxu0
    %v2758 = vadd.f32 0.0, %v2757
    %v2759 = vpop.f32.mrb[0].mxu0
    %v2760 = vpop.f32.mrb[0].mxu0
    %v2761 = vpop.f32.mrb[0].mxu0
    %2762 = vdwg.mxu0
    %v2763 = vadd.f32 %v2354, %v2758
    %v2764 = vmul.f32 %v2763, %v2763
    %v2765 = vsel %vm59, %v2764, 0.0
    %2766 = vadd.xlane.f32.xlu0 %v2765
    %v2767 = vpop.xlane.xlu0 %2766
    %v2768 = vadd.f32 %v2767, 1e-06
    %v2769 = vrsqrt.pop %v2768
    %v2770 = vmul.f32 %v2768, %v2769
    %vm2771 = vcmp.eq.f32.partialorder %v2768, inf
    %v2772 = vsel %vm2771, %v2768, %v2770
    %vm2773 = vcmp.eq.f32.partialorder %v2768, 0.0
    %v2774 = vand.u32 %v2768, 2147483648
    %v2775 = vsel %vm2773, %v2774, %v2772
    %v2776 = vlaneseq
    %v2777 = vshrl.u32 %v2776, 7
    %v2778 = vsub.s32 2, %v2777
    %v2779 = vrot.slane %v2357, %v2778
    %v2780 = vmul.f32 %v2779, %v2763
    %v2781 = vrcp.pop %v2775
    %v2782 = vmul.f32 %v2780, %v2781
    %v2783 = vpack.c.bf16 %v2782, %v2782
    %v2784 = vlaneseq
    %v2785 = vshrl.u32 %v2784, 7
    %v2786 = vsub.s32 3, %v2785
    %v2787 = vrot.slane %v2357, %v2786
    %v2788 = vunpack.c.h.b16 %v2361
    %v2789 = vunpack.c.h.b16 %v2364
    %v2790 = vunpack.c.h.b16 %v2367
    %v2791 = vunpack.c.h.b16 %v2370
    %v2792 = vpack.c.b16 %v2789, %v2788
    %v2793 = vpack.c.b16 %v2791, %v2790
    %v2797 = vsel %vm131, %v2783, 0
    %2799 = vmatprep.subr.bf16.mxu0 0
    %2800 = vmatpush1.bf16.msra.mxu0 %v2792
    %2801 = vmatprep.subr.bf16.mxu0 0
    %2802 = vmatpush1.bf16.msra.mxu0 %v2793
    %2803 = vmatprep.subr.bf16.mxu0 0
    %2804 = vmatpush1.bf16.msra.mxu0 0
    %2805 = vmatprep.subr.bf16.mxu0 0
    %2806 = vmatpush1.bf16.msra.mxu0 0
    %2807 = vmatprep.subr.bf16.mxu0 0
    %2808 = vmatpush1.bf16.msra.mxu0 0
    %2809 = vmatprep.subr.bf16.mxu0 0
    %2810 = vmatpush1.bf16.msra.mxu0 0
    %2811 = vmatprep.subr.bf16.mxu0 0
    %2812 = vmatpush1.bf16.msra.mxu0 0
    %2813 = vmatprep.subr.bf16.mxu0 0
    %2814 = vmatpush1.bf16.msra.mxu0 0
    %2815 = vmatprep.subr.bf16.mxu0 0
    %2816 = vmatpush1.bf16.msra.mxu0 0
    %2817 = vmatprep.subr.bf16.mxu0 0
    %2818 = vmatpush1.bf16.msra.mxu0 0
    %2819 = vmatprep.subr.bf16.mxu0 0
    %2820 = vmatpush1.bf16.msra.mxu0 0
    %2821 = vmatprep.subr.bf16.mxu0 0
    %2822 = vmatpush1.bf16.msra.mxu0 0
    %2823 = vmatprep.subr.bf16.mxu0 0
    %2824 = vmatpush1.bf16.msra.mxu0 0
    %2825 = vmatprep.subr.bf16.mxu0 0
    %2826 = vmatpush1.bf16.msra.mxu0 0
    %2827 = vmatprep.subr.bf16.mxu0 0
    %2828 = vmatpush1.bf16.msra.mxu0 0
    %2829 = vmatprep.subr.bf16.mxu0 0
    %2830 = vmatpush1.bf16.msra.mxu0 0
    %2831 = vmatprep.mubr.bf16.mxu0 0
    %2832 = vmatmul.mubr.bf16.gmra.mrb[0].mxu0 %v2797
    %v2833 = vpop.f32.mrb[0].mxu0
    %v2834 = vadd.f32 %v2787, %v2833
    %v2835 = vpop.f32.mrb[0].mxu0
    %v2836 = vpop.f32.mrb[0].mxu0
    %v2837 = vpop.f32.mrb[0].mxu0
    %2838 = vdwg.mxu0
    %v2839 = vmul.f32 %v2834, 0.5
    %v2840 = vmul.f32 %v2834, 0.70710677
    %v2841 = verf.f32.pop %v2840
    %v2842 = vadd.f32 %v2841, 1.0
    %v2843 = vmul.f32 %v2839, %v2842
    %v2844 = vpack.c.bf16 %v2843, %v2843
    %v2845 = vlaneseq
    %v2846 = vshrl.u32 %v2845, 7
    %v2847 = vsub.s32 4, %v2846
    %v2848 = vrot.slane %v2357, %v2847
    %v2865 = vunpack.c.l.b16 %v2380
    %v2866 = vunpack.c.l.b16 %v2381
    %v2867 = vunpack.c.l.b16 %v2382
    %v2868 = vunpack.c.l.b16 %v2383
    %v2869 = vunpack.c.l.b16 %v2384
    %v2870 = vunpack.c.l.b16 %v2385
    %v2871 = vunpack.c.l.b16 %v2386
    %v2872 = vunpack.c.l.b16 %v2387
    %v2873 = vunpack.c.l.b16 %v2388
    %v2874 = vunpack.c.l.b16 %v2389
    %v2875 = vunpack.c.l.b16 %v2390
    %v2876 = vunpack.c.l.b16 %v2391
    %v2877 = vunpack.c.l.b16 %v2392
    %v2878 = vunpack.c.l.b16 %v2393
    %v2879 = vunpack.c.l.b16 %v2394
    %v2880 = vunpack.c.l.b16 %v2395
    %v2881 = vpack.c.b16 %v2866, %v2865
    %v2882 = vpack.c.b16 %v2868, %v2867
    %v2883 = vpack.c.b16 %v2870, %v2869
    %v2884 = vpack.c.b16 %v2872, %v2871
    %v2885 = vpack.c.b16 %v2874, %v2873
    %v2886 = vpack.c.b16 %v2876, %v2875
    %v2887 = vpack.c.b16 %v2878, %v2877
    %v2888 = vpack.c.b16 %v2880, %v2879
    %2897 = vmatprep.subr.bf16.mxu0 0
    %2898 = vmatpush1.bf16.msra.mxu0 %v2881
    %2899 = vmatprep.subr.bf16.mxu0 0
    %2900 = vmatpush1.bf16.msra.mxu0 %v2882
    %2901 = vmatprep.subr.bf16.mxu0 0
    %2902 = vmatpush1.bf16.msra.mxu0 %v2883
    %2903 = vmatprep.subr.bf16.mxu0 0
    %2904 = vmatpush1.bf16.msra.mxu0 %v2884
    %2905 = vmatprep.subr.bf16.mxu0 0
    %2906 = vmatpush1.bf16.msra.mxu0 %v2885
    %2907 = vmatprep.subr.bf16.mxu0 0
    %2908 = vmatpush1.bf16.msra.mxu0 %v2886
    %2909 = vmatprep.subr.bf16.mxu0 0
    %2910 = vmatpush1.bf16.msra.mxu0 %v2887
    %2911 = vmatprep.subr.bf16.mxu0 0
    %2912 = vmatpush1.bf16.msra.mxu0 %v2888
    %2913 = vmatprep.subr.bf16.mxu0 0
    %2914 = vmatpush1.bf16.msra.mxu0 0
    %2915 = vmatprep.subr.bf16.mxu0 0
    %2916 = vmatpush1.bf16.msra.mxu0 0
    %2917 = vmatprep.subr.bf16.mxu0 0
    %2918 = vmatpush1.bf16.msra.mxu0 0
    %2919 = vmatprep.subr.bf16.mxu0 0
    %2920 = vmatpush1.bf16.msra.mxu0 0
    %2921 = vmatprep.subr.bf16.mxu0 0
    %2922 = vmatpush1.bf16.msra.mxu0 0
    %2923 = vmatprep.subr.bf16.mxu0 0
    %2924 = vmatpush1.bf16.msra.mxu0 0
    %2925 = vmatprep.subr.bf16.mxu0 0
    %2926 = vmatpush1.bf16.msra.mxu0 0
    %2927 = vmatprep.subr.bf16.mxu0 0
    %2928 = vmatpush1.bf16.msra.mxu0 0
    %2929 = vmatprep.mubr.bf16.mxu0 0
    %2930 = vmatmul.mubr.bf16.gmra.mrb[0].mxu0 %v2844
    %v2931 = vpop.f32.mrb[0].mxu0
    %v2932 = vadd.f32 %v2848, %v2931
    %v2933 = vpop.f32.mrb[0].mxu0
    %v2934 = vpop.f32.mrb[0].mxu0
    %v2935 = vpop.f32.mrb[0].mxu0
    %2936 = vdwg.mxu0
    %v2937 = vadd.f32 %v2763, %v2932
    %s2938 = scalar_lea.vmem %s1, 80
    %v2939 = vld [vmem:[%s2938] sm:$0xff]
    %v2940 = vld [vmem:[%s2938 + $0x8] sm:$0xff]
    %s2941 = scalar_lea.vmem %s2, 480
    %v2942 = vld [vmem:[%s2941] sm:$0xff]
    %v2943 = vld [vmem:[%s2941 + $0x8] sm:$0xff]
    %v2944 = vld [vmem:[%s2941 + $0x10] sm:$0xff]
    %v2945 = vld [vmem:[%s2941 + $0x18] sm:$0xff]
    %v2946 = vld [vmem:[%s2941 + $0x20] sm:$0xff]
    %v2947 = vld [vmem:[%s2941 + $0x28] sm:$0xff]
    %v2948 = vld [vmem:[%s2941 + $0x30] sm:$0xff]
    %v2949 = vld [vmem:[%s2941 + $0x38] sm:$0xff]
    %v2950 = vld [vmem:[%s2941 + $0x40] sm:$0xff]
    %v2951 = vld [vmem:[%s2941 + $0x48] sm:$0xff]
    %v2952 = vld [vmem:[%s2941 + $0x50] sm:$0xff]
    %v2953 = vld [vmem:[%s2941 + $0x58] sm:$0xff]
    %s2954 = scalar_lea.vmem %s3, 480
    %v2955 = vld [vmem:[%s2954] sm:$0xf]
    %v2956 = vld [vmem:[%s2954 + $0x4] sm:$0xf]
    %v2957 = vld [vmem:[%s2954 + $0x8] sm:$0xf]
    %v2958 = vld [vmem:[%s2954 + $0xc] sm:$0xf]
    %v2959 = vld [vmem:[%s2954 + $0x10] sm:$0xf]
    %v2960 = vld [vmem:[%s2954 + $0x14] sm:$0xf]
    %v2961 = vld [vmem:[%s2954 + $0x18] sm:$0xf]
    %v2962 = vld [vmem:[%s2954 + $0x1c] sm:$0xf]
    %v2963 = vld [vmem:[%s2954 + $0x20] sm:$0xf]
    %v2964 = vld [vmem:[%s2954 + $0x24] sm:$0xf]
    %v2965 = vld [vmem:[%s2954 + $0x28] sm:$0xf]
    %v2966 = vld [vmem:[%s2954 + $0x2c] sm:$0xf]
    %v2967 = vld [vmem:[%s2954 + $0x30] sm:$0xf]
    %v2968 = vld [vmem:[%s2954 + $0x34] sm:$0xf]
    %v2969 = vld [vmem:[%s2954 + $0x38] sm:$0xf]
    %v2970 = vld [vmem:[%s2954 + $0x3c] sm:$0xf]
    %v2971 = vld [vmem:[%s2954 + $0x40] sm:$0xf]
    %v2972 = vld [vmem:[%s2954 + $0x44] sm:$0xf]
    %v2973 = vld [vmem:[%s2954 + $0x48] sm:$0xf]
    %v2974 = vld [vmem:[%s2954 + $0x4c] sm:$0xf]
    %v2975 = vld [vmem:[%s2954 + $0x50] sm:$0xf]
    %v2976 = vld [vmem:[%s2954 + $0x54] sm:$0xf]
    %v2977 = vld [vmem:[%s2954 + $0x58] sm:$0xf]
    %v2978 = vld [vmem:[%s2954 + $0x5c] sm:$0xf]
    %v2979 = vmul.f32 %v2937, %v2937
    %v2980 = vsel %vm59, %v2979, 0.0
    %2981 = vadd.xlane.f32.xlu0 %v2980
    %v2982 = vpop.xlane.xlu0 %2981
    %v2983 = vadd.f32 %v2982, 1e-06
    %v2984 = vrsqrt.pop %v2983
    %v2985 = vmul.f32 %v2983, %v2984
    %vm2986 = vcmp.eq.f32.partialorder %v2983, inf
    %v2987 = vsel %vm2986, %v2983, %v2985
    %vm2988 = vcmp.eq.f32.partialorder %v2983, 0.0
    %v2989 = vand.u32 %v2983, 2147483648
    %v2990 = vsel %vm2988, %v2989, %v2987
    %v2991 = vlaneseq
    %v2992 = vshrl.u32 %v2991, 7
    %v2993 = vsub.s32 0, %v2992
    %v2994 = vrot.slane %v2939, %v2993
    %v2995 = vmul.f32 %v2994, %v2937
    %v2996 = vrcp.pop %v2990
    %v2997 = vmul.f32 %v2995, %v2996
    %v2998 = vpack.c.bf16 %v2997, %v2997
    %v3011 = vunpack.c.l.b16 %v2942
    %v3012 = vunpack.c.h.b16 %v2942
    %v3013 = vunpack.c.l.b16 %v2943
    %v3014 = vunpack.c.h.b16 %v2943
    %v3015 = vunpack.c.l.b16 %v2944
    %v3016 = vunpack.c.l.b16 %v2945
    %v3017 = vunpack.c.h.b16 %v2945
    %v3018 = vunpack.c.l.b16 %v2946
    %v3019 = vunpack.c.h.b16 %v2946
    %v3020 = vunpack.c.l.b16 %v2947
    %v3021 = vunpack.c.l.b16 %v2948
    %v3022 = vunpack.c.h.b16 %v2948
    %v3023 = vunpack.c.l.b16 %v2949
    %v3024 = vunpack.c.h.b16 %v2949
    %v3025 = vunpack.c.l.b16 %v2950
    %v3026 = vunpack.c.l.b16 %v2951
    %v3027 = vunpack.c.h.b16 %v2951
    %v3028 = vunpack.c.l.b16 %v2952
    %v3029 = vunpack.c.h.b16 %v2952
    %v3030 = vunpack.c.l.b16 %v2953
    %v3031 = vpack.c.b16 %v3016, %v3011
    %v3032 = vpack.c.b16 %v3017, %v3012
    %v3033 = vpack.c.b16 %v3018, %v3013
    %v3034 = vpack.c.b16 %v3019, %v3014
    %v3035 = vpack.c.b16 %v3020, %v3015
    %v3036 = vpack.c.b16 %v3026, %v3021
    %v3037 = vpack.c.b16 %v3027, %v3022
    %v3038 = vpack.c.b16 %v3028, %v3023
    %v3039 = vpack.c.b16 %v3029, %v3024
    %v3040 = vpack.c.b16 %v3030, %v3025
    %v3052 = vsel %vm131, %v2998, 0
    %3054 = vmatprep.subr.bf16.mxu0 %v3032
    %3055 = vmatpush1.bf16.msra.mxu0 %v3031
    %3056 = vmatprep.subr.bf16.mxu0 %v3037
    %3057 = vmatpush1.bf16.msra.mxu0 %v3036
    %3058 = vmatprep.subr.bf16.mxu0 0
    %3059 = vmatpush1.bf16.msra.mxu0 0
    %3060 = vmatprep.subr.bf16.mxu0 0
    %3061 = vmatpush1.bf16.msra.mxu0 0
    %3062 = vmatprep.subr.bf16.mxu0 0
    %3063 = vmatpush1.bf16.msra.mxu0 0
    %3064 = vmatprep.subr.bf16.mxu0 0
    %3065 = vmatpush1.bf16.msra.mxu0 0
    %3066 = vmatprep.subr.bf16.mxu0 0
    %3067 = vmatpush1.bf16.msra.mxu0 0
    %3068 = vmatprep.subr.bf16.mxu0 0
    %3069 = vmatpush1.bf16.msra.mxu0 0
    %3070 = vmatprep.subr.bf16.mxu0 0
    %3071 = vmatpush1.bf16.msra.mxu0 0
    %3072 = vmatprep.subr.bf16.mxu0 0
    %3073 = vmatpush1.bf16.msra.mxu0 0
    %3074 = vmatprep.subr.bf16.mxu0 0
    %3075 = vmatpush1.bf16.msra.mxu0 0
    %3076 = vmatprep.subr.bf16.mxu0 0
    %3077 = vmatpush1.bf16.msra.mxu0 0
    %3078 = vmatprep.subr.bf16.mxu0 0
    %3079 = vmatpush1.bf16.msra.mxu0 0
    %3080 = vmatprep.subr.bf16.mxu0 0
    %3081 = vmatpush1.bf16.msra.mxu0 0
    %3082 = vmatprep.subr.bf16.mxu0 0
    %3083 = vmatpush1.bf16.msra.mxu0 0
    %3084 = vmatprep.subr.bf16.mxu0 0
    %3085 = vmatpush1.bf16.msra.mxu0 0
    %3086 = vmatprep.mubr.bf16.mxu0 0
    %3087 = vmatmul.mubr.bf16.gmra.mrb[0].mxu0 %v3052
    %v3088 = vpop.f32.mrb[0].mxu0
    %v3089 = vadd.f32 0.0, %v3088
    %v3090 = vpop.f32.mrb[0].mxu0
    %v3091 = vadd.f32 0.0, %v3090
    %v3092 = vpop.f32.mrb[0].mxu0
    %v3093 = vpop.f32.mrb[0].mxu0
    %3094 = vdwg.mxu0
    %3095 = vmatprep.subr.bf16.mxu0 %v3034
    %3096 = vmatpush1.bf16.msra.mxu0 %v3033
    %3097 = vmatprep.subr.bf16.mxu0 %v3039
    %3098 = vmatpush1.bf16.msra.mxu0 %v3038
    %3099 = vmatprep.subr.bf16.mxu0 0
    %3100 = vmatpush1.bf16.msra.mxu0 0
    %3101 = vmatprep.subr.bf16.mxu0 0
    %3102 = vmatpush1.bf16.msra.mxu0 0
    %3103 = vmatprep.subr.bf16.mxu0 0
    %3104 = vmatpush1.bf16.msra.mxu0 0
    %3105 = vmatprep.subr.bf16.mxu0 0
    %3106 = vmatpush1.bf16.msra.mxu0 0
    %3107 = vmatprep.subr.bf16.mxu0 0
    %3108 = vmatpush1.bf16.msra.mxu0 0
    %3109 = vmatprep.subr.bf16.mxu0 0
    %3110 = vmatpush1.bf16.msra.mxu0 0
    %3111 = vmatprep.subr.bf16.mxu0 0
    %3112 = vmatpush1.bf16.msra.mxu0 0
    %3113 = vmatprep.subr.bf16.mxu0 0
    %3114 = vmatpush1.bf16.msra.mxu0 0
    %3115 = vmatprep.subr.bf16.mxu0 0
    %3116 = vmatpush1.bf16.msra.mxu0 0
    %3117 = vmatprep.subr.bf16.mxu0 0
    %3118 = vmatpush1.bf16.msra.mxu0 0
    %3119 = vmatprep.subr.bf16.mxu0 0
    %3120 = vmatpush1.bf16.msra.mxu0 0
    %3121 = vmatprep.subr.bf16.mxu0 0
    %3122 = vmatpush1.bf16.msra.mxu0 0
    %3123 = vmatprep.subr.bf16.mxu0 0
    %3124 = vmatpush1.bf16.msra.mxu0 0
    %3125 = vmatprep.subr.bf16.mxu0 0
    %3126 = vmatpush1.bf16.msra.mxu0 0
    %3127 = vmatprep.mubr.bf16.mxu0 0
    %3128 = vmatmul.mubr.bf16.gmra.mrb[0].mxu0 %v3052
    %v3129 = vpop.f32.mrb[0].mxu0
    %v3130 = vadd.f32 0.0, %v3129
    %v3131 = vpop.f32.mrb[0].mxu0
    %v3132 = vadd.f32 0.0, %v3131
    %v3133 = vpop.f32.mrb[0].mxu0
    %v3134 = vpop.f32.mrb[0].mxu0
    %3135 = vdwg.mxu0
    %3136 = vmatprep.subr.bf16.mxu0 0
    %3137 = vmatpush1.bf16.msra.mxu0 %v3035
    %3138 = vmatprep.subr.bf16.mxu0 0
    %3139 = vmatpush1.bf16.msra.mxu0 %v3040
    %3140 = vmatprep.subr.bf16.mxu0 0
    %3141 = vmatpush1.bf16.msra.mxu0 0
    %3142 = vmatprep.subr.bf16.mxu0 0
    %3143 = vmatpush1.bf16.msra.mxu0 0
    %3144 = vmatprep.subr.bf16.mxu0 0
    %3145 = vmatpush1.bf16.msra.mxu0 0
    %3146 = vmatprep.subr.bf16.mxu0 0
    %3147 = vmatpush1.bf16.msra.mxu0 0
    %3148 = vmatprep.subr.bf16.mxu0 0
    %3149 = vmatpush1.bf16.msra.mxu0 0
    %3150 = vmatprep.subr.bf16.mxu0 0
    %3151 = vmatpush1.bf16.msra.mxu0 0
    %3152 = vmatprep.subr.bf16.mxu0 0
    %3153 = vmatpush1.bf16.msra.mxu0 0
    %3154 = vmatprep.subr.bf16.mxu0 0
    %3155 = vmatpush1.bf16.msra.mxu0 0
    %3156 = vmatprep.subr.bf16.mxu0 0
    %3157 = vmatpush1.bf16.msra.mxu0 0
    %3158 = vmatprep.subr.bf16.mxu0 0
    %3159 = vmatpush1.bf16.msra.mxu0 0
    %3160 = vmatprep.subr.bf16.mxu0 0
    %3161 = vmatpush1.bf16.msra.mxu0 0
    %3162 = vmatprep.subr.bf16.mxu0 0
    %3163 = vmatpush1.bf16.msra.mxu0 0
    %3164 = vmatprep.subr.bf16.mxu0 0
    %3165 = vmatpush1.bf16.msra.mxu0 0
    %3166 = vmatprep.subr.bf16.mxu0 0
    %3167 = vmatpush1.bf16.msra.mxu0 0
    %3168 = vmatprep.mubr.bf16.mxu0 0
    %3169 = vmatmul.mubr.bf16.gmra.mrb[0].mxu0 %v3052
    %v3170 = vpop.f32.mrb[0].mxu0
    %v3171 = vadd.f32 0.0, %v3170
    %v3172 = vpop.f32.mrb[0].mxu0
    %v3173 = vpop.f32.mrb[0].mxu0
    %v3174 = vpop.f32.mrb[0].mxu0
    %3175 = vdwg.mxu0
    %v3176 = vlaneseq
    %v3177 = vshrl.u32 %v3176, 7
    %v3178 = vsub.s32 1, %v3177
    %v3179 = vrot.slane %v2939, %v3178
    %v3180 = vmul.f32 %v3091, %v3179
    %v3181 = vlaneseq
    %v3182 = vshrl.u32 %v3181, 7
    %v3183 = vsub.s32 2, %v3182
    %v3184 = vrot.slane %v2939, %v3183
    %v3185 = vadd.f32 %v3180, %v3184
    %v3186 = vxor.u32 %v3185, 2147483648
    %v3187 = vmul.f32 %v3186, 1.442695
    %v3188 = vpow.pop %v3187
    %v3189 = vadd.f32 %v3188, 1.0
    %v3190 = vrcp.pop %v3189
    %v3191 = vmul.f32 1.0, %v3190
    %v3192 = vmul.f32 %v3185, %v3191
    %v3193 = vlaneseq
    %v3194 = vshrl.u32 %v3193, 7
    %v3195 = vsub.s32 3, %v3194
    %v3196 = vrot.slane %v2939, %v3195
    %v3197 = vmul.f32 %v3130, %v3196
    %v3198 = vlaneseq
    %v3199 = vshrl.u32 %v3198, 7
    %v3200 = vsub.s32 4, %v3199
    %v3201 = vrot.slane %v2939, %v3200
    %v3202 = vadd.f32 %v3197, %v3201
    %v3203 = vxor.u32 %v3202, 2147483648
    %v3204 = vmul.f32 %v3203, 1.442695
    %v3205 = vpow.pop %v3204
    %v3206 = vadd.f32 %v3205, 1.0
    %v3207 = vrcp.pop %v3206
    %v3208 = vmul.f32 1.0, %v3207
    %v3209 = vmul.f32 %v3202, %v3208
    %v3210 = vlaneseq
    %v3211 = vshrl.u32 %v3210, 7
    %v3212 = vsub.s32 5, %v3211
    %v3213 = vrot.slane %v2939, %v3212
    %v3214 = vmul.f32 %v3132, %v3213
    %v3215 = vlaneseq
    %v3216 = vshrl.u32 %v3215, 7
    %v3217 = vsub.s32 6, %v3216
    %v3218 = vrot.slane %v2939, %v3217
    %v3219 = vadd.f32 %v3214, %v3218
    %v3220 = vxor.u32 %v3219, 2147483648
    %v3221 = vmul.f32 %v3220, 1.442695
    %v3222 = vpow.pop %v3221
    %v3223 = vadd.f32 %v3222, 1.0
    %v3224 = vrcp.pop %v3223
    %v3225 = vmul.f32 1.0, %v3224
    %v3226 = vmul.f32 %v3219, %v3225
    %v3227 = vlaneseq
    %v3228 = vshrl.u32 %v3227, 7
    %v3229 = vsub.s32 7, %v3228
    %v3230 = vrot.slane %v2939, %v3229
    %v3231 = vadd.f32 %v3171, %v3230
    %vm3232 = vcmp.gt.f32.partialorder %v3231, 20.0
    %v3233 = vmin.f32 %v3231, 20.0
    %v3234 = vmul.f32 %v3233, 1.442695
    %v3235 = vpow.pop %v3234
    %v3236 = vadd.f32 %v3235, 1.0
    %v3237 = vlog2.pop %v3236
    %v3238 = vmul.f32 %v3237, 0.6931472
    %v3239 = vmul.f32 -0.5, %v3235
    %v3240 = vadd.f32 %v3239, 1.0
    %v3241 = vmul.f32 %v3240, %v3235
    %v3242 = vand.u32 2147483647, %v3235
    %vm3243 = vcmp.lt.f32.partialorder %v3242, 0.0004427343
    %v3244 = vsel %vm3243, %v3241, %v3238
    %v3245 = vsel %vm3232, %v3231, %v3244
    %v3246 = vmul.f32 %v3209, %v3226
    %v3247 = vsel %vm328, %v3246, 0.0
    %3248 = vadd.xlane.f32.xlu0 %v3247
    %v3249 = vpop.xlane.xlu0 %3248
    %v3250 = vmul.f32 %v3245, %v3249
    %v3251 = vlaneseq
    %v3252 = vshrl.u32 %v3251, 7
    %v3253 = vsub.s32 0, %v3252
    %v3254 = vrot.slane %v2940, %v3253
    %v3255 = vadd.f32 %v3250, %v3254
    %v3256 = vmul.f32 %v3192, %v3255
    %v3257 = vxor.u32 %v3089, 2147483648
    %v3258 = vmul.f32 %v3257, 1.442695
    %v3259 = vpow.pop %v3258
    %v3260 = vadd.f32 %v3259, 1.0
    %v3261 = vrcp.pop %v3260
    %v3262 = vmul.f32 1.0, %v3261
    %v3263 = vmul.f32 %v3089, %v3262
    %v3264 = vmul.f32 %v3256, %v3263
    %v3265 = vmul.f32 %v3264, %v3264
    %v3266 = vsel %vm348, %v3265, 0.0
    %3267 = vadd.xlane.f32.xlu0 %v3266
    %v3268 = vpop.xlane.xlu0 %3267
    %v3269 = vmul.f32 %v3268, %v352
    %v3270 = vadd.f32 %v3269, 1e-05
    %v3271 = vrsqrt.pop %v3270
    %v3272 = vmul.f32 %v3264, %v3271
    %v3273 = vlaneseq
    %v3274 = vshrl.u32 %v3273, 7
    %v3275 = vsub.s32 1, %v3274
    %v3276 = vrot.slane %v2940, %v3275
    %v3277 = vmul.f32 %v3272, %v3276
    %v3278 = vpack.c.bf16 %v3277, %v3277
    %v3287 = vunpack.c.l.b16 %v2955
    %v3288 = vunpack.c.l.b16 %v2956
    %v3289 = vunpack.c.l.b16 %v2957
    %v3290 = vunpack.c.l.b16 %v2958
    %v3291 = vunpack.c.l.b16 %v2959
    %v3292 = vunpack.c.l.b16 %v2960
    %v3293 = vunpack.c.l.b16 %v2961
    %v3294 = vunpack.c.l.b16 %v2962
    %v3295 = vpack.c.b16 %v3288, %v3287
    %v3296 = vpack.c.b16 %v3290, %v3289
    %v3297 = vpack.c.b16 %v3292, %v3291
    %v3298 = vpack.c.b16 %v3294, %v3293
    %v3304 = vsel %vm387, %v3278, 0
    %3306 = vmatprep.subr.bf16.mxu0 0
    %3307 = vmatpush1.bf16.msra.mxu0 %v3295
    %3308 = vmatprep.subr.bf16.mxu0 0
    %3309 = vmatpush1.bf16.msra.mxu0 %v3296
    %3310 = vmatprep.subr.bf16.mxu0 0
    %3311 = vmatpush1.bf16.msra.mxu0 %v3297
    %3312 = vmatprep.subr.bf16.mxu0 0
    %3313 = vmatpush1.bf16.msra.mxu0 %v3298
    %3314 = vmatprep.subr.bf16.mxu0 0
    %3315 = vmatpush1.bf16.msra.mxu0 0
    %3316 = vmatprep.subr.bf16.mxu0 0
    %3317 = vmatpush1.bf16.msra.mxu0 0
    %3318 = vmatprep.subr.bf16.mxu0 0
    %3319 = vmatpush1.bf16.msra.mxu0 0
    %3320 = vmatprep.subr.bf16.mxu0 0
    %3321 = vmatpush1.bf16.msra.mxu0 0
    %3322 = vmatprep.subr.bf16.mxu0 0
    %3323 = vmatpush1.bf16.msra.mxu0 0
    %3324 = vmatprep.subr.bf16.mxu0 0
    %3325 = vmatpush1.bf16.msra.mxu0 0
    %3326 = vmatprep.subr.bf16.mxu0 0
    %3327 = vmatpush1.bf16.msra.mxu0 0
    %3328 = vmatprep.subr.bf16.mxu0 0
    %3329 = vmatpush1.bf16.msra.mxu0 0
    %3330 = vmatprep.subr.bf16.mxu0 0
    %3331 = vmatpush1.bf16.msra.mxu0 0
    %3332 = vmatprep.subr.bf16.mxu0 0
    %3333 = vmatpush1.bf16.msra.mxu0 0
    %3334 = vmatprep.subr.bf16.mxu0 0
    %3335 = vmatpush1.bf16.msra.mxu0 0
    %3336 = vmatprep.subr.bf16.mxu0 0
    %3337 = vmatpush1.bf16.msra.mxu0 0
    %3338 = vmatprep.mubr.bf16.mxu0 0
    %3339 = vmatmul.mubr.bf16.gmra.mrb[0].mxu0 %v3304
    %v3340 = vpop.f32.mrb[0].mxu0
    %v3341 = vadd.f32 0.0, %v3340
    %v3342 = vpop.f32.mrb[0].mxu0
    %v3343 = vpop.f32.mrb[0].mxu0
    %v3344 = vpop.f32.mrb[0].mxu0
    %3345 = vdwg.mxu0
    %v3346 = vadd.f32 %v2937, %v3341
    %v3347 = vmul.f32 %v3346, %v3346
    %v3348 = vsel %vm59, %v3347, 0.0
    %3349 = vadd.xlane.f32.xlu0 %v3348
    %v3350 = vpop.xlane.xlu0 %3349
    %v3351 = vadd.f32 %v3350, 1e-06
    %v3352 = vrsqrt.pop %v3351
    %v3353 = vmul.f32 %v3351, %v3352
    %vm3354 = vcmp.eq.f32.partialorder %v3351, inf
    %v3355 = vsel %vm3354, %v3351, %v3353
    %vm3356 = vcmp.eq.f32.partialorder %v3351, 0.0
    %v3357 = vand.u32 %v3351, 2147483648
    %v3358 = vsel %vm3356, %v3357, %v3355
    %v3359 = vlaneseq
    %v3360 = vshrl.u32 %v3359, 7
    %v3361 = vsub.s32 2, %v3360
    %v3362 = vrot.slane %v2940, %v3361
    %v3363 = vmul.f32 %v3362, %v3346
    %v3364 = vrcp.pop %v3358
    %v3365 = vmul.f32 %v3363, %v3364
    %v3366 = vpack.c.bf16 %v3365, %v3365
    %v3367 = vlaneseq
    %v3368 = vshrl.u32 %v3367, 7
    %v3369 = vsub.s32 3, %v3368
    %v3370 = vrot.slane %v2940, %v3369
    %v3371 = vunpack.c.h.b16 %v2944
    %v3372 = vunpack.c.h.b16 %v2947
    %v3373 = vunpack.c.h.b16 %v2950
    %v3374 = vunpack.c.h.b16 %v2953
    %v3375 = vpack.c.b16 %v3372, %v3371
    %v3376 = vpack.c.b16 %v3374, %v3373
    %v3380 = vsel %vm131, %v3366, 0
    %3382 = vmatprep.subr.bf16.mxu0 0
    %3383 = vmatpush1.bf16.msra.mxu0 %v3375
    %3384 = vmatprep.subr.bf16.mxu0 0
    %3385 = vmatpush1.bf16.msra.mxu0 %v3376
    %3386 = vmatprep.subr.bf16.mxu0 0
    %3387 = vmatpush1.bf16.msra.mxu0 0
    %3388 = vmatprep.subr.bf16.mxu0 0
    %3389 = vmatpush1.bf16.msra.mxu0 0
    %3390 = vmatprep.subr.bf16.mxu0 0
    %3391 = vmatpush1.bf16.msra.mxu0 0
    %3392 = vmatprep.subr.bf16.mxu0 0
    %3393 = vmatpush1.bf16.msra.mxu0 0
    %3394 = vmatprep.subr.bf16.mxu0 0
    %3395 = vmatpush1.bf16.msra.mxu0 0
    %3396 = vmatprep.subr.bf16.mxu0 0
    %3397 = vmatpush1.bf16.msra.mxu0 0
    %3398 = vmatprep.subr.bf16.mxu0 0
    %3399 = vmatpush1.bf16.msra.mxu0 0
    %3400 = vmatprep.subr.bf16.mxu0 0
    %3401 = vmatpush1.bf16.msra.mxu0 0
    %3402 = vmatprep.subr.bf16.mxu0 0
    %3403 = vmatpush1.bf16.msra.mxu0 0
    %3404 = vmatprep.subr.bf16.mxu0 0
    %3405 = vmatpush1.bf16.msra.mxu0 0
    %3406 = vmatprep.subr.bf16.mxu0 0
    %3407 = vmatpush1.bf16.msra.mxu0 0
    %3408 = vmatprep.subr.bf16.mxu0 0
    %3409 = vmatpush1.bf16.msra.mxu0 0
    %3410 = vmatprep.subr.bf16.mxu0 0
    %3411 = vmatpush1.bf16.msra.mxu0 0
    %3412 = vmatprep.subr.bf16.mxu0 0
    %3413 = vmatpush1.bf16.msra.mxu0 0
    %3414 = vmatprep.mubr.bf16.mxu0 0
    %3415 = vmatmul.mubr.bf16.gmra.mrb[0].mxu0 %v3380
    %v3416 = vpop.f32.mrb[0].mxu0
    %v3417 = vadd.f32 %v3370, %v3416
    %v3418 = vpop.f32.mrb[0].mxu0
    %v3419 = vpop.f32.mrb[0].mxu0
    %v3420 = vpop.f32.mrb[0].mxu0
    %3421 = vdwg.mxu0
    %v3422 = vmul.f32 %v3417, 0.5
    %v3423 = vmul.f32 %v3417, 0.70710677
    %v3424 = verf.f32.pop %v3423
    %v3425 = vadd.f32 %v3424, 1.0
    %v3426 = vmul.f32 %v3422, %v3425
    %v3427 = vpack.c.bf16 %v3426, %v3426
    %v3428 = vlaneseq
    %v3429 = vshrl.u32 %v3428, 7
    %v3430 = vsub.s32 4, %v3429
    %v3431 = vrot.slane %v2940, %v3430
    %v3448 = vunpack.c.l.b16 %v2963
    %v3449 = vunpack.c.l.b16 %v2964
    %v3450 = vunpack.c.l.b16 %v2965
    %v3451 = vunpack.c.l.b16 %v2966
    %v3452 = vunpack.c.l.b16 %v2967
    %v3453 = vunpack.c.l.b16 %v2968
    %v3454 = vunpack.c.l.b16 %v2969
    %v3455 = vunpack.c.l.b16 %v2970
    %v3456 = vunpack.c.l.b16 %v2971
    %v3457 = vunpack.c.l.b16 %v2972
    %v3458 = vunpack.c.l.b16 %v2973
    %v3459 = vunpack.c.l.b16 %v2974
    %v3460 = vunpack.c.l.b16 %v2975
    %v3461 = vunpack.c.l.b16 %v2976
    %v3462 = vunpack.c.l.b16 %v2977
    %v3463 = vunpack.c.l.b16 %v2978
    %v3464 = vpack.c.b16 %v3449, %v3448
    %v3465 = vpack.c.b16 %v3451, %v3450
    %v3466 = vpack.c.b16 %v3453, %v3452
    %v3467 = vpack.c.b16 %v3455, %v3454
    %v3468 = vpack.c.b16 %v3457, %v3456
    %v3469 = vpack.c.b16 %v3459, %v3458
    %v3470 = vpack.c.b16 %v3461, %v3460
    %v3471 = vpack.c.b16 %v3463, %v3462
    %3480 = vmatprep.subr.bf16.mxu0 0
    %3481 = vmatpush1.bf16.msra.mxu0 %v3464
    %3482 = vmatprep.subr.bf16.mxu0 0
    %3483 = vmatpush1.bf16.msra.mxu0 %v3465
    %3484 = vmatprep.subr.bf16.mxu0 0
    %3485 = vmatpush1.bf16.msra.mxu0 %v3466
    %3486 = vmatprep.subr.bf16.mxu0 0
    %3487 = vmatpush1.bf16.msra.mxu0 %v3467
    %3488 = vmatprep.subr.bf16.mxu0 0
    %3489 = vmatpush1.bf16.msra.mxu0 %v3468
    %3490 = vmatprep.subr.bf16.mxu0 0
    %3491 = vmatpush1.bf16.msra.mxu0 %v3469
    %3492 = vmatprep.subr.bf16.mxu0 0
    %3493 = vmatpush1.bf16.msra.mxu0 %v3470
    %3494 = vmatprep.subr.bf16.mxu0 0
    %3495 = vmatpush1.bf16.msra.mxu0 %v3471
    %3496 = vmatprep.subr.bf16.mxu0 0
    %3497 = vmatpush1.bf16.msra.mxu0 0
    %3498 = vmatprep.subr.bf16.mxu0 0
    %3499 = vmatpush1.bf16.msra.mxu0 0
    %3500 = vmatprep.subr.bf16.mxu0 0
    %3501 = vmatpush1.bf16.msra.mxu0 0
    %3502 = vmatprep.subr.bf16.mxu0 0
    %3503 = vmatpush1.bf16.msra.mxu0 0
    %3504 = vmatprep.subr.bf16.mxu0 0
    %3505 = vmatpush1.bf16.msra.mxu0 0
    %3506 = vmatprep.subr.bf16.mxu0 0
    %3507 = vmatpush1.bf16.msra.mxu0 0
    %3508 = vmatprep.subr.bf16.mxu0 0
    %3509 = vmatpush1.bf16.msra.mxu0 0
    %3510 = vmatprep.subr.bf16.mxu0 0
    %3511 = vmatpush1.bf16.msra.mxu0 0
    %3512 = vmatprep.mubr.bf16.mxu0 0
    %3513 = vmatmul.mubr.bf16.gmra.mrb[0].mxu0 %v3427
    %v3514 = vpop.f32.mrb[0].mxu0
    %v3515 = vadd.f32 %v3431, %v3514
    %v3516 = vpop.f32.mrb[0].mxu0
    %v3517 = vpop.f32.mrb[0].mxu0
    %v3518 = vpop.f32.mrb[0].mxu0
    %3519 = vdwg.mxu0
    %v3520 = vadd.f32 %v3346, %v3515
    %3521 = vst.msk [vmem:[#allocation2] sm:$0x3] %vm59, %v3520
    // Predicated region
    $region18: #{forward.3} parent=1 // pred_check
      _
    $region19: #{forward.3} parent=1 // pred_check_branch
      %3523 = sbr.rel (0) target = $region21
    $region20: #{forward.3} parent=1 // pred_region
      %s3525 = ssub.s32 32, 32
      %3526 = vsyncadd [#allocation3], %s3525
      %s3528 = sshll.u32 [#allocation2], 4
      %s3529 = int_to_ptr.vmem [resolvable:$true] %s3528
      %3531 = dma.vmem_to_hbm [thread:$0]  %s3529, 32, %s4, [#allocation3]
    $region21: #{forward.3} parent=1 // pred_fallthru
      _
    // Predicated region
    $region22: #{forward.3} parent=1 // pred_check
      _
    $region23: #{forward.3} parent=1 // pred_check_branch
      %3533 = sbr.rel (0) target = $region25
    $region24: #{forward.3} parent=1 // pred_region
      %3534 = dma.done [#allocation3], 32
    $region25: #{forward.3} parent=1 // pred_fallthru
      _
    %3535 = vsyncpa [#allocation3], 1

</llo_original>
